<compile_context>
chip_gen: v7x
topology: tpu7x:2x2x1
jax: 0.10.0
libtpu: 0.0.40
codegen_flags: <defaults>
</compile_context>

<pallas_src>
import jax
import jax.numpy as jnp
from jax.experimental import pallas as pl
from jax.experimental.pallas import tpu as pltpu


def _attention_kernel(x_ref, wq_ref, wk_ref, w1_ref, b1_ref, w2_ref, b2_ref,
                      scale_ref, out_ref, g_ref):
    k = pl.program_id(1)

    @pl.when(k == 0)
    def _():
        g_ref[...] = jnp.zeros_like(g_ref)

    # Gram-matrix partial sum for this sequence chunk: G += x_chunk^T x_chunk.
    # The sequence axis (dim 0 of both operands) is contracted directly on the
    # MXU (transposed-LHS matmul); with the chunked-N grid any residual
    # per-chunk layout work overlaps the next chunk's DMA.
    x = x_ref[0]                                                        # (TN, D) bf16
    g_ref[...] += jax.lax.dot_general(
        x, x, dimension_numbers=(((0,), (0,)), ((), ())),
        preferred_element_type=jnp.float32)                             # (D, D) f32

    @pl.when(k == pl.num_programs(1) - 1)
    def _():
        g = g_ref[...]

        # attn^T = Wk @ G @ Wq^T   (since q^T k = Wq G Wk^T and G is symmetric).
        tmp = jnp.dot(wk_ref[...], g, preferred_element_type=jnp.float32)
        attn_t = jax.lax.dot_general(
            tmp, wq_ref[...], dimension_numbers=(((1,), (1,)), ((), ())),
            preferred_element_type=jnp.float32)                         # (D, D)
        # floor_divide semantics: floor(attn * temperature / divisor); divisor > 0
        # and scale = temperature / divisor was folded on the host.
        attn_t = jnp.floor(attn_t * scale_ref[0])

        # to_out in transposed form: Linear(D->H) -> LeakyReLU(0.01) -> Linear(H->R).
        # (If spills ever show up here, split H into two 128-wide chunks and
        #  accumulate o; kernel is DMA-bound so not needed now.)
        h = jnp.dot(w1_ref[...], attn_t,
                    preferred_element_type=jnp.float32) + b1_ref[...]   # (H, D)
        h = jnp.where(h > 0, h, 0.01 * h)                               # LeakyReLU
        o = jnp.dot(w2_ref[...], h,
                    preferred_element_type=jnp.float32) + b2_ref[...]   # (R, D)

        # softmax over R (= axis 0 in transposed form, i.e. the PyTorch dim=-1
        # before the final transpose)
        o = o - jnp.max(o, axis=0, keepdims=True)
        e = jnp.exp(o)
        sm = e * pl.reciprocal(jnp.sum(e, axis=0, keepdims=True), approx=True)
        out_ref[0] = sm.astype(out_ref.dtype)                           # (R, D)


def _pick_seq_chunk(n):
    """Largest power-of-two sequence chunk (<= 2048) that divides n."""
    for tn in (2048, 1024, 512, 256, 128, 64, 32, 16, 8):
        if n % tn == 0:
            return tn
    return n  # fall back to a single full-length chunk (block == full dim)


def attention_forward(x, params):
    B, N, D = x.shape
    H = params["w1"].shape[0]          # hidden_dim = 2 * D
    R = params["w2"].shape[0]          # num_res2blocks
    # The PyTorch module floor-divides by n // (64*64); require it to be >= 1
    # (otherwise the original module divides by zero).
    div = N // (64 * 64)
    assert div >= 1, "Attention expects a flattened 64x64 (or larger) sequence"

    out_dtype = x.dtype
    # Perf: stream x at half the HBM bytes; the MXU still accumulates in f32.
    # (Ideally the producer emits bf16 directly so this cast fuses upstream.)
    if x.dtype != jnp.bfloat16:
        x = x.astype(jnp.bfloat16)

    TN = _pick_seq_chunk(N)
    num_k = N // TN

    scale = (params["temperature"].reshape(1) / float(div)).astype(jnp.float32)
    b1 = params["b1"].reshape(H, 1).astype(jnp.float32)   # column biases for the
    b2 = params["b2"].reshape(R, 1).astype(jnp.float32)   # transposed epilogue

    return pl.pallas_call(
        _attention_kernel,
        out_shape=jax.ShapeDtypeStruct((B, R, D), out_dtype),
        grid=(B, num_k),
        in_specs=[
            pl.BlockSpec((1, TN, D), lambda b, k: (b, k, 0)),  # x chunk (bf16)
            pl.BlockSpec((D, D), lambda b, k: (0, 0)),         # Wq (out, in)
            pl.BlockSpec((D, D), lambda b, k: (0, 0)),         # Wk (out, in)
            pl.BlockSpec((H, D), lambda b, k: (0, 0)),         # W1 (out, in)
            pl.BlockSpec((H, 1), lambda b, k: (0, 0)),         # b1 column
            pl.BlockSpec((R, H), lambda b, k: (0, 0)),         # W2 (out, in)
            pl.BlockSpec((R, 1), lambda b, k: (0, 0)),         # b2 column
            pl.BlockSpec(memory_space=pltpu.MemorySpace.SMEM), # scale scalar
        ],
        out_specs=pl.BlockSpec((1, R, D), lambda b, k: (b, 0, 0)),
        scratch_shapes=[pltpu.VMEM((D, D), jnp.float32)],      # Gram accumulator
        compiler_params=pltpu.CompilerParams(
            dimension_semantics=("parallel", "arbitrary"),
            vmem_limit_bytes=32 * 1024 * 1024),
    )(x, params["wq"], params["wk"], params["w1"], b1, params["w2"], b2, scale)


def init_params(key, dim, num_res2blocks):
    """Deterministic init mirroring the module's parameter shapes."""
    hidden = dim * 2
    ks = jax.random.split(key, 6)

    def lin_w(k, out_d, in_d):
        bound = 1.0 / (in_d ** 0.5)
        return jax.random.uniform(k, (out_d, in_d), jnp.float32, -bound, bound)

    def lin_b(k, out_d, in_d):
        bound = 1.0 / (in_d ** 0.5)
        return jax.random.uniform(k, (out_d,), jnp.float32, -bound, bound)

    return {
        "temperature": jnp.ones((1, 1, 1), jnp.float32),  # nn.Parameter(torch.ones(1,1,1))
        "wq": lin_w(ks[0], dim, dim),                     # to_q (no bias)
        "wk": lin_w(ks[1], dim, dim),                     # to_k (no bias)
        "w1": lin_w(ks[2], hidden, dim),                  # to_out[0]
        "b1": lin_b(ks[3], hidden, dim),
        "w2": lin_w(ks[4], num_res2blocks, hidden),       # to_out[3]
        "b2": lin_b(ks[5], num_res2blocks, hidden),
    }


def reference(x, p):
    """Pure-JAX f32 reference of the PyTorch forward."""
    N = x.shape[1]
    divisor = float(N // (64 * 64))
    q = x @ p["wq"].T
    k = x @ p["wk"].T
    attn = jnp.floor((jnp.einsum("bnd,bne->bde", q, k) * p["temperature"]) / divisor)
    h = attn @ p["w1"].T + p["b1"]
    h = jnp.where(h > 0, h, 0.01 * h)
    o = h @ p["w2"].T + p["b2"]
    sm = jax.nn.softmax(o, axis=-1)
    return jnp.swapaxes(sm, -2, -1)


if __name__ == "__main__":
    # N = 64*64 so the PyTorch divisor `n // (64*64)` is 1 (the module assumes a
    # flattened 64x64 spatial input; smaller N would divide by zero).
    B, N, D, R = 2, 4096, 128, 8

    key = jax.random.PRNGKey(0)
    kx, kp = jax.random.split(key)
    x = jax.random.normal(kx, (B, N, D), jnp.float32)
    params = init_params(kp, D, R)

    out = jax.block_until_ready(attention_forward(x, params))

    assert out.shape == (B, R, D)
    assert bool(jnp.all(jnp.isfinite(out)))
    # softmax was over num_res2blocks, which is axis 1 after the final transpose;
    # the approx (EUP) reciprocal allows a tiny normalization error.
    assert bool(jnp.allclose(out.sum(axis=1), 1.0, atol=1e-2))

    # (a) Matched-quantization reference: same bf16 rounding of x as the kernel,
    #     so residual differences come only from f32 summation-order hitting
    #     floor() exactly at integer boundaries (as in the previous version).
    x_q = x.astype(jnp.bfloat16).astype(jnp.float32)
    ref_q = reference(x_q, params)
    err_q = jnp.abs(out - ref_q)
    assert float(jnp.mean(err_q)) < 1e-2
    assert float(jnp.max(err_q)) < 0.35

    # (b) Full-precision reference (exact PyTorch semantics): the bf16 x cast
    #     shifts a small fraction of attn entries across floor() boundaries,
    #     perturbing a handful of softmax outputs, so these bounds are
    #     statistical rather than elementwise-tight.
    ref = reference(x, params)
    err = jnp.abs(out - ref)
    assert float(jnp.mean(err)) < 2e-2
    assert float(jnp.max(err)) < 0.5

    print("KERNEL_OK")
</pallas_src>

<mosaic_0001>
module attributes {stable_mosaic.version = 11 : i64} {
  func.func @_attention_kernel(%arg0: i32, %arg1: i32, %arg2: memref<1x2048x128xbf16, #tpu.memory_space<vmem>>, %arg3: memref<128x128xf32, #tpu.memory_space<vmem>>, %arg4: memref<128x128xf32, #tpu.memory_space<vmem>>, %arg5: memref<256x128xf32, #tpu.memory_space<vmem>>, %arg6: memref<256x1xf32, #tpu.memory_space<vmem>>, %arg7: memref<8x256xf32, #tpu.memory_space<vmem>>, %arg8: memref<8x1xf32, #tpu.memory_space<vmem>>, %arg9: memref<1xf32, #tpu.memory_space<smem>>, %arg10: memref<1x8x128xf32, #tpu.memory_space<vmem>>, %arg11: memref<128x128xf32, #tpu.memory_space<vmem>>) attributes {dimension_semantics = [#tpu.dimension_semantics<parallel>, #tpu.dimension_semantics<arbitrary>], iteration_bounds = array<i64: 2, 2>, scalar_prefetch = 0 : i64, scratch_operands = 1 : i64, tpu.core_type = #tpu.core_type<tc>, window_params = [{transform_indices = @transform_0, window_bounds = array<i64: 1, 2048, 128>}, {pipeline_mode = #tpu.pipeline_mode<synchronous>, transform_indices = @transform_1, window_bounds = array<i64: 128, 128>}, {pipeline_mode = #tpu.pipeline_mode<synchronous>, transform_indices = @transform_2, window_bounds = array<i64: 128, 128>}, {pipeline_mode = #tpu.pipeline_mode<synchronous>, transform_indices = @transform_3, window_bounds = array<i64: 256, 128>}, {pipeline_mode = #tpu.pipeline_mode<synchronous>, transform_indices = @transform_4, window_bounds = array<i64: 256, 1>}, {pipeline_mode = #tpu.pipeline_mode<synchronous>, transform_indices = @transform_5, window_bounds = array<i64: 8, 256>}, {pipeline_mode = #tpu.pipeline_mode<synchronous>, transform_indices = @transform_6, window_bounds = array<i64: 8, 1>}, {transform_indices = @transform_7, window_bounds = array<i64: 1>}, {transform_indices = @transform_8, window_bounds = array<i64: 1, 8, 128>}]} {
    %c0_i32 = arith.constant 0 : i32
    %0 = arith.cmpi eq, %arg1, %c0_i32 : i32
    %1 = arith.extui %0 : i1 to i32
    %c0_i32_0 = arith.constant 0 : i32
    %2 = arith.cmpi ne, %1, %c0_i32_0 : i32
    scf.if %2 {
      %cst_8 = arith.constant 0.000000e+00 : f32
      %12 = vector.broadcast %cst_8 : f32 to vector<128x128xf32>
      %c0_9 = arith.constant 0 : index
      %c0_10 = arith.constant 0 : index
      %13 = vector.load %arg11[%c0_9, %c0_10] : memref<128x128xf32, #tpu.memory_space<vmem>>, vector<128x128xf32>
      tpu.vector_store %arg11[%c0_9, %c0_10], %12 {strides = array<i32>} : memref<128x128xf32, #tpu.memory_space<vmem>>, vector<128x128xf32>,
    } else {
    }
    %c0 = arith.constant 0 : index
    %c0_1 = arith.constant 0 : index
    %c0_2 = arith.constant 0 : index
    %3 = vector.load %arg2[%c0, %c0_1, %c0_2] : memref<1x2048x128xbf16, #tpu.memory_space<vmem>>, vector<1x2048x128xbf16>
    %4 = vector.shape_cast %3 : vector<1x2048x128xbf16> to vector<2048x128xbf16>
    %c0_3 = arith.constant 0 : index
    %c0_4 = arith.constant 0 : index
    %5 = vector.load %arg11[%c0_3, %c0_4] : memref<128x128xf32, #tpu.memory_space<vmem>>, vector<128x128xf32>
    %cst = arith.constant dense<0.000000e+00> : vector<128x128xf32>
    %6 = tpu.matmul %4, %4, %cst {dimension_numbers = #tpu.dot_dimension_numbers<[0], [0], [1], [1], [0, 1, 1, 1], [], []>} : vector<2048x128xbf16>, vector<2048x128xbf16>, vector<128x128xf32> -> vector<128x128xf32>
    %7 = arith.addf %5, %6 : vector<128x128xf32>
    %c0_5 = arith.constant 0 : index
    %c0_6 = arith.constant 0 : index
    %8 = vector.load %arg11[%c0_5, %c0_6] : memref<128x128xf32, #tpu.memory_space<vmem>>, vector<128x128xf32>
    tpu.vector_store %arg11[%c0_5, %c0_6], %7 {strides = array<i32>} : memref<128x128xf32, #tpu.memory_space<vmem>>, vector<128x128xf32>,
    %c1_i32 = arith.constant 1 : i32
    %9 = arith.cmpi eq, %arg1, %c1_i32 : i32
    %10 = arith.extui %9 : i1 to i32
    %c0_i32_7 = arith.constant 0 : i32
    %11 = arith.cmpi ne, %10, %c0_i32_7 : i32
    scf.if %11 {
      %c0_8 = arith.constant 0 : index
      %c0_9 = arith.constant 0 : index
      %12 = vector.load %arg11[%c0_8, %c0_9] : memref<128x128xf32, #tpu.memory_space<vmem>>, vector<128x128xf32>
      %c0_10 = arith.constant 0 : index
      %c0_11 = arith.constant 0 : index
      %13 = vector.load %arg4[%c0_10, %c0_11] : memref<128x128xf32, #tpu.memory_space<vmem>>, vector<128x128xf32>
      %cst_12 = arith.constant dense<0.000000e+00> : vector<128x128xf32>
      %14 = tpu.matmul %13, %12, %cst_12 {dimension_numbers = #tpu.dot_dimension_numbers<[1], [0], [0], [1], [0, 0, 1, 1], [], []>} : vector<128x128xf32>, vector<128x128xf32>, vector<128x128xf32> -> vector<128x128xf32>
      %c0_13 = arith.constant 0 : index
      %c0_14 = arith.constant 0 : index
      %15 = vector.load %arg3[%c0_13, %c0_14] : memref<128x128xf32, #tpu.memory_space<vmem>>, vector<128x128xf32>
      %cst_15 = arith.constant dense<0.000000e+00> : vector<128x128xf32>
      %16 = tpu.matmul %14, %15, %cst_15 {dimension_numbers = #tpu.dot_dimension_numbers<[1], [1], [0], [0], [0, 0, 1, 0], [], []>} : vector<128x128xf32>, vector<128x128xf32>, vector<128x128xf32> -> vector<128x128xf32>
      %c0_16 = arith.constant 0 : index
      %17 = memref.load %arg9[%c0_16] : memref<1xf32, #tpu.memory_space<smem>>
      %18 = vector.broadcast %17 : f32 to vector<128x128xf32>
      %19 = arith.mulf %16, %18 : vector<128x128xf32>
      %20 = math.floor %19 : vector<128x128xf32>
      %c0_17 = arith.constant 0 : index
      %c0_18 = arith.constant 0 : index
      %21 = vector.load %arg5[%c0_17, %c0_18] : memref<256x128xf32, #tpu.memory_space<vmem>>, vector<256x128xf32>
      %cst_19 = arith.constant dense<0.000000e+00> : vector<256x128xf32>
      %22 = tpu.matmul %21, %20, %cst_19 {dimension_numbers = #tpu.dot_dimension_numbers<[1], [0], [0], [1], [0, 0, 1, 1], [], []>} : vector<256x128xf32>, vector<128x128xf32>, vector<256x128xf32> -> vector<256x128xf32>
      %c0_20 = arith.constant 0 : index
      %c0_21 = arith.constant 0 : index
      %23 = vector.load %arg6[%c0_20, %c0_21] : memref<256x1xf32, #tpu.memory_space<vmem>>, vector<256x1xf32>
      %24 = vector.broadcast %23 : vector<256x1xf32> to vector<256x128xf32>
      %25 = arith.addf %22, %24 : vector<256x128xf32>
      %cst_22 = arith.constant 0.000000e+00 : f32
      %26 = vector.broadcast %cst_22 : f32 to vector<256x128xf32>
      %27 = arith.cmpf ogt, %25, %26 : vector<256x128xf32>
      %cst_23 = arith.constant 0.00999999977 : f32
      %28 = vector.broadcast %cst_23 : f32 to vector<256x128xf32>
      %29 = arith.mulf %28, %25 : vector<256x128xf32>
      %30 = arith.select %27, %25, %29 : vector<256x128xi1>, vector<256x128xf32>
      %c0_24 = arith.constant 0 : index
      %c0_25 = arith.constant 0 : index
      %31 = vector.load %arg7[%c0_24, %c0_25] : memref<8x256xf32, #tpu.memory_space<vmem>>, vector<8x256xf32>
      %cst_26 = arith.constant dense<0.000000e+00> : vector<8x128xf32>
      %32 = tpu.matmul %31, %30, %cst_26 {dimension_numbers = #tpu.dot_dimension_numbers<[1], [0], [0], [1], [0, 0, 1, 1], [], []>} : vector<8x256xf32>, vector<256x128xf32>, vector<8x128xf32> -> vector<8x128xf32>
      %c0_27 = arith.constant 0 : index
      %c0_28 = arith.constant 0 : index
      %33 = vector.load %arg8[%c0_27, %c0_28] : memref<8x1xf32, #tpu.memory_space<vmem>>, vector<8x1xf32>
      %34 = vector.broadcast %33 : vector<8x1xf32> to vector<8x128xf32>
      %35 = arith.addf %32, %34 : vector<8x128xf32>
      %cst_29 = arith.constant dense<0xFF800000> : vector<128xf32>
      %36 = vector.multi_reduction <maximumf>, %35, %cst_29 [0] : vector<8x128xf32> to vector<128xf32>
      %37 = vector.shape_cast %36 : vector<128xf32> to vector<1x128xf32>
      %38 = vector.broadcast %37 : vector<1x128xf32> to vector<8x128xf32>
      %39 = arith.subf %35, %38 : vector<8x128xf32>
      %40 = math.exp %39 : vector<8x128xf32>
      %cst_30 = arith.constant dense<0.000000e+00> : vector<128xf32>
      %41 = vector.multi_reduction <add>, %40, %cst_30 [0] : vector<8x128xf32> to vector<128xf32>
      %42 = vector.shape_cast %41 : vector<128xf32> to vector<1x128xf32>
      %43 = tpu.reciprocal %42 {approx = true} : vector<1x128xf32> -> vector<1x128xf32>
      %44 = vector.broadcast %43 : vector<1x128xf32> to vector<8x128xf32>
      %45 = arith.mulf %40, %44 : vector<8x128xf32>
      %c0_31 = arith.constant 0 : index
      %c0_32 = arith.constant 0 : index
      %c0_33 = arith.constant 0 : index
      %46 = vector.load %arg10[%c0_31, %c0_32, %c0_33] : memref<1x8x128xf32, #tpu.memory_space<vmem>>, vector<1x8x128xf32>
      %47 = vector.shape_cast %46 : vector<1x8x128xf32> to vector<8x128xf32>
      %48 = vector.shape_cast %45 : vector<8x128xf32> to vector<1x8x128xf32>
      tpu.vector_store %arg10[%c0_31, %c0_32, %c0_33], %48 {strides = array<i32>} : memref<1x8x128xf32, #tpu.memory_space<vmem>>, vector<1x8x128xf32>,
    } else {
    }
    return
  }
  func.func @transform_0(%arg0: i32, %arg1: i32) -> (i32, i32, i32) {
    %c0_i32 = arith.constant 0 : i32
    %c0_i32_0 = arith.constant 0 : i32
    return %arg0, %arg1, %c0_i32 : i32, i32, i32
  }
  func.func @transform_1(%arg0: i32, %arg1: i32) -> (i32, i32) {
    %c0_i32 = arith.constant 0 : i32
    %c0_i32_0 = arith.constant 0 : i32
    %c0_i32_1 = arith.constant 0 : i32
    return %c0_i32, %c0_i32_0 : i32, i32
  }
  func.func @transform_2(%arg0: i32, %arg1: i32) -> (i32, i32) {
    %c0_i32 = arith.constant 0 : i32
    %c0_i32_0 = arith.constant 0 : i32
    %c0_i32_1 = arith.constant 0 : i32
    return %c0_i32, %c0_i32_0 : i32, i32
  }
  func.func @transform_3(%arg0: i32, %arg1: i32) -> (i32, i32) {
    %c0_i32 = arith.constant 0 : i32
    %c0_i32_0 = arith.constant 0 : i32
    %c0_i32_1 = arith.constant 0 : i32
    return %c0_i32, %c0_i32_0 : i32, i32
  }
  func.func @transform_4(%arg0: i32, %arg1: i32) -> (i32, i32) {
    %c0_i32 = arith.constant 0 : i32
    %c0_i32_0 = arith.constant 0 : i32
    %c0_i32_1 = arith.constant 0 : i32
    return %c0_i32, %c0_i32_0 : i32, i32
  }
  func.func @transform_5(%arg0: i32, %arg1: i32) -> (i32, i32) {
    %c0_i32 = arith.constant 0 : i32
    %c0_i32_0 = arith.constant 0 : i32
    %c0_i32_1 = arith.constant 0 : i32
    return %c0_i32, %c0_i32_0 : i32, i32
  }
  func.func @transform_6(%arg0: i32, %arg1: i32) -> (i32, i32) {
    %c0_i32 = arith.constant 0 : i32
    %c0_i32_0 = arith.constant 0 : i32
    %c0_i32_1 = arith.constant 0 : i32
    return %c0_i32, %c0_i32_0 : i32, i32
  }
  func.func @transform_7(%arg0: i32, %arg1: i32) -> i32 {
    %c0_i32 = arith.constant 0 : i32
    %c0_i32_0 = arith.constant 0 : i32
    return %c0_i32 : i32
  }
  func.func @transform_8(%arg0: i32, %arg1: i32) -> (i32, i32, i32) {
    %c0_i32 = arith.constant 0 : i32
    %c0_i32_0 = arith.constant 0 : i32
    %c0_i32_1 = arith.constant 0 : i32
    return %arg0, %c0_i32, %c0_i32_0 : i32, i32, i32
  }
}

</mosaic_0001>

<llo_original>
// kernel: tpu_custom_call.1
$region0: #{tpu_custom_call.1}
  #allocation0 [shape = 'u32[]', space=smem, size = 0x4, offset = 0x4, fixed_abs, tag = 'smem constant byte address 0x4 - core index']
  #allocation1 [shape = 'u32[144,128]{1,0:T(1,128)}', space=vmem, size = 0x12000, scoped, tag = 'internal scratch']
  #allocation2 [shape = 'f32[128,128]{1,0:T(8,128)}', space=vmem, size = 0x10000, scoped, tag = 'scratch operand']
  #allocation3 [shape = 'f32[1]{0:T(128)S(6)}', space=smem, size = 0x200, scoped, tag = 'scoped memory for tpu_custom_call.1']
  %s0 = inlined_call_operand.hbm [shape: bf16[2,4096,128], index: 0, kind: input, shape index: {}]
  %s1 = inlined_call_operand.hbm [shape: f32[128,128], index: 1, kind: input, shape index: {}]
  %s2 = inlined_call_operand.hbm [shape: f32[128,128], index: 2, kind: input, shape index: {}]
  %s3 = inlined_call_operand.hbm [shape: f32[256,128], index: 3, kind: input, shape index: {}]
  %s4 = inlined_call_operand.vmem [shape: f32[256,1], index: 4, kind: input, shape index: {}]
  %s5 = inlined_call_operand.hbm [shape: f32[8,256], index: 5, kind: input, shape index: {}]
  %s6 = inlined_call_operand.vmem [shape: f32[8,1], index: 6, kind: input, shape index: {}]
  %s7 = inlined_call_operand.<no memory space> [shape: f32[1], index: 7, kind: input, shape index: {}]
  %s8 = inlined_call_operand.hbm [shape: f32[2,8,128], index: 8, kind: output, shape index: {}]
  %s9 = sld [smem:[#allocation0]]
  $region93: #{tpu_custom_call.1} parent=0
    _
  %s11 = ssub.s32 1, %s9
  %s12 = scalar_select 0, %s11, %s9
  %13 = sst [smem:[#allocation3]] %s7
  $region1: #{tpu_custom_call.1} parent=0
    #allocation4 [shape = 'u8[1048576]{0}', space=vmem, size = 0x100000, scoped, tag = 'input window, operand 0']
    #allocation5 [shape = 's32[2]{0}', space=sflag, size = 0x8, scoped, tag = 'scoped memory for tpu_custom_call.1']
    #allocation6 [shape = 's32[2]{0}', space=sflag, size = 0x8, scoped, tag = 'scoped memory for tpu_custom_call.1']
    #allocation7 [shape = 'u8[65536]{0}', space=vmem, size = 0x10000, scoped, tag = 'input window, operand 1, single buffered']
    #allocation8 [shape = 's32[1]{0}', space=sflag, size = 0x4, scoped, tag = 'scoped memory for tpu_custom_call.1']
    #allocation9 [shape = 'u8[65536]{0}', space=vmem, size = 0x10000, scoped, tag = 'input window, operand 2, single buffered']
    #allocation10 [shape = 'u8[131072]{0}', space=vmem, size = 0x20000, scoped, tag = 'input window, operand 3, single buffered']
    #allocation11 [shape = 's32[1]{0}', space=sflag, size = 0x4, scoped, tag = 'scoped memory for tpu_custom_call.1']
    #allocation12 [shape = 'u8[8192]{0}', space=vmem, size = 0x2000, scoped, tag = 'input window, operand 5, single buffered']
    #allocation13 [shape = 'u8[8192]{0}', space=vmem, size = 0x2000, scoped, tag = 'output window, operand 0']
    %14 = vsyncpa [#allocation5], 0
    %s15 = scalar_lea.sflag [#allocation5], 1
    %16 = vsyncpa %s15, 0
    %17 = vsyncpa [#allocation8], 0
    %18 = vsyncpa [#allocation11], 0
    %19 = vsyncpa [#allocation6], 0
    %s20 = scalar_lea.sflag [#allocation6], 1
    %21 = vsyncpa %s20, 0
    loop: start=0, step=1, limit=6
    $region2: #{tpu_custom_call.1} parent=1 // loop_pre_header
      _
    $region3: #{tpu_custom_call.1} parent=1 // loop_header
      %s23 = sphi 0, %s27
      %p24 = scmp.ge.s32.totalorder %s23, 6
      %s30 = sphi 0, %s42
      %s31 = sphi 0, %s38
      %s32 = sphi 0, %s30
      %s33 = sphi 0, %s31
      %s34 = sphi 0, %s32
      %s35 = sphi 0, %s33
      %s47 = sphi 0, %s49
      %s50 = sphi 0, %s47
      %s51 = sphi 0, %s50
      %s67 = sphi 0, %s51
      %s71 = sphi 0, %s71
      %s73 = sphi 0, %s71
      %s74 = sphi 0, %s73
      %s88 = sphi 0, %s74
      %s92 = sphi 0, %s92
      %s94 = sphi 0, %s92
      %s95 = sphi 0, %s94
      %s109 = sphi 0, %s95
      %s113 = sphi 0, %s113
      %s115 = sphi 0, %s113
      %s116 = sphi 0, %s115
      %s130 = sphi 0, %s116
      %s134 = sphi 0, %s134
      %s136 = sphi 0, %s134
      %s137 = sphi 0, %s136
      %s151 = sphi 0, %s137
      %s155 = sphi 0, %s155
      %s157 = sphi 0, %s155
      %s158 = sphi 0, %s157
      %s172 = sphi 0, %s158
      %s176 = sphi 0, %s176
      %s178 = sphi 0, %s176
      %s179 = sphi 0, %s178
      %s193 = sphi 0, %s179
      %s197 = sphi 0, %s197
      %s199 = sphi 0, %s197
      %s200 = sphi 0, %s199
      %s214 = sphi 0, %s200
      %s220 = sphi 0, %s222
      %s223 = sphi 0, %s220
      %s224 = sphi 0, %s223
      %s240 = sphi 0, %s224
    $region4: #{tpu_custom_call.1} parent=1 // loop_header_branch
      %26 = sbr.rel (%p24) target = $region8
    $region5: #{tpu_custom_call.1} parent=1 // loop_body
      %s28 = ssub.s32 %s23, 1
      %s29 = ssub.s32 %s23, 2
      %s36 = sadd.s32 1, %s31
      %p37 = scmp.ge.s32.totalorder %s36, 2
      %s38 = scalar_select %p37, 0, %s36
      %s39 = sadd.s32 1, %s30
      %s40 = scalar_select %p37, %s39, %s30
      %p41 = scmp.ge.s32.totalorder %s40, 2
      %s42 = scalar_select %p41, 0, %s40
      %s43 = ssub.s32 %s30, %s42
      %s44 = ssub.s32 %s31, %s38
      %s45 = sor.u32 %s43, %s44
      %p46 = scmp.eq.s32.totalorder %s45, 0
      %s48 = sadd.s32 %s47, 1
      %s49 = scalar_select %p46, %s47, %s48
      %p52 = pneg %p46
      %p53 = scmp.eq.s32.totalorder %s23, 3
      %p54 = por %p52, %p53
      %p55 = scmp.ne.s32.totalorder %s47, %s50
      %p56 = scmp.eq.s32.totalorder %s23, 0
      %p57 = por %p55, %p56
      %p58 = scmp.ne.s32.totalorder %s47, %s50
      %p59 = scmp.eq.s32.totalorder %s28, 3
      %p60 = por %p58, %p59
      %p61 = scmp.ne.s32.totalorder %s50, %s51
      %p62 = scmp.eq.s32.totalorder %s28, 0
      %p63 = por %p61, %p62
      %p64 = scmp.ne.s32.totalorder %s50, %s51
      %p65 = scmp.eq.s32.totalorder %s29, 3
      %p66 = por %p64, %p65
      %p68 = scmp.ne.s32.totalorder %s51, %s67
      %p69 = scmp.eq.s32.totalorder %s29, 0
      %p70 = por %p68, %p69
      %s72 = sadd.s32 %s71, 1
      %p75 = scmp.eq.s32.totalorder %s23, 3
      %p76 = scmp.ne.s32.totalorder %s71, %s73
      %p77 = scmp.eq.s32.totalorder %s23, 0
      %p78 = por %p76, %p77
      %p79 = scmp.ne.s32.totalorder %s71, %s73
      %p80 = scmp.eq.s32.totalorder %s28, 3
      %p81 = por %p79, %p80
      %p82 = scmp.ne.s32.totalorder %s73, %s74
      %p83 = scmp.eq.s32.totalorder %s28, 0
      %p84 = por %p82, %p83
      %p85 = scmp.ne.s32.totalorder %s73, %s74
      %p86 = scmp.eq.s32.totalorder %s29, 3
      %p87 = por %p85, %p86
      %p89 = scmp.ne.s32.totalorder %s74, %s88
      %p90 = scmp.eq.s32.totalorder %s29, 0
      %p91 = por %p89, %p90
      %s93 = sadd.s32 %s92, 1
      %p96 = scmp.eq.s32.totalorder %s23, 3
      %p97 = scmp.ne.s32.totalorder %s92, %s94
      %p98 = scmp.eq.s32.totalorder %s23, 0
      %p99 = por %p97, %p98
      %p100 = scmp.ne.s32.totalorder %s92, %s94
      %p101 = scmp.eq.s32.totalorder %s28, 3
      %p102 = por %p100, %p101
      %p103 = scmp.ne.s32.totalorder %s94, %s95
      %p104 = scmp.eq.s32.totalorder %s28, 0
      %p105 = por %p103, %p104
      %p106 = scmp.ne.s32.totalorder %s94, %s95
      %p107 = scmp.eq.s32.totalorder %s29, 3
      %p108 = por %p106, %p107
      %p110 = scmp.ne.s32.totalorder %s95, %s109
      %p111 = scmp.eq.s32.totalorder %s29, 0
      %p112 = por %p110, %p111
      %s114 = sadd.s32 %s113, 1
      %p117 = scmp.eq.s32.totalorder %s23, 3
      %p118 = scmp.ne.s32.totalorder %s113, %s115
      %p119 = scmp.eq.s32.totalorder %s23, 0
      %p120 = por %p118, %p119
      %p121 = scmp.ne.s32.totalorder %s113, %s115
      %p122 = scmp.eq.s32.totalorder %s28, 3
      %p123 = por %p121, %p122
      %p124 = scmp.ne.s32.totalorder %s115, %s116
      %p125 = scmp.eq.s32.totalorder %s28, 0
      %p126 = por %p124, %p125
      %p127 = scmp.ne.s32.totalorder %s115, %s116
      %p128 = scmp.eq.s32.totalorder %s29, 3
      %p129 = por %p127, %p128
      %p131 = scmp.ne.s32.totalorder %s116, %s130
      %p132 = scmp.eq.s32.totalorder %s29, 0
      %p133 = por %p131, %p132
      %s135 = sadd.s32 %s134, 1
      %p138 = scmp.eq.s32.totalorder %s23, 3
      %p139 = scmp.ne.s32.totalorder %s134, %s136
      %p140 = scmp.eq.s32.totalorder %s23, 0
      %p141 = por %p139, %p140
      %p142 = scmp.ne.s32.totalorder %s134, %s136
      %p143 = scmp.eq.s32.totalorder %s28, 3
      %p144 = por %p142, %p143
      %p145 = scmp.ne.s32.totalorder %s136, %s137
      %p146 = scmp.eq.s32.totalorder %s28, 0
      %p147 = por %p145, %p146
      %p148 = scmp.ne.s32.totalorder %s136, %s137
      %p149 = scmp.eq.s32.totalorder %s29, 3
      %p150 = por %p148, %p149
      %p152 = scmp.ne.s32.totalorder %s137, %s151
      %p153 = scmp.eq.s32.totalorder %s29, 0
      %p154 = por %p152, %p153
      %s156 = sadd.s32 %s155, 1
      %p159 = scmp.eq.s32.totalorder %s23, 3
      %p160 = scmp.ne.s32.totalorder %s155, %s157
      %p161 = scmp.eq.s32.totalorder %s23, 0
      %p162 = por %p160, %p161
      %p163 = scmp.ne.s32.totalorder %s155, %s157
      %p164 = scmp.eq.s32.totalorder %s28, 3
      %p165 = por %p163, %p164
      %p166 = scmp.ne.s32.totalorder %s157, %s158
      %p167 = scmp.eq.s32.totalorder %s28, 0
      %p168 = por %p166, %p167
      %p169 = scmp.ne.s32.totalorder %s157, %s158
      %p170 = scmp.eq.s32.totalorder %s29, 3
      %p171 = por %p169, %p170
      %p173 = scmp.ne.s32.totalorder %s158, %s172
      %p174 = scmp.eq.s32.totalorder %s29, 0
      %p175 = por %p173, %p174
      %s177 = sadd.s32 %s176, 1
      %p180 = scmp.eq.s32.totalorder %s23, 3
      %p181 = scmp.ne.s32.totalorder %s176, %s178
      %p182 = scmp.eq.s32.totalorder %s23, 0
      %p183 = por %p181, %p182
      %p184 = scmp.ne.s32.totalorder %s176, %s178
      %p185 = scmp.eq.s32.totalorder %s28, 3
      %p186 = por %p184, %p185
      %p187 = scmp.ne.s32.totalorder %s178, %s179
      %p188 = scmp.eq.s32.totalorder %s28, 0
      %p189 = por %p187, %p188
      %p190 = scmp.ne.s32.totalorder %s178, %s179
      %p191 = scmp.eq.s32.totalorder %s29, 3
      %p192 = por %p190, %p191
      %p194 = scmp.ne.s32.totalorder %s179, %s193
      %p195 = scmp.eq.s32.totalorder %s29, 0
      %p196 = por %p194, %p195
      %s198 = sadd.s32 %s197, 1
      %p201 = scmp.eq.s32.totalorder %s23, 3
      %p202 = scmp.ne.s32.totalorder %s197, %s199
      %p203 = scmp.eq.s32.totalorder %s23, 0
      %p204 = por %p202, %p203
      %p205 = scmp.ne.s32.totalorder %s197, %s199
      %p206 = scmp.eq.s32.totalorder %s28, 3
      %p207 = por %p205, %p206
      %p208 = scmp.ne.s32.totalorder %s199, %s200
      %p209 = scmp.eq.s32.totalorder %s28, 0
      %p210 = por %p208, %p209
      %p211 = scmp.ne.s32.totalorder %s199, %s200
      %p212 = scmp.eq.s32.totalorder %s29, 3
      %p213 = por %p211, %p212
      %p215 = scmp.ne.s32.totalorder %s200, %s214
      %p216 = scmp.eq.s32.totalorder %s29, 0
      %p217 = por %p215, %p216
      %s218 = ssub.s32 %s30, %s42
      %p219 = scmp.eq.s32.totalorder %s218, 0
      %s221 = sadd.s32 %s220, 1
      %s222 = scalar_select %p219, %s220, %s221
      %p225 = pneg %p219
      %p226 = scmp.eq.s32.totalorder %s23, 3
      %p227 = por %p225, %p226
      %p228 = scmp.ne.s32.totalorder %s220, %s223
      %p229 = scmp.eq.s32.totalorder %s23, 0
      %p230 = por %p228, %p229
      %p231 = scmp.ne.s32.totalorder %s220, %s223
      %p232 = scmp.eq.s32.totalorder %s28, 3
      %p233 = por %p231, %p232
      %p234 = scmp.ne.s32.totalorder %s223, %s224
      %p235 = scmp.eq.s32.totalorder %s28, 0
      %p236 = por %p234, %p235
      %p237 = scmp.ne.s32.totalorder %s223, %s224
      %p238 = scmp.eq.s32.totalorder %s29, 3
      %p239 = por %p237, %p238
      %p241 = scmp.ne.s32.totalorder %s224, %s240
      %p242 = scmp.eq.s32.totalorder %s29, 0
      %p243 = por %p241, %p242
      %p244 = scmp.le.s32.totalorder 1, %s23
      %p245 = scmp.lt.s32.totalorder %s23, 5
      %p246 = pnand %p244, %p245
      %p247 = pneg %p246
      // Predicated region
      $region9: #{tpu_custom_call.1} parent=5 // pred_check
        _
      $region10: #{tpu_custom_call.1} parent=5 // pred_check_branch
        %249 = sbr.rel (%p246) target = $region12
      $region11: #{tpu_custom_call.1} parent=5 // pred_region
        %s250 = ssub.s32 %s23, 1
        // Predicated region
        $region13: #{tpu_custom_call.1} parent=11 // pred_check
          %p251 = pneg %p84
        $region14: #{tpu_custom_call.1} parent=11 // pred_check_branch
          %253 = sbr.rel (%p251) target = $region16
        $region15: #{tpu_custom_call.1} parent=11 // pred_region
          %s255 = ssub.s32 2048, 2048
          %256 = vsyncadd [#allocation8], %s255
          %s257 = sshll.u32 [#allocation7], 4
          %s258 = int_to_ptr.vmem [resolvable:$true] %s257
          %263 = dma.hbm_to_vmem [thread:$0]  %s1, 2048, %s258, [#allocation8], 128, 128, 8
        $region16: #{tpu_custom_call.1} parent=11 // pred_fallthru
          _
        // Predicated region
        $region17: #{tpu_custom_call.1} parent=11 // pred_check
          %p264 = pneg %p105
        $region18: #{tpu_custom_call.1} parent=11 // pred_check_branch
          %266 = sbr.rel (%p264) target = $region20
        $region19: #{tpu_custom_call.1} parent=11 // pred_region
          %s268 = ssub.s32 2048, 2048
          %269 = vsyncadd [#allocation8], %s268
          %s270 = sshll.u32 [#allocation9], 4
          %s271 = int_to_ptr.vmem [resolvable:$true] %s270
          %276 = dma.hbm_to_vmem [thread:$0]  %s2, 2048, %s271, [#allocation8], 128, 128, 8
        $region20: #{tpu_custom_call.1} parent=11 // pred_fallthru
          _
        // Predicated region
        $region21: #{tpu_custom_call.1} parent=11 // pred_check
          %p277 = pneg %p126
        $region22: #{tpu_custom_call.1} parent=11 // pred_check_branch
          %279 = sbr.rel (%p277) target = $region24
        $region23: #{tpu_custom_call.1} parent=11 // pred_region
          %s281 = ssub.s32 4096, 4096
          %282 = vsyncadd [#allocation11], %s281
          %s283 = sshll.u32 [#allocation10], 4
          %s284 = int_to_ptr.vmem [resolvable:$true] %s283
          %289 = dma.hbm_to_vmem [thread:$0]  %s3, 4096, %s284, [#allocation11], 128, 128, 8
        $region24: #{tpu_custom_call.1} parent=11 // pred_fallthru
          _
        // Predicated region
        $region25: #{tpu_custom_call.1} parent=11 // pred_check
          %p290 = pneg %p147
        $region26: #{tpu_custom_call.1} parent=11 // pred_check_branch
          %292 = sbr.rel (%p290) target = $region28
        $region27: #{tpu_custom_call.1} parent=11 // pred_region
          _
        $region28: #{tpu_custom_call.1} parent=11 // pred_fallthru
          _
        // Predicated region
        $region29: #{tpu_custom_call.1} parent=11 // pred_check
          %p293 = pneg %p168
        $region30: #{tpu_custom_call.1} parent=11 // pred_check_branch
          %295 = sbr.rel (%p293) target = $region32
        $region31: #{tpu_custom_call.1} parent=11 // pred_region
          %s297 = ssub.s32 256, 256
          %298 = vsyncadd [#allocation11], %s297
          %s300 = sshll.u32 [#allocation12], 4
          %s301 = int_to_ptr.vmem [resolvable:$true] %s300
          %303 = dma.hbm_to_vmem [thread:$0]  %s5, 256, %s301, [#allocation11]
        $region32: #{tpu_custom_call.1} parent=11 // pred_fallthru
          _
        // Predicated region
        $region33: #{tpu_custom_call.1} parent=11 // pred_check
          %p304 = pneg %p189
        $region34: #{tpu_custom_call.1} parent=11 // pred_check_branch
          %306 = sbr.rel (%p304) target = $region36
        $region35: #{tpu_custom_call.1} parent=11 // pred_region
          _
        $region36: #{tpu_custom_call.1} parent=11 // pred_fallthru
          _
        // Predicated region
        $region37: #{tpu_custom_call.1} parent=11 // pred_check
          %p307 = pneg %p210
        $region38: #{tpu_custom_call.1} parent=11 // pred_check_branch
          %309 = sbr.rel (%p307) target = $region40
        $region39: #{tpu_custom_call.1} parent=11 // pred_region
          _
        $region40: #{tpu_custom_call.1} parent=11 // pred_fallthru
          _
      $region12: #{tpu_custom_call.1} parent=5 // pred_fallthru
        _
      %p310 = scmp.lt.s32.totalorder %s23, 4
      // Predicated region
      $region41: #{tpu_custom_call.1} parent=5 // pred_check
        %p311 = pneg %p310
      $region42: #{tpu_custom_call.1} parent=5 // pred_check_branch
        %313 = sbr.rel (%p311) target = $region44
      $region43: #{tpu_custom_call.1} parent=5 // pred_region
        // Predicated region
        $region45: #{tpu_custom_call.1} parent=43 // pred_check
          %p314 = pneg %p57
        $region46: #{tpu_custom_call.1} parent=43 // pred_check_branch
          %316 = sbr.rel (%p314) target = $region48
        $region47: #{tpu_custom_call.1} parent=43 // pred_region
          %s317 = sand.u32 %s47, 1
          %s318 = scalar_lea.sflag [#allocation5], %s317
          %s319 = sand.u32 %s47, 1
          %s320 = smul.addr %s319, 1024
          %s321 = scalar_lea.vmem [#allocation4], %s320
          %s322 = smul.u32 256, %s31
          %s324 = ssub.s32 16384, 16384
          %325 = vsyncadd %s318, %s324
          %s326 = smul.addr %s30, 512
          %s327 = sadd.s32 %s322, %s326
          %s328 = smul.addr %s327, 64
          %s329 = scalar_lea.hbm %s0, %s328
          %s330 = sshll.u32 %s321, 4
          %s331 = int_to_ptr.vmem [resolvable:$true] %s330
          %336 = dma.hbm_to_vmem [thread:$0]  %s329, 16384, %s331, %s318, 64, 64, 4
        $region48: #{tpu_custom_call.1} parent=43 // pred_fallthru
          _
      $region44: #{tpu_custom_call.1} parent=5 // pred_fallthru
        _
      %p337 = scmp.le.s32.totalorder 1, %s23
      %p338 = scmp.lt.s32.totalorder %s23, 5
      %p339 = pnand %p337, %p338
      %p340 = pneg %p339
      // Predicated region
      $region49: #{tpu_custom_call.1} parent=5 // pred_check
        _
      $region50: #{tpu_custom_call.1} parent=5 // pred_check_branch
        %342 = sbr.rel (%p339) target = $region52
      $region51: #{tpu_custom_call.1} parent=5 // pred_region
        %s343 = ssub.s32 %s23, 1
        %s344 = sand.u32 %s50, 1
        %s345 = scalar_lea.sflag [#allocation5], %s344
        %s346 = sand.u32 %s50, 1
        %s347 = smul.addr %s346, 1024
        %s348 = scalar_lea.vmem [#allocation4], %s347
        // Predicated region
        $region53: #{tpu_custom_call.1} parent=51 // pred_check
          %p349 = pneg %p63
        $region54: #{tpu_custom_call.1} parent=51 // pred_check_branch
          %351 = sbr.rel (%p349) target = $region56
        $region55: #{tpu_custom_call.1} parent=51 // pred_region
          %352 = dma.done %s345, 16384
        $region56: #{tpu_custom_call.1} parent=51 // pred_fallthru
          _
        // Predicated region
        $region57: #{tpu_custom_call.1} parent=51 // pred_check
          %p353 = pneg %p84
        $region58: #{tpu_custom_call.1} parent=51 // pred_check_branch
          %355 = sbr.rel (%p353) target = $region60
        $region59: #{tpu_custom_call.1} parent=51 // pred_region
          %356 = dma.done [#allocation8], 2048
        $region60: #{tpu_custom_call.1} parent=51 // pred_fallthru
          _
        // Predicated region
        $region61: #{tpu_custom_call.1} parent=51 // pred_check
          %p357 = pneg %p105
        $region62: #{tpu_custom_call.1} parent=51 // pred_check_branch
          %359 = sbr.rel (%p357) target = $region64
        $region63: #{tpu_custom_call.1} parent=51 // pred_region
          %360 = dma.done [#allocation8], 2048
        $region64: #{tpu_custom_call.1} parent=51 // pred_fallthru
          _
        // Predicated region
        $region65: #{tpu_custom_call.1} parent=51 // pred_check
          %p361 = pneg %p126
        $region66: #{tpu_custom_call.1} parent=51 // pred_check_branch
          %363 = sbr.rel (%p361) target = $region68
        $region67: #{tpu_custom_call.1} parent=51 // pred_region
          %364 = dma.done [#allocation11], 4096
        $region68: #{tpu_custom_call.1} parent=51 // pred_fallthru
          _
        // Predicated region
        $region69: #{tpu_custom_call.1} parent=51 // pred_check
          %p365 = pneg %p168
        $region70: #{tpu_custom_call.1} parent=51 // pred_check_branch
          %367 = sbr.rel (%p365) target = $region72
        $region71: #{tpu_custom_call.1} parent=51 // pred_region
          %368 = dma.done [#allocation11], 256
        $region72: #{tpu_custom_call.1} parent=51 // pred_fallthru
          _
        %s369 = sand.u32 %s50, 1
        %s370 = scalar_lea.sflag [#allocation5], %s369
        %s371 = sand.u32 %s50, 1
        %s372 = smul.addr %s371, 1024
        %s373 = scalar_lea.vmem [#allocation4], %s372
        %p374 = pneg %p63
        %p375 = pneg %p60
        %p376 = pneg %p84
        %p377 = pneg %p81
        %p378 = pneg %p105
        %p379 = pneg %p102
        %p380 = pneg %p126
        %p381 = pneg %p123
        %p382 = pneg %p147
        %p383 = pneg %p144
        %p384 = pneg %p168
        %p385 = pneg %p165
        %p386 = pneg %p189
        %p387 = pneg %p186
        %p388 = pneg %p210
        %p389 = pneg %p207
        %p390 = pneg %p236
        %p391 = pneg %p233
        %s392 = sand.u32 %s223, 1
        %s393 = scalar_lea.sflag [#allocation6], %s392
        %s394 = sand.u32 %s223, 1
        %s395 = smul.addr %s394, 8
        %s396 = scalar_lea.vmem [#allocation13], %s395
        %s397 = smul.u32 256, %s33
        %p399 = scmp.eq.s32.totalorder %s33, 0
        // Predicated region
        $region73: #{tpu_custom_call.1} parent=51 // pred_check
          %p400 = pneg %p399
        $region74: #{tpu_custom_call.1} parent=51 // pred_check_branch
          %402 = sbr.rel (%p400) target = $region76
        $region75: #{tpu_custom_call.1} parent=51 // pred_region
          %403 = vst [vmem:[#allocation2] sm:$0xff] 0.0
          %404 = vst [vmem:[#allocation2 + $0x8] sm:$0xff] 0.0
          %405 = vst [vmem:[#allocation2 + $0x10] sm:$0xff] 0.0
          %406 = vst [vmem:[#allocation2 + $0x18] sm:$0xff] 0.0
          %407 = vst [vmem:[#allocation2 + $0x20] sm:$0xff] 0.0
          %408 = vst [vmem:[#allocation2 + $0x28] sm:$0xff] 0.0
          %409 = vst [vmem:[#allocation2 + $0x30] sm:$0xff] 0.0
          %410 = vst [vmem:[#allocation2 + $0x38] sm:$0xff] 0.0
          %411 = vst [vmem:[#allocation2 + $0x40] sm:$0xff] 0.0
          %412 = vst [vmem:[#allocation2 + $0x48] sm:$0xff] 0.0
          %413 = vst [vmem:[#allocation2 + $0x50] sm:$0xff] 0.0
          %414 = vst [vmem:[#allocation2 + $0x58] sm:$0xff] 0.0
          %415 = vst [vmem:[#allocation2 + $0x60] sm:$0xff] 0.0
          %416 = vst [vmem:[#allocation2 + $0x68] sm:$0xff] 0.0
          %417 = vst [vmem:[#allocation2 + $0x70] sm:$0xff] 0.0
          %418 = vst [vmem:[#allocation2 + $0x78] sm:$0xff] 0.0
        $region76: #{tpu_custom_call.1} parent=51 // pred_fallthru
          _
        %v419 = vld [vmem:[%s348] sm:$0xf]
        %v420 = vld [vmem:[%s348 + $0x4] sm:$0xf]
        %v421 = vld [vmem:[%s348 + $0x8] sm:$0xf]
        %v422 = vld [vmem:[%s348 + $0xc] sm:$0xf]
        %v423 = vld [vmem:[%s348 + $0x10] sm:$0xf]
        %v424 = vld [vmem:[%s348 + $0x14] sm:$0xf]
        %v425 = vld [vmem:[%s348 + $0x18] sm:$0xf]
        %v426 = vld [vmem:[%s348 + $0x1c] sm:$0xf]
        %v427 = vld [vmem:[%s348 + $0x20] sm:$0xf]
        %v428 = vld [vmem:[%s348 + $0x24] sm:$0xf]
        %v429 = vld [vmem:[%s348 + $0x28] sm:$0xf]
        %v430 = vld [vmem:[%s348 + $0x2c] sm:$0xf]
        %v431 = vld [vmem:[%s348 + $0x30] sm:$0xf]
        %v432 = vld [vmem:[%s348 + $0x34] sm:$0xf]
        %v433 = vld [vmem:[%s348 + $0x38] sm:$0xf]
        %v434 = vld [vmem:[%s348 + $0x3c] sm:$0xf]
        %v435 = vld [vmem:[%s348 + $0x40] sm:$0xf]
        %v436 = vld [vmem:[%s348 + $0x44] sm:$0xf]
        %v437 = vld [vmem:[%s348 + $0x48] sm:$0xf]
        %v438 = vld [vmem:[%s348 + $0x4c] sm:$0xf]
        %v439 = vld [vmem:[%s348 + $0x50] sm:$0xf]
        %v440 = vld [vmem:[%s348 + $0x54] sm:$0xf]
        %v441 = vld [vmem:[%s348 + $0x58] sm:$0xf]
        %v442 = vld [vmem:[%s348 + $0x5c] sm:$0xf]
        %v443 = vld [vmem:[%s348 + $0x60] sm:$0xf]
        %v444 = vld [vmem:[%s348 + $0x64] sm:$0xf]
        %v445 = vld [vmem:[%s348 + $0x68] sm:$0xf]
        %v446 = vld [vmem:[%s348 + $0x6c] sm:$0xf]
        %v447 = vld [vmem:[%s348 + $0x70] sm:$0xf]
        %v448 = vld [vmem:[%s348 + $0x74] sm:$0xf]
        %v449 = vld [vmem:[%s348 + $0x78] sm:$0xf]
        %v450 = vld [vmem:[%s348 + $0x7c] sm:$0xf]
        %v451 = vld [vmem:[%s348 + $0x80] sm:$0xf]
        %v452 = vld [vmem:[%s348 + $0x84] sm:$0xf]
        %v453 = vld [vmem:[%s348 + $0x88] sm:$0xf]
        %v454 = vld [vmem:[%s348 + $0x8c] sm:$0xf]
        %v455 = vld [vmem:[%s348 + $0x90] sm:$0xf]
        %v456 = vld [vmem:[%s348 + $0x94] sm:$0xf]
        %v457 = vld [vmem:[%s348 + $0x98] sm:$0xf]
        %v458 = vld [vmem:[%s348 + $0x9c] sm:$0xf]
        %v459 = vld [vmem:[%s348 + $0xa0] sm:$0xf]
        %v460 = vld [vmem:[%s348 + $0xa4] sm:$0xf]
        %v461 = vld [vmem:[%s348 + $0xa8] sm:$0xf]
        %v462 = vld [vmem:[%s348 + $0xac] sm:$0xf]
        %v463 = vld [vmem:[%s348 + $0xb0] sm:$0xf]
        %v464 = vld [vmem:[%s348 + $0xb4] sm:$0xf]
        %v465 = vld [vmem:[%s348 + $0xb8] sm:$0xf]
        %v466 = vld [vmem:[%s348 + $0xbc] sm:$0xf]
        %v467 = vld [vmem:[%s348 + $0xc0] sm:$0xf]
        %v468 = vld [vmem:[%s348 + $0xc4] sm:$0xf]
        %v469 = vld [vmem:[%s348 + $0xc8] sm:$0xf]
        %v470 = vld [vmem:[%s348 + $0xcc] sm:$0xf]
        %v471 = vld [vmem:[%s348 + $0xd0] sm:$0xf]
        %v472 = vld [vmem:[%s348 + $0xd4] sm:$0xf]
        %v473 = vld [vmem:[%s348 + $0xd8] sm:$0xf]
        %v474 = vld [vmem:[%s348 + $0xdc] sm:$0xf]
        %v475 = vld [vmem:[%s348 + $0xe0] sm:$0xf]
        %v476 = vld [vmem:[%s348 + $0xe4] sm:$0xf]
        %v477 = vld [vmem:[%s348 + $0xe8] sm:$0xf]
        %v478 = vld [vmem:[%s348 + $0xec] sm:$0xf]
        %v479 = vld [vmem:[%s348 + $0xf0] sm:$0xf]
        %v480 = vld [vmem:[%s348 + $0xf4] sm:$0xf]
        %v481 = vld [vmem:[%s348 + $0xf8] sm:$0xf]
        %v482 = vld [vmem:[%s348 + $0xfc] sm:$0xf]
        %v483 = vld [vmem:[%s348 + $0x100] sm:$0xf]
        %v484 = vld [vmem:[%s348 + $0x104] sm:$0xf]
        %v485 = vld [vmem:[%s348 + $0x108] sm:$0xf]
        %v486 = vld [vmem:[%s348 + $0x10c] sm:$0xf]
        %v487 = vld [vmem:[%s348 + $0x110] sm:$0xf]
        %v488 = vld [vmem:[%s348 + $0x114] sm:$0xf]
        %v489 = vld [vmem:[%s348 + $0x118] sm:$0xf]
        %v490 = vld [vmem:[%s348 + $0x11c] sm:$0xf]
        %v491 = vld [vmem:[%s348 + $0x120] sm:$0xf]
        %v492 = vld [vmem:[%s348 + $0x124] sm:$0xf]
        %v493 = vld [vmem:[%s348 + $0x128] sm:$0xf]
        %v494 = vld [vmem:[%s348 + $0x12c] sm:$0xf]
        %v495 = vld [vmem:[%s348 + $0x130] sm:$0xf]
        %v496 = vld [vmem:[%s348 + $0x134] sm:$0xf]
        %v497 = vld [vmem:[%s348 + $0x138] sm:$0xf]
        %v498 = vld [vmem:[%s348 + $0x13c] sm:$0xf]
        %v499 = vld [vmem:[%s348 + $0x140] sm:$0xf]
        %v500 = vld [vmem:[%s348 + $0x144] sm:$0xf]
        %v501 = vld [vmem:[%s348 + $0x148] sm:$0xf]
        %v502 = vld [vmem:[%s348 + $0x14c] sm:$0xf]
        %v503 = vld [vmem:[%s348 + $0x150] sm:$0xf]
        %v504 = vld [vmem:[%s348 + $0x154] sm:$0xf]
        %v505 = vld [vmem:[%s348 + $0x158] sm:$0xf]
        %v506 = vld [vmem:[%s348 + $0x15c] sm:$0xf]
        %v507 = vld [vmem:[%s348 + $0x160] sm:$0xf]
        %v508 = vld [vmem:[%s348 + $0x164] sm:$0xf]
        %v509 = vld [vmem:[%s348 + $0x168] sm:$0xf]
        %v510 = vld [vmem:[%s348 + $0x16c] sm:$0xf]
        %v511 = vld [vmem:[%s348 + $0x170] sm:$0xf]
        %v512 = vld [vmem:[%s348 + $0x174] sm:$0xf]
        %v513 = vld [vmem:[%s348 + $0x178] sm:$0xf]
        %v514 = vld [vmem:[%s348 + $0x17c] sm:$0xf]
        %v515 = vld [vmem:[%s348 + $0x180] sm:$0xf]
        %v516 = vld [vmem:[%s348 + $0x184] sm:$0xf]
        %v517 = vld [vmem:[%s348 + $0x188] sm:$0xf]
        %v518 = vld [vmem:[%s348 + $0x18c] sm:$0xf]
        %v519 = vld [vmem:[%s348 + $0x190] sm:$0xf]
        %v520 = vld [vmem:[%s348 + $0x194] sm:$0xf]
        %v521 = vld [vmem:[%s348 + $0x198] sm:$0xf]
        %v522 = vld [vmem:[%s348 + $0x19c] sm:$0xf]
        %v523 = vld [vmem:[%s348 + $0x1a0] sm:$0xf]
        %v524 = vld [vmem:[%s348 + $0x1a4] sm:$0xf]
        %v525 = vld [vmem:[%s348 + $0x1a8] sm:$0xf]
        %v526 = vld [vmem:[%s348 + $0x1ac] sm:$0xf]
        %v527 = vld [vmem:[%s348 + $0x1b0] sm:$0xf]
        %v528 = vld [vmem:[%s348 + $0x1b4] sm:$0xf]
        %v529 = vld [vmem:[%s348 + $0x1b8] sm:$0xf]
        %v530 = vld [vmem:[%s348 + $0x1bc] sm:$0xf]
        %v531 = vld [vmem:[%s348 + $0x1c0] sm:$0xf]
        %v532 = vld [vmem:[%s348 + $0x1c4] sm:$0xf]
        %v533 = vld [vmem:[%s348 + $0x1c8] sm:$0xf]
        %v534 = vld [vmem:[%s348 + $0x1cc] sm:$0xf]
        %v535 = vld [vmem:[%s348 + $0x1d0] sm:$0xf]
        %v536 = vld [vmem:[%s348 + $0x1d4] sm:$0xf]
        %v537 = vld [vmem:[%s348 + $0x1d8] sm:$0xf]
        %v538 = vld [vmem:[%s348 + $0x1dc] sm:$0xf]
        %v539 = vld [vmem:[%s348 + $0x1e0] sm:$0xf]
        %v540 = vld [vmem:[%s348 + $0x1e4] sm:$0xf]
        %v541 = vld [vmem:[%s348 + $0x1e8] sm:$0xf]
        %v542 = vld [vmem:[%s348 + $0x1ec] sm:$0xf]
        %v543 = vld [vmem:[%s348 + $0x1f0] sm:$0xf]
        %v544 = vld [vmem:[%s348 + $0x1f4] sm:$0xf]
        %v545 = vld [vmem:[%s348 + $0x1f8] sm:$0xf]
        %v546 = vld [vmem:[%s348 + $0x1fc] sm:$0xf]
        %v547 = vld [vmem:[%s348 + $0x200] sm:$0xf]
        %v548 = vld [vmem:[%s348 + $0x204] sm:$0xf]
        %v549 = vld [vmem:[%s348 + $0x208] sm:$0xf]
        %v550 = vld [vmem:[%s348 + $0x20c] sm:$0xf]
        %v551 = vld [vmem:[%s348 + $0x210] sm:$0xf]
        %v552 = vld [vmem:[%s348 + $0x214] sm:$0xf]
        %v553 = vld [vmem:[%s348 + $0x218] sm:$0xf]
        %v554 = vld [vmem:[%s348 + $0x21c] sm:$0xf]
        %v555 = vld [vmem:[%s348 + $0x220] sm:$0xf]
        %v556 = vld [vmem:[%s348 + $0x224] sm:$0xf]
        %v557 = vld [vmem:[%s348 + $0x228] sm:$0xf]
        %v558 = vld [vmem:[%s348 + $0x22c] sm:$0xf]
        %v559 = vld [vmem:[%s348 + $0x230] sm:$0xf]
        %v560 = vld [vmem:[%s348 + $0x234] sm:$0xf]
        %v561 = vld [vmem:[%s348 + $0x238] sm:$0xf]
        %v562 = vld [vmem:[%s348 + $0x23c] sm:$0xf]
        %v563 = vld [vmem:[%s348 + $0x240] sm:$0xf]
        %v564 = vld [vmem:[%s348 + $0x244] sm:$0xf]
        %v565 = vld [vmem:[%s348 + $0x248] sm:$0xf]
        %v566 = vld [vmem:[%s348 + $0x24c] sm:$0xf]
        %v567 = vld [vmem:[%s348 + $0x250] sm:$0xf]
        %v568 = vld [vmem:[%s348 + $0x254] sm:$0xf]
        %v569 = vld [vmem:[%s348 + $0x258] sm:$0xf]
        %v570 = vld [vmem:[%s348 + $0x25c] sm:$0xf]
        %v571 = vld [vmem:[%s348 + $0x260] sm:$0xf]
        %v572 = vld [vmem:[%s348 + $0x264] sm:$0xf]
        %v573 = vld [vmem:[%s348 + $0x268] sm:$0xf]
        %v574 = vld [vmem:[%s348 + $0x26c] sm:$0xf]
        %v575 = vld [vmem:[%s348 + $0x270] sm:$0xf]
        %v576 = vld [vmem:[%s348 + $0x274] sm:$0xf]
        %v577 = vld [vmem:[%s348 + $0x278] sm:$0xf]
        %v578 = vld [vmem:[%s348 + $0x27c] sm:$0xf]
        %v579 = vld [vmem:[%s348 + $0x280] sm:$0xf]
        %v580 = vld [vmem:[%s348 + $0x284] sm:$0xf]
        %v581 = vld [vmem:[%s348 + $0x288] sm:$0xf]
        %v582 = vld [vmem:[%s348 + $0x28c] sm:$0xf]
        %v583 = vld [vmem:[%s348 + $0x290] sm:$0xf]
        %v584 = vld [vmem:[%s348 + $0x294] sm:$0xf]
        %v585 = vld [vmem:[%s348 + $0x298] sm:$0xf]
        %v586 = vld [vmem:[%s348 + $0x29c] sm:$0xf]
        %v587 = vld [vmem:[%s348 + $0x2a0] sm:$0xf]
        %v588 = vld [vmem:[%s348 + $0x2a4] sm:$0xf]
        %v589 = vld [vmem:[%s348 + $0x2a8] sm:$0xf]
        %v590 = vld [vmem:[%s348 + $0x2ac] sm:$0xf]
        %v591 = vld [vmem:[%s348 + $0x2b0] sm:$0xf]
        %v592 = vld [vmem:[%s348 + $0x2b4] sm:$0xf]
        %v593 = vld [vmem:[%s348 + $0x2b8] sm:$0xf]
        %v594 = vld [vmem:[%s348 + $0x2bc] sm:$0xf]
        %v595 = vld [vmem:[%s348 + $0x2c0] sm:$0xf]
        %v596 = vld [vmem:[%s348 + $0x2c4] sm:$0xf]
        %v597 = vld [vmem:[%s348 + $0x2c8] sm:$0xf]
        %v598 = vld [vmem:[%s348 + $0x2cc] sm:$0xf]
        %v599 = vld [vmem:[%s348 + $0x2d0] sm:$0xf]
        %v600 = vld [vmem:[%s348 + $0x2d4] sm:$0xf]
        %v601 = vld [vmem:[%s348 + $0x2d8] sm:$0xf]
        %v602 = vld [vmem:[%s348 + $0x2dc] sm:$0xf]
        %v603 = vld [vmem:[%s348 + $0x2e0] sm:$0xf]
        %v604 = vld [vmem:[%s348 + $0x2e4] sm:$0xf]
        %v605 = vld [vmem:[%s348 + $0x2e8] sm:$0xf]
        %v606 = vld [vmem:[%s348 + $0x2ec] sm:$0xf]
        %v607 = vld [vmem:[%s348 + $0x2f0] sm:$0xf]
        %v608 = vld [vmem:[%s348 + $0x2f4] sm:$0xf]
        %v609 = vld [vmem:[%s348 + $0x2f8] sm:$0xf]
        %v610 = vld [vmem:[%s348 + $0x2fc] sm:$0xf]
        %v611 = vld [vmem:[%s348 + $0x300] sm:$0xf]
        %v612 = vld [vmem:[%s348 + $0x304] sm:$0xf]
        %v613 = vld [vmem:[%s348 + $0x308] sm:$0xf]
        %v614 = vld [vmem:[%s348 + $0x30c] sm:$0xf]
        %v615 = vld [vmem:[%s348 + $0x310] sm:$0xf]
        %v616 = vld [vmem:[%s348 + $0x314] sm:$0xf]
        %v617 = vld [vmem:[%s348 + $0x318] sm:$0xf]
        %v618 = vld [vmem:[%s348 + $0x31c] sm:$0xf]
        %v619 = vld [vmem:[%s348 + $0x320] sm:$0xf]
        %v620 = vld [vmem:[%s348 + $0x324] sm:$0xf]
        %v621 = vld [vmem:[%s348 + $0x328] sm:$0xf]
        %v622 = vld [vmem:[%s348 + $0x32c] sm:$0xf]
        %v623 = vld [vmem:[%s348 + $0x330] sm:$0xf]
        %v624 = vld [vmem:[%s348 + $0x334] sm:$0xf]
        %v625 = vld [vmem:[%s348 + $0x338] sm:$0xf]
        %v626 = vld [vmem:[%s348 + $0x33c] sm:$0xf]
        %v627 = vld [vmem:[%s348 + $0x340] sm:$0xf]
        %v628 = vld [vmem:[%s348 + $0x344] sm:$0xf]
        %v629 = vld [vmem:[%s348 + $0x348] sm:$0xf]
        %v630 = vld [vmem:[%s348 + $0x34c] sm:$0xf]
        %v631 = vld [vmem:[%s348 + $0x350] sm:$0xf]
        %v632 = vld [vmem:[%s348 + $0x354] sm:$0xf]
        %v633 = vld [vmem:[%s348 + $0x358] sm:$0xf]
        %v634 = vld [vmem:[%s348 + $0x35c] sm:$0xf]
        %v635 = vld [vmem:[%s348 + $0x360] sm:$0xf]
        %v636 = vld [vmem:[%s348 + $0x364] sm:$0xf]
        %v637 = vld [vmem:[%s348 + $0x368] sm:$0xf]
        %v638 = vld [vmem:[%s348 + $0x36c] sm:$0xf]
        %v639 = vld [vmem:[%s348 + $0x370] sm:$0xf]
        %v640 = vld [vmem:[%s348 + $0x374] sm:$0xf]
        %v641 = vld [vmem:[%s348 + $0x378] sm:$0xf]
        %v642 = vld [vmem:[%s348 + $0x37c] sm:$0xf]
        %v643 = vld [vmem:[%s348 + $0x380] sm:$0xf]
        %v644 = vld [vmem:[%s348 + $0x384] sm:$0xf]
        %v645 = vld [vmem:[%s348 + $0x388] sm:$0xf]
        %v646 = vld [vmem:[%s348 + $0x38c] sm:$0xf]
        %v647 = vld [vmem:[%s348 + $0x390] sm:$0xf]
        %v648 = vld [vmem:[%s348 + $0x394] sm:$0xf]
        %v649 = vld [vmem:[%s348 + $0x398] sm:$0xf]
        %v650 = vld [vmem:[%s348 + $0x39c] sm:$0xf]
        %v651 = vld [vmem:[%s348 + $0x3a0] sm:$0xf]
        %v652 = vld [vmem:[%s348 + $0x3a4] sm:$0xf]
        %v653 = vld [vmem:[%s348 + $0x3a8] sm:$0xf]
        %v654 = vld [vmem:[%s348 + $0x3ac] sm:$0xf]
        %v655 = vld [vmem:[%s348 + $0x3b0] sm:$0xf]
        %v656 = vld [vmem:[%s348 + $0x3b4] sm:$0xf]
        %v657 = vld [vmem:[%s348 + $0x3b8] sm:$0xf]
        %v658 = vld [vmem:[%s348 + $0x3bc] sm:$0xf]
        %v659 = vld [vmem:[%s348 + $0x3c0] sm:$0xf]
        %v660 = vld [vmem:[%s348 + $0x3c4] sm:$0xf]
        %v661 = vld [vmem:[%s348 + $0x3c8] sm:$0xf]
        %v662 = vld [vmem:[%s348 + $0x3cc] sm:$0xf]
        %v663 = vld [vmem:[%s348 + $0x3d0] sm:$0xf]
        %v664 = vld [vmem:[%s348 + $0x3d4] sm:$0xf]
        %v665 = vld [vmem:[%s348 + $0x3d8] sm:$0xf]
        %v666 = vld [vmem:[%s348 + $0x3dc] sm:$0xf]
        %v667 = vld [vmem:[%s348 + $0x3e0] sm:$0xf]
        %v668 = vld [vmem:[%s348 + $0x3e4] sm:$0xf]
        %v669 = vld [vmem:[%s348 + $0x3e8] sm:$0xf]
        %v670 = vld [vmem:[%s348 + $0x3ec] sm:$0xf]
        %v671 = vld [vmem:[%s348 + $0x3f0] sm:$0xf]
        %v672 = vld [vmem:[%s348 + $0x3f4] sm:$0xf]
        %v673 = vld [vmem:[%s348 + $0x3f8] sm:$0xf]
        %v674 = vld [vmem:[%s348 + $0x3fc] sm:$0xf]
        %v675 = vld [vmem:[#allocation2] sm:$0xff]
        %v676 = vld [vmem:[#allocation2 + $0x8] sm:$0xff]
        %v677 = vld [vmem:[#allocation2 + $0x10] sm:$0xff]
        %v678 = vld [vmem:[#allocation2 + $0x18] sm:$0xff]
        %v679 = vld [vmem:[#allocation2 + $0x20] sm:$0xff]
        %v680 = vld [vmem:[#allocation2 + $0x28] sm:$0xff]
        %v681 = vld [vmem:[#allocation2 + $0x30] sm:$0xff]
        %v682 = vld [vmem:[#allocation2 + $0x38] sm:$0xff]
        %v683 = vld [vmem:[#allocation2 + $0x40] sm:$0xff]
        %v684 = vld [vmem:[#allocation2 + $0x48] sm:$0xff]
        %v685 = vld [vmem:[#allocation2 + $0x50] sm:$0xff]
        %v686 = vld [vmem:[#allocation2 + $0x58] sm:$0xff]
        %v687 = vld [vmem:[#allocation2 + $0x60] sm:$0xff]
        %v688 = vld [vmem:[#allocation2 + $0x68] sm:$0xff]
        %v689 = vld [vmem:[#allocation2 + $0x70] sm:$0xff]
        %v690 = vld [vmem:[#allocation2 + $0x78] sm:$0xff]
        %v947 = vunpack.c.l.b16 %v419
        %v948 = vunpack.c.l.b16 %v420
        %v949 = vunpack.c.l.b16 %v421
        %v950 = vunpack.c.l.b16 %v422
        %v951 = vunpack.c.l.b16 %v423
        %v952 = vunpack.c.l.b16 %v424
        %v953 = vunpack.c.l.b16 %v425
        %v954 = vunpack.c.l.b16 %v426
        %v955 = vunpack.c.l.b16 %v427
        %v956 = vunpack.c.l.b16 %v428
        %v957 = vunpack.c.l.b16 %v429
        %v958 = vunpack.c.l.b16 %v430
        %v959 = vunpack.c.l.b16 %v431
        %v960 = vunpack.c.l.b16 %v432
        %v961 = vunpack.c.l.b16 %v433
        %v962 = vunpack.c.l.b16 %v434
        %v963 = vunpack.c.l.b16 %v435
        %v964 = vunpack.c.l.b16 %v436
        %v965 = vunpack.c.l.b16 %v437
        %v966 = vunpack.c.l.b16 %v438
        %v967 = vunpack.c.l.b16 %v439
        %v968 = vunpack.c.l.b16 %v440
        %v969 = vunpack.c.l.b16 %v441
        %v970 = vunpack.c.l.b16 %v442
        %v971 = vunpack.c.l.b16 %v443
        %v972 = vunpack.c.l.b16 %v444
        %v973 = vunpack.c.l.b16 %v445
        %v974 = vunpack.c.l.b16 %v446
        %v975 = vunpack.c.l.b16 %v447
        %v976 = vunpack.c.l.b16 %v448
        %v977 = vunpack.c.l.b16 %v449
        %v978 = vunpack.c.l.b16 %v450
        %v979 = vunpack.c.l.b16 %v451
        %v980 = vunpack.c.l.b16 %v452
        %v981 = vunpack.c.l.b16 %v453
        %v982 = vunpack.c.l.b16 %v454
        %v983 = vunpack.c.l.b16 %v455
        %v984 = vunpack.c.l.b16 %v456
        %v985 = vunpack.c.l.b16 %v457
        %v986 = vunpack.c.l.b16 %v458
        %v987 = vunpack.c.l.b16 %v459
        %v988 = vunpack.c.l.b16 %v460
        %v989 = vunpack.c.l.b16 %v461
        %v990 = vunpack.c.l.b16 %v462
        %v991 = vunpack.c.l.b16 %v463
        %v992 = vunpack.c.l.b16 %v464
        %v993 = vunpack.c.l.b16 %v465
        %v994 = vunpack.c.l.b16 %v466
        %v995 = vunpack.c.l.b16 %v467
        %v996 = vunpack.c.l.b16 %v468
        %v997 = vunpack.c.l.b16 %v469
        %v998 = vunpack.c.l.b16 %v470
        %v999 = vunpack.c.l.b16 %v471
        %v1000 = vunpack.c.l.b16 %v472
        %v1001 = vunpack.c.l.b16 %v473
        %v1002 = vunpack.c.l.b16 %v474
        %v1003 = vunpack.c.l.b16 %v475
        %v1004 = vunpack.c.l.b16 %v476
        %v1005 = vunpack.c.l.b16 %v477
        %v1006 = vunpack.c.l.b16 %v478
        %v1007 = vunpack.c.l.b16 %v479
        %v1008 = vunpack.c.l.b16 %v480
        %v1009 = vunpack.c.l.b16 %v481
        %v1010 = vunpack.c.l.b16 %v482
        %v1011 = vunpack.c.l.b16 %v483
        %v1012 = vunpack.c.l.b16 %v484
        %v1013 = vunpack.c.l.b16 %v485
        %v1014 = vunpack.c.l.b16 %v486
        %v1015 = vunpack.c.l.b16 %v487
        %v1016 = vunpack.c.l.b16 %v488
        %v1017 = vunpack.c.l.b16 %v489
        %v1018 = vunpack.c.l.b16 %v490
        %v1019 = vunpack.c.l.b16 %v491
        %v1020 = vunpack.c.l.b16 %v492
        %v1021 = vunpack.c.l.b16 %v493
        %v1022 = vunpack.c.l.b16 %v494
        %v1023 = vunpack.c.l.b16 %v495
        %v1024 = vunpack.c.l.b16 %v496
        %v1025 = vunpack.c.l.b16 %v497
        %v1026 = vunpack.c.l.b16 %v498
        %v1027 = vunpack.c.l.b16 %v499
        %v1028 = vunpack.c.l.b16 %v500
        %v1029 = vunpack.c.l.b16 %v501
        %v1030 = vunpack.c.l.b16 %v502
        %v1031 = vunpack.c.l.b16 %v503
        %v1032 = vunpack.c.l.b16 %v504
        %v1033 = vunpack.c.l.b16 %v505
        %v1034 = vunpack.c.l.b16 %v506
        %v1035 = vunpack.c.l.b16 %v507
        %v1036 = vunpack.c.l.b16 %v508
        %v1037 = vunpack.c.l.b16 %v509
        %v1038 = vunpack.c.l.b16 %v510
        %v1039 = vunpack.c.l.b16 %v511
        %v1040 = vunpack.c.l.b16 %v512
        %v1041 = vunpack.c.l.b16 %v513
        %v1042 = vunpack.c.l.b16 %v514
        %v1043 = vunpack.c.l.b16 %v515
        %v1044 = vunpack.c.l.b16 %v516
        %v1045 = vunpack.c.l.b16 %v517
        %v1046 = vunpack.c.l.b16 %v518
        %v1047 = vunpack.c.l.b16 %v519
        %v1048 = vunpack.c.l.b16 %v520
        %v1049 = vunpack.c.l.b16 %v521
        %v1050 = vunpack.c.l.b16 %v522
        %v1051 = vunpack.c.l.b16 %v523
        %v1052 = vunpack.c.l.b16 %v524
        %v1053 = vunpack.c.l.b16 %v525
        %v1054 = vunpack.c.l.b16 %v526
        %v1055 = vunpack.c.l.b16 %v527
        %v1056 = vunpack.c.l.b16 %v528
        %v1057 = vunpack.c.l.b16 %v529
        %v1058 = vunpack.c.l.b16 %v530
        %v1059 = vunpack.c.l.b16 %v531
        %v1060 = vunpack.c.l.b16 %v532
        %v1061 = vunpack.c.l.b16 %v533
        %v1062 = vunpack.c.l.b16 %v534
        %v1063 = vunpack.c.l.b16 %v535
        %v1064 = vunpack.c.l.b16 %v536
        %v1065 = vunpack.c.l.b16 %v537
        %v1066 = vunpack.c.l.b16 %v538
        %v1067 = vunpack.c.l.b16 %v539
        %v1068 = vunpack.c.l.b16 %v540
        %v1069 = vunpack.c.l.b16 %v541
        %v1070 = vunpack.c.l.b16 %v542
        %v1071 = vunpack.c.l.b16 %v543
        %v1072 = vunpack.c.l.b16 %v544
        %v1073 = vunpack.c.l.b16 %v545
        %v1074 = vunpack.c.l.b16 %v546
        %v1075 = vunpack.c.l.b16 %v547
        %v1076 = vunpack.c.l.b16 %v548
        %v1077 = vunpack.c.l.b16 %v549
        %v1078 = vunpack.c.l.b16 %v550
        %v1079 = vunpack.c.l.b16 %v551
        %v1080 = vunpack.c.l.b16 %v552
        %v1081 = vunpack.c.l.b16 %v553
        %v1082 = vunpack.c.l.b16 %v554
        %v1083 = vunpack.c.l.b16 %v555
        %v1084 = vunpack.c.l.b16 %v556
        %v1085 = vunpack.c.l.b16 %v557
        %v1086 = vunpack.c.l.b16 %v558
        %v1087 = vunpack.c.l.b16 %v559
        %v1088 = vunpack.c.l.b16 %v560
        %v1089 = vunpack.c.l.b16 %v561
        %v1090 = vunpack.c.l.b16 %v562
        %v1091 = vunpack.c.l.b16 %v563
        %v1092 = vunpack.c.l.b16 %v564
        %v1093 = vunpack.c.l.b16 %v565
        %v1094 = vunpack.c.l.b16 %v566
        %v1095 = vunpack.c.l.b16 %v567
        %v1096 = vunpack.c.l.b16 %v568
        %v1097 = vunpack.c.l.b16 %v569
        %v1098 = vunpack.c.l.b16 %v570
        %v1099 = vunpack.c.l.b16 %v571
        %v1100 = vunpack.c.l.b16 %v572
        %v1101 = vunpack.c.l.b16 %v573
        %v1102 = vunpack.c.l.b16 %v574
        %v1103 = vunpack.c.l.b16 %v575
        %v1104 = vunpack.c.l.b16 %v576
        %v1105 = vunpack.c.l.b16 %v577
        %v1106 = vunpack.c.l.b16 %v578
        %v1107 = vunpack.c.l.b16 %v579
        %v1108 = vunpack.c.l.b16 %v580
        %v1109 = vunpack.c.l.b16 %v581
        %v1110 = vunpack.c.l.b16 %v582
        %v1111 = vunpack.c.l.b16 %v583
        %v1112 = vunpack.c.l.b16 %v584
        %v1113 = vunpack.c.l.b16 %v585
        %v1114 = vunpack.c.l.b16 %v586
        %v1115 = vunpack.c.l.b16 %v587
        %v1116 = vunpack.c.l.b16 %v588
        %v1117 = vunpack.c.l.b16 %v589
        %v1118 = vunpack.c.l.b16 %v590
        %v1119 = vunpack.c.l.b16 %v591
        %v1120 = vunpack.c.l.b16 %v592
        %v1121 = vunpack.c.l.b16 %v593
        %v1122 = vunpack.c.l.b16 %v594
        %v1123 = vunpack.c.l.b16 %v595
        %v1124 = vunpack.c.l.b16 %v596
        %v1125 = vunpack.c.l.b16 %v597
        %v1126 = vunpack.c.l.b16 %v598
        %v1127 = vunpack.c.l.b16 %v599
        %v1128 = vunpack.c.l.b16 %v600
        %v1129 = vunpack.c.l.b16 %v601
        %v1130 = vunpack.c.l.b16 %v602
        %v1131 = vunpack.c.l.b16 %v603
        %v1132 = vunpack.c.l.b16 %v604
        %v1133 = vunpack.c.l.b16 %v605
        %v1134 = vunpack.c.l.b16 %v606
        %v1135 = vunpack.c.l.b16 %v607
        %v1136 = vunpack.c.l.b16 %v608
        %v1137 = vunpack.c.l.b16 %v609
        %v1138 = vunpack.c.l.b16 %v610
        %v1139 = vunpack.c.l.b16 %v611
        %v1140 = vunpack.c.l.b16 %v612
        %v1141 = vunpack.c.l.b16 %v613
        %v1142 = vunpack.c.l.b16 %v614
        %v1143 = vunpack.c.l.b16 %v615
        %v1144 = vunpack.c.l.b16 %v616
        %v1145 = vunpack.c.l.b16 %v617
        %v1146 = vunpack.c.l.b16 %v618
        %v1147 = vunpack.c.l.b16 %v619
        %v1148 = vunpack.c.l.b16 %v620
        %v1149 = vunpack.c.l.b16 %v621
        %v1150 = vunpack.c.l.b16 %v622
        %v1151 = vunpack.c.l.b16 %v623
        %v1152 = vunpack.c.l.b16 %v624
        %v1153 = vunpack.c.l.b16 %v625
        %v1154 = vunpack.c.l.b16 %v626
        %v1155 = vunpack.c.l.b16 %v627
        %v1156 = vunpack.c.l.b16 %v628
        %v1157 = vunpack.c.l.b16 %v629
        %v1158 = vunpack.c.l.b16 %v630
        %v1159 = vunpack.c.l.b16 %v631
        %v1160 = vunpack.c.l.b16 %v632
        %v1161 = vunpack.c.l.b16 %v633
        %v1162 = vunpack.c.l.b16 %v634
        %v1163 = vunpack.c.l.b16 %v635
        %v1164 = vunpack.c.l.b16 %v636
        %v1165 = vunpack.c.l.b16 %v637
        %v1166 = vunpack.c.l.b16 %v638
        %v1167 = vunpack.c.l.b16 %v639
        %v1168 = vunpack.c.l.b16 %v640
        %v1169 = vunpack.c.l.b16 %v641
        %v1170 = vunpack.c.l.b16 %v642
        %v1171 = vunpack.c.l.b16 %v643
        %v1172 = vunpack.c.l.b16 %v644
        %v1173 = vunpack.c.l.b16 %v645
        %v1174 = vunpack.c.l.b16 %v646
        %v1175 = vunpack.c.l.b16 %v647
        %v1176 = vunpack.c.l.b16 %v648
        %v1177 = vunpack.c.l.b16 %v649
        %v1178 = vunpack.c.l.b16 %v650
        %v1179 = vunpack.c.l.b16 %v651
        %v1180 = vunpack.c.l.b16 %v652
        %v1181 = vunpack.c.l.b16 %v653
        %v1182 = vunpack.c.l.b16 %v654
        %v1183 = vunpack.c.l.b16 %v655
        %v1184 = vunpack.c.l.b16 %v656
        %v1185 = vunpack.c.l.b16 %v657
        %v1186 = vunpack.c.l.b16 %v658
        %v1187 = vunpack.c.l.b16 %v659
        %v1188 = vunpack.c.l.b16 %v660
        %v1189 = vunpack.c.l.b16 %v661
        %v1190 = vunpack.c.l.b16 %v662
        %v1191 = vunpack.c.l.b16 %v663
        %v1192 = vunpack.c.l.b16 %v664
        %v1193 = vunpack.c.l.b16 %v665
        %v1194 = vunpack.c.l.b16 %v666
        %v1195 = vunpack.c.l.b16 %v667
        %v1196 = vunpack.c.l.b16 %v668
        %v1197 = vunpack.c.l.b16 %v669
        %v1198 = vunpack.c.l.b16 %v670
        %v1199 = vunpack.c.l.b16 %v671
        %v1200 = vunpack.c.l.b16 %v672
        %v1201 = vunpack.c.l.b16 %v673
        %v1202 = vunpack.c.l.b16 %v674
        %v1203 = vpack.c.b16 %v948, %v947
        %v1204 = vpack.c.b16 %v950, %v949
        %v1205 = vpack.c.b16 %v952, %v951
        %v1206 = vpack.c.b16 %v954, %v953
        %v1207 = vpack.c.b16 %v956, %v955
        %v1208 = vpack.c.b16 %v958, %v957
        %v1209 = vpack.c.b16 %v960, %v959
        %v1210 = vpack.c.b16 %v962, %v961
        %v1211 = vpack.c.b16 %v964, %v963
        %v1212 = vpack.c.b16 %v966, %v965
        %v1213 = vpack.c.b16 %v968, %v967
        %v1214 = vpack.c.b16 %v970, %v969
        %v1215 = vpack.c.b16 %v972, %v971
        %v1216 = vpack.c.b16 %v974, %v973
        %v1217 = vpack.c.b16 %v976, %v975
        %v1218 = vpack.c.b16 %v978, %v977
        %v1219 = vpack.c.b16 %v980, %v979
        %v1220 = vpack.c.b16 %v982, %v981
        %v1221 = vpack.c.b16 %v984, %v983
        %v1222 = vpack.c.b16 %v986, %v985
        %v1223 = vpack.c.b16 %v988, %v987
        %v1224 = vpack.c.b16 %v990, %v989
        %v1225 = vpack.c.b16 %v992, %v991
        %v1226 = vpack.c.b16 %v994, %v993
        %v1227 = vpack.c.b16 %v996, %v995
        %v1228 = vpack.c.b16 %v998, %v997
        %v1229 = vpack.c.b16 %v1000, %v999
        %v1230 = vpack.c.b16 %v1002, %v1001
        %v1231 = vpack.c.b16 %v1004, %v1003
        %v1232 = vpack.c.b16 %v1006, %v1005
        %v1233 = vpack.c.b16 %v1008, %v1007
        %v1234 = vpack.c.b16 %v1010, %v1009
        %v1235 = vpack.c.b16 %v1012, %v1011
        %v1236 = vpack.c.b16 %v1014, %v1013
        %v1237 = vpack.c.b16 %v1016, %v1015
        %v1238 = vpack.c.b16 %v1018, %v1017
        %v1239 = vpack.c.b16 %v1020, %v1019
        %v1240 = vpack.c.b16 %v1022, %v1021
        %v1241 = vpack.c.b16 %v1024, %v1023
        %v1242 = vpack.c.b16 %v1026, %v1025
        %v1243 = vpack.c.b16 %v1028, %v1027
        %v1244 = vpack.c.b16 %v1030, %v1029
        %v1245 = vpack.c.b16 %v1032, %v1031
        %v1246 = vpack.c.b16 %v1034, %v1033
        %v1247 = vpack.c.b16 %v1036, %v1035
        %v1248 = vpack.c.b16 %v1038, %v1037
        %v1249 = vpack.c.b16 %v1040, %v1039
        %v1250 = vpack.c.b16 %v1042, %v1041
        %v1251 = vpack.c.b16 %v1044, %v1043
        %v1252 = vpack.c.b16 %v1046, %v1045
        %v1253 = vpack.c.b16 %v1048, %v1047
        %v1254 = vpack.c.b16 %v1050, %v1049
        %v1255 = vpack.c.b16 %v1052, %v1051
        %v1256 = vpack.c.b16 %v1054, %v1053
        %v1257 = vpack.c.b16 %v1056, %v1055
        %v1258 = vpack.c.b16 %v1058, %v1057
        %v1259 = vpack.c.b16 %v1060, %v1059
        %v1260 = vpack.c.b16 %v1062, %v1061
        %v1261 = vpack.c.b16 %v1064, %v1063
        %v1262 = vpack.c.b16 %v1066, %v1065
        %v1263 = vpack.c.b16 %v1068, %v1067
        %v1264 = vpack.c.b16 %v1070, %v1069
        %v1265 = vpack.c.b16 %v1072, %v1071
        %v1266 = vpack.c.b16 %v1074, %v1073
        %v1267 = vpack.c.b16 %v1076, %v1075
        %v1268 = vpack.c.b16 %v1078, %v1077
        %v1269 = vpack.c.b16 %v1080, %v1079
        %v1270 = vpack.c.b16 %v1082, %v1081
        %v1271 = vpack.c.b16 %v1084, %v1083
        %v1272 = vpack.c.b16 %v1086, %v1085
        %v1273 = vpack.c.b16 %v1088, %v1087
        %v1274 = vpack.c.b16 %v1090, %v1089
        %v1275 = vpack.c.b16 %v1092, %v1091
        %v1276 = vpack.c.b16 %v1094, %v1093
        %v1277 = vpack.c.b16 %v1096, %v1095
        %v1278 = vpack.c.b16 %v1098, %v1097
        %v1279 = vpack.c.b16 %v1100, %v1099
        %v1280 = vpack.c.b16 %v1102, %v1101
        %v1281 = vpack.c.b16 %v1104, %v1103
        %v1282 = vpack.c.b16 %v1106, %v1105
        %v1283 = vpack.c.b16 %v1108, %v1107
        %v1284 = vpack.c.b16 %v1110, %v1109
        %v1285 = vpack.c.b16 %v1112, %v1111
        %v1286 = vpack.c.b16 %v1114, %v1113
        %v1287 = vpack.c.b16 %v1116, %v1115
        %v1288 = vpack.c.b16 %v1118, %v1117
        %v1289 = vpack.c.b16 %v1120, %v1119
        %v1290 = vpack.c.b16 %v1122, %v1121
        %v1291 = vpack.c.b16 %v1124, %v1123
        %v1292 = vpack.c.b16 %v1126, %v1125
        %v1293 = vpack.c.b16 %v1128, %v1127
        %v1294 = vpack.c.b16 %v1130, %v1129
        %v1295 = vpack.c.b16 %v1132, %v1131
        %v1296 = vpack.c.b16 %v1134, %v1133
        %v1297 = vpack.c.b16 %v1136, %v1135
        %v1298 = vpack.c.b16 %v1138, %v1137
        %v1299 = vpack.c.b16 %v1140, %v1139
        %v1300 = vpack.c.b16 %v1142, %v1141
        %v1301 = vpack.c.b16 %v1144, %v1143
        %v1302 = vpack.c.b16 %v1146, %v1145
        %v1303 = vpack.c.b16 %v1148, %v1147
        %v1304 = vpack.c.b16 %v1150, %v1149
        %v1305 = vpack.c.b16 %v1152, %v1151
        %v1306 = vpack.c.b16 %v1154, %v1153
        %v1307 = vpack.c.b16 %v1156, %v1155
        %v1308 = vpack.c.b16 %v1158, %v1157
        %v1309 = vpack.c.b16 %v1160, %v1159
        %v1310 = vpack.c.b16 %v1162, %v1161
        %v1311 = vpack.c.b16 %v1164, %v1163
        %v1312 = vpack.c.b16 %v1166, %v1165
        %v1313 = vpack.c.b16 %v1168, %v1167
        %v1314 = vpack.c.b16 %v1170, %v1169
        %v1315 = vpack.c.b16 %v1172, %v1171
        %v1316 = vpack.c.b16 %v1174, %v1173
        %v1317 = vpack.c.b16 %v1176, %v1175
        %v1318 = vpack.c.b16 %v1178, %v1177
        %v1319 = vpack.c.b16 %v1180, %v1179
        %v1320 = vpack.c.b16 %v1182, %v1181
        %v1321 = vpack.c.b16 %v1184, %v1183
        %v1322 = vpack.c.b16 %v1186, %v1185
        %v1323 = vpack.c.b16 %v1188, %v1187
        %v1324 = vpack.c.b16 %v1190, %v1189
        %v1325 = vpack.c.b16 %v1192, %v1191
        %v1326 = vpack.c.b16 %v1194, %v1193
        %v1327 = vpack.c.b16 %v1196, %v1195
        %v1328 = vpack.c.b16 %v1198, %v1197
        %v1329 = vpack.c.b16 %v1200, %v1199
        %v1330 = vpack.c.b16 %v1202, %v1201
        %1459 = vxpose.xlu0.c.b16.start [1/8] %v1203, 128
        %1460 = vxpose.xlu0.c.b16.cont [2/8] %v1204, 128
        %1461 = vxpose.xlu0.c.b16.cont [3/8] %v1205, 128
        %1462 = vxpose.xlu0.c.b16.cont [4/8] %v1206, 128
        %1463 = vxpose.xlu0.c.b16.cont [5/8] %v1207, 128
        %1464 = vxpose.xlu0.c.b16.cont [6/8] %v1208, 128
        %1465 = vxpose.xlu0.c.b16.cont [7/8] %v1209, 128
        %1466 = vxpose.xlu0.c.b16.end [8/8] %v1210, 128
        %v1467 = vpop.trf.xlu0
        %v1468 = vpop.trf.xlu0
        %v1469 = vpop.trf.xlu0
        %v1470 = vpop.trf.xlu0
        %v1471 = vpop.trf.xlu0
        %v1472 = vpop.trf.xlu0
        %v1473 = vpop.trf.xlu0
        %v1474 = vpop.trf.xlu0
        %1475 = vxpose.xlu0.c.b16.start [1/8] %v1211, 128
        %1476 = vxpose.xlu0.c.b16.cont [2/8] %v1212, 128
        %1477 = vxpose.xlu0.c.b16.cont [3/8] %v1213, 128
        %1478 = vxpose.xlu0.c.b16.cont [4/8] %v1214, 128
        %1479 = vxpose.xlu0.c.b16.cont [5/8] %v1215, 128
        %1480 = vxpose.xlu0.c.b16.cont [6/8] %v1216, 128
        %1481 = vxpose.xlu0.c.b16.cont [7/8] %v1217, 128
        %1482 = vxpose.xlu0.c.b16.end [8/8] %v1218, 128
        %v1483 = vpop.trf.xlu0
        %v1484 = vpop.trf.xlu0
        %v1485 = vpop.trf.xlu0
        %v1486 = vpop.trf.xlu0
        %v1487 = vpop.trf.xlu0
        %v1488 = vpop.trf.xlu0
        %v1489 = vpop.trf.xlu0
        %v1490 = vpop.trf.xlu0
        %1491 = vxpose.xlu0.c.b16.start [1/8] %v1219, 128
        %1492 = vxpose.xlu0.c.b16.cont [2/8] %v1220, 128
        %1493 = vxpose.xlu0.c.b16.cont [3/8] %v1221, 128
        %1494 = vxpose.xlu0.c.b16.cont [4/8] %v1222, 128
        %1495 = vxpose.xlu0.c.b16.cont [5/8] %v1223, 128
        %1496 = vxpose.xlu0.c.b16.cont [6/8] %v1224, 128
        %1497 = vxpose.xlu0.c.b16.cont [7/8] %v1225, 128
        %1498 = vxpose.xlu0.c.b16.end [8/8] %v1226, 128
        %v1499 = vpop.trf.xlu0
        %v1500 = vpop.trf.xlu0
        %v1501 = vpop.trf.xlu0
        %v1502 = vpop.trf.xlu0
        %v1503 = vpop.trf.xlu0
        %v1504 = vpop.trf.xlu0
        %v1505 = vpop.trf.xlu0
        %v1506 = vpop.trf.xlu0
        %1507 = vxpose.xlu0.c.b16.start [1/8] %v1227, 128
        %1508 = vxpose.xlu0.c.b16.cont [2/8] %v1228, 128
        %1509 = vxpose.xlu0.c.b16.cont [3/8] %v1229, 128
        %1510 = vxpose.xlu0.c.b16.cont [4/8] %v1230, 128
        %1511 = vxpose.xlu0.c.b16.cont [5/8] %v1231, 128
        %1512 = vxpose.xlu0.c.b16.cont [6/8] %v1232, 128
        %1513 = vxpose.xlu0.c.b16.cont [7/8] %v1233, 128
        %1514 = vxpose.xlu0.c.b16.end [8/8] %v1234, 128
        %v1515 = vpop.trf.xlu0
        %v1516 = vpop.trf.xlu0
        %v1517 = vpop.trf.xlu0
        %v1518 = vpop.trf.xlu0
        %v1519 = vpop.trf.xlu0
        %v1520 = vpop.trf.xlu0
        %v1521 = vpop.trf.xlu0
        %v1522 = vpop.trf.xlu0
        %1523 = vxpose.xlu0.c.b16.start [1/8] %v1235, 128
        %1524 = vxpose.xlu0.c.b16.cont [2/8] %v1236, 128
        %1525 = vxpose.xlu0.c.b16.cont [3/8] %v1237, 128
        %1526 = vxpose.xlu0.c.b16.cont [4/8] %v1238, 128
        %1527 = vxpose.xlu0.c.b16.cont [5/8] %v1239, 128
        %1528 = vxpose.xlu0.c.b16.cont [6/8] %v1240, 128
        %1529 = vxpose.xlu0.c.b16.cont [7/8] %v1241, 128
        %1530 = vxpose.xlu0.c.b16.end [8/8] %v1242, 128
        %v1531 = vpop.trf.xlu0
        %v1532 = vpop.trf.xlu0
        %v1533 = vpop.trf.xlu0
        %v1534 = vpop.trf.xlu0
        %v1535 = vpop.trf.xlu0
        %v1536 = vpop.trf.xlu0
        %v1537 = vpop.trf.xlu0
        %v1538 = vpop.trf.xlu0
        %1539 = vxpose.xlu0.c.b16.start [1/8] %v1243, 128
        %1540 = vxpose.xlu0.c.b16.cont [2/8] %v1244, 128
        %1541 = vxpose.xlu0.c.b16.cont [3/8] %v1245, 128
        %1542 = vxpose.xlu0.c.b16.cont [4/8] %v1246, 128
        %1543 = vxpose.xlu0.c.b16.cont [5/8] %v1247, 128
        %1544 = vxpose.xlu0.c.b16.cont [6/8] %v1248, 128
        %1545 = vxpose.xlu0.c.b16.cont [7/8] %v1249, 128
        %1546 = vxpose.xlu0.c.b16.end [8/8] %v1250, 128
        %v1547 = vpop.trf.xlu0
        %v1548 = vpop.trf.xlu0
        %v1549 = vpop.trf.xlu0
        %v1550 = vpop.trf.xlu0
        %v1551 = vpop.trf.xlu0
        %v1552 = vpop.trf.xlu0
        %v1553 = vpop.trf.xlu0
        %v1554 = vpop.trf.xlu0
        %1555 = vxpose.xlu0.c.b16.start [1/8] %v1251, 128
        %1556 = vxpose.xlu0.c.b16.cont [2/8] %v1252, 128
        %1557 = vxpose.xlu0.c.b16.cont [3/8] %v1253, 128
        %1558 = vxpose.xlu0.c.b16.cont [4/8] %v1254, 128
        %1559 = vxpose.xlu0.c.b16.cont [5/8] %v1255, 128
        %1560 = vxpose.xlu0.c.b16.cont [6/8] %v1256, 128
        %1561 = vxpose.xlu0.c.b16.cont [7/8] %v1257, 128
        %1562 = vxpose.xlu0.c.b16.end [8/8] %v1258, 128
        %v1563 = vpop.trf.xlu0
        %v1564 = vpop.trf.xlu0
        %v1565 = vpop.trf.xlu0
        %v1566 = vpop.trf.xlu0
        %v1567 = vpop.trf.xlu0
        %v1568 = vpop.trf.xlu0
        %v1569 = vpop.trf.xlu0
        %v1570 = vpop.trf.xlu0
        %1571 = vxpose.xlu0.c.b16.start [1/8] %v1259, 128
        %1572 = vxpose.xlu0.c.b16.cont [2/8] %v1260, 128
        %1573 = vxpose.xlu0.c.b16.cont [3/8] %v1261, 128
        %1574 = vxpose.xlu0.c.b16.cont [4/8] %v1262, 128
        %1575 = vxpose.xlu0.c.b16.cont [5/8] %v1263, 128
        %1576 = vxpose.xlu0.c.b16.cont [6/8] %v1264, 128
        %1577 = vxpose.xlu0.c.b16.cont [7/8] %v1265, 128
        %1578 = vxpose.xlu0.c.b16.end [8/8] %v1266, 128
        %v1579 = vpop.trf.xlu0
        %v1580 = vpop.trf.xlu0
        %v1581 = vpop.trf.xlu0
        %v1582 = vpop.trf.xlu0
        %v1583 = vpop.trf.xlu0
        %v1584 = vpop.trf.xlu0
        %v1585 = vpop.trf.xlu0
        %v1586 = vpop.trf.xlu0
        %1587 = vxpose.xlu0.c.b16.start [1/8] %v1267, 128
        %1588 = vxpose.xlu0.c.b16.cont [2/8] %v1268, 128
        %1589 = vxpose.xlu0.c.b16.cont [3/8] %v1269, 128
        %1590 = vxpose.xlu0.c.b16.cont [4/8] %v1270, 128
        %1591 = vxpose.xlu0.c.b16.cont [5/8] %v1271, 128
        %1592 = vxpose.xlu0.c.b16.cont [6/8] %v1272, 128
        %1593 = vxpose.xlu0.c.b16.cont [7/8] %v1273, 128
        %1594 = vxpose.xlu0.c.b16.end [8/8] %v1274, 128
        %v1595 = vpop.trf.xlu0
        %v1596 = vpop.trf.xlu0
        %v1597 = vpop.trf.xlu0
        %v1598 = vpop.trf.xlu0
        %v1599 = vpop.trf.xlu0
        %v1600 = vpop.trf.xlu0
        %v1601 = vpop.trf.xlu0
        %v1602 = vpop.trf.xlu0
        %1603 = vxpose.xlu0.c.b16.start [1/8] %v1275, 128
        %1604 = vxpose.xlu0.c.b16.cont [2/8] %v1276, 128
        %1605 = vxpose.xlu0.c.b16.cont [3/8] %v1277, 128
        %1606 = vxpose.xlu0.c.b16.cont [4/8] %v1278, 128
        %1607 = vxpose.xlu0.c.b16.cont [5/8] %v1279, 128
        %1608 = vxpose.xlu0.c.b16.cont [6/8] %v1280, 128
        %1609 = vxpose.xlu0.c.b16.cont [7/8] %v1281, 128
        %1610 = vxpose.xlu0.c.b16.end [8/8] %v1282, 128
        %v1611 = vpop.trf.xlu0
        %v1612 = vpop.trf.xlu0
        %v1613 = vpop.trf.xlu0
        %v1614 = vpop.trf.xlu0
        %v1615 = vpop.trf.xlu0
        %v1616 = vpop.trf.xlu0
        %v1617 = vpop.trf.xlu0
        %v1618 = vpop.trf.xlu0
        %1619 = vxpose.xlu0.c.b16.start [1/8] %v1283, 128
        %1620 = vxpose.xlu0.c.b16.cont [2/8] %v1284, 128
        %1621 = vxpose.xlu0.c.b16.cont [3/8] %v1285, 128
        %1622 = vxpose.xlu0.c.b16.cont [4/8] %v1286, 128
        %1623 = vxpose.xlu0.c.b16.cont [5/8] %v1287, 128
        %1624 = vxpose.xlu0.c.b16.cont [6/8] %v1288, 128
        %1625 = vxpose.xlu0.c.b16.cont [7/8] %v1289, 128
        %1626 = vxpose.xlu0.c.b16.end [8/8] %v1290, 128
        %v1627 = vpop.trf.xlu0
        %v1628 = vpop.trf.xlu0
        %v1629 = vpop.trf.xlu0
        %v1630 = vpop.trf.xlu0
        %v1631 = vpop.trf.xlu0
        %v1632 = vpop.trf.xlu0
        %v1633 = vpop.trf.xlu0
        %v1634 = vpop.trf.xlu0
        %1635 = vxpose.xlu0.c.b16.start [1/8] %v1291, 128
        %1636 = vxpose.xlu0.c.b16.cont [2/8] %v1292, 128
        %1637 = vxpose.xlu0.c.b16.cont [3/8] %v1293, 128
        %1638 = vxpose.xlu0.c.b16.cont [4/8] %v1294, 128
        %1639 = vxpose.xlu0.c.b16.cont [5/8] %v1295, 128
        %1640 = vxpose.xlu0.c.b16.cont [6/8] %v1296, 128
        %1641 = vxpose.xlu0.c.b16.cont [7/8] %v1297, 128
        %1642 = vxpose.xlu0.c.b16.end [8/8] %v1298, 128
        %v1643 = vpop.trf.xlu0
        %v1644 = vpop.trf.xlu0
        %v1645 = vpop.trf.xlu0
        %v1646 = vpop.trf.xlu0
        %v1647 = vpop.trf.xlu0
        %v1648 = vpop.trf.xlu0
        %v1649 = vpop.trf.xlu0
        %v1650 = vpop.trf.xlu0
        %1651 = vxpose.xlu0.c.b16.start [1/8] %v1299, 128
        %1652 = vxpose.xlu0.c.b16.cont [2/8] %v1300, 128
        %1653 = vxpose.xlu0.c.b16.cont [3/8] %v1301, 128
        %1654 = vxpose.xlu0.c.b16.cont [4/8] %v1302, 128
        %1655 = vxpose.xlu0.c.b16.cont [5/8] %v1303, 128
        %1656 = vxpose.xlu0.c.b16.cont [6/8] %v1304, 128
        %1657 = vxpose.xlu0.c.b16.cont [7/8] %v1305, 128
        %1658 = vxpose.xlu0.c.b16.end [8/8] %v1306, 128
        %v1659 = vpop.trf.xlu0
        %v1660 = vpop.trf.xlu0
        %v1661 = vpop.trf.xlu0
        %v1662 = vpop.trf.xlu0
        %v1663 = vpop.trf.xlu0
        %v1664 = vpop.trf.xlu0
        %v1665 = vpop.trf.xlu0
        %v1666 = vpop.trf.xlu0
        %1667 = vxpose.xlu0.c.b16.start [1/8] %v1307, 128
        %1668 = vxpose.xlu0.c.b16.cont [2/8] %v1308, 128
        %1669 = vxpose.xlu0.c.b16.cont [3/8] %v1309, 128
        %1670 = vxpose.xlu0.c.b16.cont [4/8] %v1310, 128
        %1671 = vxpose.xlu0.c.b16.cont [5/8] %v1311, 128
        %1672 = vxpose.xlu0.c.b16.cont [6/8] %v1312, 128
        %1673 = vxpose.xlu0.c.b16.cont [7/8] %v1313, 128
        %1674 = vxpose.xlu0.c.b16.end [8/8] %v1314, 128
        %v1675 = vpop.trf.xlu0
        %v1676 = vpop.trf.xlu0
        %v1677 = vpop.trf.xlu0
        %v1678 = vpop.trf.xlu0
        %v1679 = vpop.trf.xlu0
        %v1680 = vpop.trf.xlu0
        %v1681 = vpop.trf.xlu0
        %v1682 = vpop.trf.xlu0
        %1683 = vxpose.xlu0.c.b16.start [1/8] %v1315, 128
        %1684 = vxpose.xlu0.c.b16.cont [2/8] %v1316, 128
        %1685 = vxpose.xlu0.c.b16.cont [3/8] %v1317, 128
        %1686 = vxpose.xlu0.c.b16.cont [4/8] %v1318, 128
        %1687 = vxpose.xlu0.c.b16.cont [5/8] %v1319, 128
        %1688 = vxpose.xlu0.c.b16.cont [6/8] %v1320, 128
        %1689 = vxpose.xlu0.c.b16.cont [7/8] %v1321, 128
        %1690 = vxpose.xlu0.c.b16.end [8/8] %v1322, 128
        %v1691 = vpop.trf.xlu0
        %v1692 = vpop.trf.xlu0
        %v1693 = vpop.trf.xlu0
        %v1694 = vpop.trf.xlu0
        %v1695 = vpop.trf.xlu0
        %v1696 = vpop.trf.xlu0
        %v1697 = vpop.trf.xlu0
        %v1698 = vpop.trf.xlu0
        %1699 = vxpose.xlu0.c.b16.start [1/8] %v1323, 128
        %1700 = vxpose.xlu0.c.b16.cont [2/8] %v1324, 128
        %1701 = vxpose.xlu0.c.b16.cont [3/8] %v1325, 128
        %1702 = vxpose.xlu0.c.b16.cont [4/8] %v1326, 128
        %1703 = vxpose.xlu0.c.b16.cont [5/8] %v1327, 128
        %1704 = vxpose.xlu0.c.b16.cont [6/8] %v1328, 128
        %1705 = vxpose.xlu0.c.b16.cont [7/8] %v1329, 128
        %1706 = vxpose.xlu0.c.b16.end [8/8] %v1330, 128
        %v1707 = vpop.trf.xlu0
        %v1708 = vpop.trf.xlu0
        %v1709 = vpop.trf.xlu0
        %v1710 = vpop.trf.xlu0
        %v1711 = vpop.trf.xlu0
        %v1712 = vpop.trf.xlu0
        %v1713 = vpop.trf.xlu0
        %v1714 = vpop.trf.xlu0
        %1715 = vmatprep.subr.bf16.mxu0 0
        %1716 = vmatpush1.bf16.msra.mxu0 %v1203
        %1717 = vmatprep.subr.bf16.mxu0 0
        %1718 = vmatpush1.bf16.msra.mxu0 %v1204
        %1719 = vmatprep.subr.bf16.mxu0 0
        %1720 = vmatpush1.bf16.msra.mxu0 %v1205
        %1721 = vmatprep.subr.bf16.mxu0 0
        %1722 = vmatpush1.bf16.msra.mxu0 %v1206
        %1723 = vmatprep.subr.bf16.mxu0 0
        %1724 = vmatpush1.bf16.msra.mxu0 %v1207
        %1725 = vmatprep.subr.bf16.mxu0 0
        %1726 = vmatpush1.bf16.msra.mxu0 %v1208
        %1727 = vmatprep.subr.bf16.mxu0 0
        %1728 = vmatpush1.bf16.msra.mxu0 %v1209
        %1729 = vmatprep.subr.bf16.mxu0 0
        %1730 = vmatpush1.bf16.msra.mxu0 %v1210
        %1731 = vmatprep.subr.bf16.mxu0 0
        %1732 = vmatpush1.bf16.msra.mxu0 %v1211
        %1733 = vmatprep.subr.bf16.mxu0 0
        %1734 = vmatpush1.bf16.msra.mxu0 %v1212
        %1735 = vmatprep.subr.bf16.mxu0 0
        %1736 = vmatpush1.bf16.msra.mxu0 %v1213
        %1737 = vmatprep.subr.bf16.mxu0 0
        %1738 = vmatpush1.bf16.msra.mxu0 %v1214
        %1739 = vmatprep.subr.bf16.mxu0 0
        %1740 = vmatpush1.bf16.msra.mxu0 %v1215
        %1741 = vmatprep.subr.bf16.mxu0 0
        %1742 = vmatpush1.bf16.msra.mxu0 %v1216
        %1743 = vmatprep.subr.bf16.mxu0 0
        %1744 = vmatpush1.bf16.msra.mxu0 %v1217
        %1745 = vmatprep.subr.bf16.mxu0 0
        %1746 = vmatpush1.bf16.msra.mxu0 %v1218
        %1747 = vmatprep.mubr.bf16.mxu0 %v1483
        %1748 = vmatmul.mubr.bf16.gmra.mrb[0].mxu0 %v1467
        %v1749 = vpop.f32.mrb[0].mxu0
        %v1750 = vadd.f32 0.0, %v1749
        %v1751 = vpop.f32.mrb[0].mxu0
        %v1752 = vpop.f32.mrb[0].mxu0
        %v1753 = vadd.f32 0.0, %v1752
        %v1754 = vpop.f32.mrb[0].mxu0
        %1755 = vmatprep.mubr.bf16.mxu0 %v1484
        %1756 = vmatmul.mubr.bf16.gmra.mrb[0].mxu0 %v1468
        %v1757 = vpop.f32.mrb[0].mxu0
        %v1758 = vadd.f32 0.0, %v1757
        %v1759 = vpop.f32.mrb[0].mxu0
        %v1760 = vpop.f32.mrb[0].mxu0
        %v1761 = vadd.f32 0.0, %v1760
        %v1762 = vpop.f32.mrb[0].mxu0
        %1763 = vmatprep.mubr.bf16.mxu0 %v1485
        %1764 = vmatmul.mubr.bf16.gmra.mrb[0].mxu0 %v1469
        %v1765 = vpop.f32.mrb[0].mxu0
        %v1766 = vadd.f32 0.0, %v1765
        %v1767 = vpop.f32.mrb[0].mxu0
        %v1768 = vpop.f32.mrb[0].mxu0
        %v1769 = vadd.f32 0.0, %v1768
        %v1770 = vpop.f32.mrb[0].mxu0
        %1771 = vmatprep.mubr.bf16.mxu0 %v1486
        %1772 = vmatmul.mubr.bf16.gmra.mrb[0].mxu0 %v1470
        %v1773 = vpop.f32.mrb[0].mxu0
        %v1774 = vadd.f32 0.0, %v1773
        %v1775 = vpop.f32.mrb[0].mxu0
        %v1776 = vpop.f32.mrb[0].mxu0
        %v1777 = vadd.f32 0.0, %v1776
        %v1778 = vpop.f32.mrb[0].mxu0
        %1779 = vmatprep.mubr.bf16.mxu0 %v1487
        %1780 = vmatmul.mubr.bf16.gmra.mrb[0].mxu0 %v1471
        %v1781 = vpop.f32.mrb[0].mxu0
        %v1782 = vadd.f32 0.0, %v1781
        %v1783 = vpop.f32.mrb[0].mxu0
        %v1784 = vpop.f32.mrb[0].mxu0
        %v1785 = vadd.f32 0.0, %v1784
        %v1786 = vpop.f32.mrb[0].mxu0
        %1787 = vmatprep.mubr.bf16.mxu0 %v1488
        %1788 = vmatmul.mubr.bf16.gmra.mrb[0].mxu0 %v1472
        %v1789 = vpop.f32.mrb[0].mxu0
        %v1790 = vadd.f32 0.0, %v1789
        %v1791 = vpop.f32.mrb[0].mxu0
        %v1792 = vpop.f32.mrb[0].mxu0
        %v1793 = vadd.f32 0.0, %v1792
        %v1794 = vpop.f32.mrb[0].mxu0
        %1795 = vmatprep.mubr.bf16.mxu0 %v1489
        %1796 = vmatmul.mubr.bf16.gmra.mrb[0].mxu0 %v1473
        %v1797 = vpop.f32.mrb[0].mxu0
        %v1798 = vadd.f32 0.0, %v1797
        %v1799 = vpop.f32.mrb[0].mxu0
        %v1800 = vpop.f32.mrb[0].mxu0
        %v1801 = vadd.f32 0.0, %v1800
        %v1802 = vpop.f32.mrb[0].mxu0
        %1803 = vmatprep.mubr.bf16.mxu0 %v1490
        %1804 = vmatmul.mubr.bf16.gmra.mrb[0].mxu0 %v1474
        %v1805 = vpop.f32.mrb[0].mxu0
        %v1806 = vadd.f32 0.0, %v1805
        %v1807 = vpop.f32.mrb[0].mxu0
        %v1808 = vpop.f32.mrb[0].mxu0
        %v1809 = vadd.f32 0.0, %v1808
        %v1810 = vpop.f32.mrb[0].mxu0
        %1811 = vdwg.mxu0
        %1812 = vmatprep.subr.bf16.mxu0 0
        %1813 = vmatpush1.bf16.msra.mxu0 %v1219
        %1814 = vmatprep.subr.bf16.mxu0 0
        %1815 = vmatpush1.bf16.msra.mxu0 %v1220
        %1816 = vmatprep.subr.bf16.mxu0 0
        %1817 = vmatpush1.bf16.msra.mxu0 %v1221
        %1818 = vmatprep.subr.bf16.mxu0 0
        %1819 = vmatpush1.bf16.msra.mxu0 %v1222
        %1820 = vmatprep.subr.bf16.mxu0 0
        %1821 = vmatpush1.bf16.msra.mxu0 %v1223
        %1822 = vmatprep.subr.bf16.mxu0 0
        %1823 = vmatpush1.bf16.msra.mxu0 %v1224
        %1824 = vmatprep.subr.bf16.mxu0 0
        %1825 = vmatpush1.bf16.msra.mxu0 %v1225
        %1826 = vmatprep.subr.bf16.mxu0 0
        %1827 = vmatpush1.bf16.msra.mxu0 %v1226
        %1828 = vmatprep.subr.bf16.mxu0 0
        %1829 = vmatpush1.bf16.msra.mxu0 %v1227
        %1830 = vmatprep.subr.bf16.mxu0 0
        %1831 = vmatpush1.bf16.msra.mxu0 %v1228
        %1832 = vmatprep.subr.bf16.mxu0 0
        %1833 = vmatpush1.bf16.msra.mxu0 %v1229
        %1834 = vmatprep.subr.bf16.mxu0 0
        %1835 = vmatpush1.bf16.msra.mxu0 %v1230
        %1836 = vmatprep.subr.bf16.mxu0 0
        %1837 = vmatpush1.bf16.msra.mxu0 %v1231
        %1838 = vmatprep.subr.bf16.mxu0 0
        %1839 = vmatpush1.bf16.msra.mxu0 %v1232
        %1840 = vmatprep.subr.bf16.mxu0 0
        %1841 = vmatpush1.bf16.msra.mxu0 %v1233
        %1842 = vmatprep.subr.bf16.mxu0 0
        %1843 = vmatpush1.bf16.msra.mxu0 %v1234
        %1844 = vmatprep.mubr.bf16.mxu0 %v1515
        %1845 = vmatmul.mubr.bf16.gmra.mrb[0].mxu0 %v1499
        %v1846 = vpop.f32.mrb[0].mxu0
        %v1847 = vadd.f32 %v1750, %v1846
        %v1848 = vpop.f32.mrb[0].mxu0
        %v1849 = vpop.f32.mrb[0].mxu0
        %v1850 = vadd.f32 %v1753, %v1849
        %v1851 = vpop.f32.mrb[0].mxu0
        %1852 = vmatprep.mubr.bf16.mxu0 %v1516
        %1853 = vmatmul.mubr.bf16.gmra.mrb[0].mxu0 %v1500
        %v1854 = vpop.f32.mrb[0].mxu0
        %v1855 = vadd.f32 %v1758, %v1854
        %v1856 = vpop.f32.mrb[0].mxu0
        %v1857 = vpop.f32.mrb[0].mxu0
        %v1858 = vadd.f32 %v1761, %v1857
        %v1859 = vpop.f32.mrb[0].mxu0
        %1860 = vmatprep.mubr.bf16.mxu0 %v1517
        %1861 = vmatmul.mubr.bf16.gmra.mrb[0].mxu0 %v1501
        %v1862 = vpop.f32.mrb[0].mxu0
        %v1863 = vadd.f32 %v1766, %v1862
        %v1864 = vpop.f32.mrb[0].mxu0
        %v1865 = vpop.f32.mrb[0].mxu0
        %v1866 = vadd.f32 %v1769, %v1865
        %v1867 = vpop.f32.mrb[0].mxu0
        %1868 = vmatprep.mubr.bf16.mxu0 %v1518
        %1869 = vmatmul.mubr.bf16.gmra.mrb[0].mxu0 %v1502
        %v1870 = vpop.f32.mrb[0].mxu0
        %v1871 = vadd.f32 %v1774, %v1870
        %v1872 = vpop.f32.mrb[0].mxu0
        %v1873 = vpop.f32.mrb[0].mxu0
        %v1874 = vadd.f32 %v1777, %v1873
        %v1875 = vpop.f32.mrb[0].mxu0
        %1876 = vmatprep.mubr.bf16.mxu0 %v1519
        %1877 = vmatmul.mubr.bf16.gmra.mrb[0].mxu0 %v1503
        %v1878 = vpop.f32.mrb[0].mxu0
        %v1879 = vadd.f32 %v1782, %v1878
        %v1880 = vpop.f32.mrb[0].mxu0
        %v1881 = vpop.f32.mrb[0].mxu0
        %v1882 = vadd.f32 %v1785, %v1881
        %v1883 = vpop.f32.mrb[0].mxu0
        %1884 = vmatprep.mubr.bf16.mxu0 %v1520
        %1885 = vmatmul.mubr.bf16.gmra.mrb[0].mxu0 %v1504
        %v1886 = vpop.f32.mrb[0].mxu0
        %v1887 = vadd.f32 %v1790, %v1886
        %v1888 = vpop.f32.mrb[0].mxu0
        %v1889 = vpop.f32.mrb[0].mxu0
        %v1890 = vadd.f32 %v1793, %v1889
        %v1891 = vpop.f32.mrb[0].mxu0
        %1892 = vmatprep.mubr.bf16.mxu0 %v1521
        %1893 = vmatmul.mubr.bf16.gmra.mrb[0].mxu0 %v1505
        %v1894 = vpop.f32.mrb[0].mxu0
        %v1895 = vadd.f32 %v1798, %v1894
        %v1896 = vpop.f32.mrb[0].mxu0
        %v1897 = vpop.f32.mrb[0].mxu0
        %v1898 = vadd.f32 %v1801, %v1897
        %v1899 = vpop.f32.mrb[0].mxu0
        %1900 = vmatprep.mubr.bf16.mxu0 %v1522
        %1901 = vmatmul.mubr.bf16.gmra.mrb[0].mxu0 %v1506
        %v1902 = vpop.f32.mrb[0].mxu0
        %v1903 = vadd.f32 %v1806, %v1902
        %v1904 = vpop.f32.mrb[0].mxu0
        %v1905 = vpop.f32.mrb[0].mxu0
        %v1906 = vadd.f32 %v1809, %v1905
        %v1907 = vpop.f32.mrb[0].mxu0
        %1908 = vdwg.mxu0
        %1909 = vmatprep.subr.bf16.mxu0 0
        %1910 = vmatpush1.bf16.msra.mxu0 %v1235
        %1911 = vmatprep.subr.bf16.mxu0 0
        %1912 = vmatpush1.bf16.msra.mxu0 %v1236
        %1913 = vmatprep.subr.bf16.mxu0 0
        %1914 = vmatpush1.bf16.msra.mxu0 %v1237
        %1915 = vmatprep.subr.bf16.mxu0 0
        %1916 = vmatpush1.bf16.msra.mxu0 %v1238
        %1917 = vmatprep.subr.bf16.mxu0 0
        %1918 = vmatpush1.bf16.msra.mxu0 %v1239
        %1919 = vmatprep.subr.bf16.mxu0 0
        %1920 = vmatpush1.bf16.msra.mxu0 %v1240
        %1921 = vmatprep.subr.bf16.mxu0 0
        %1922 = vmatpush1.bf16.msra.mxu0 %v1241
        %1923 = vmatprep.subr.bf16.mxu0 0
        %1924 = vmatpush1.bf16.msra.mxu0 %v1242
        %1925 = vmatprep.subr.bf16.mxu0 0
        %1926 = vmatpush1.bf16.msra.mxu0 %v1243
        %1927 = vmatprep.subr.bf16.mxu0 0
        %1928 = vmatpush1.bf16.msra.mxu0 %v1244
        %1929 = vmatprep.subr.bf16.mxu0 0
        %1930 = vmatpush1.bf16.msra.mxu0 %v1245
        %1931 = vmatprep.subr.bf16.mxu0 0
        %1932 = vmatpush1.bf16.msra.mxu0 %v1246
        %1933 = vmatprep.subr.bf16.mxu0 0
        %1934 = vmatpush1.bf16.msra.mxu0 %v1247
        %1935 = vmatprep.subr.bf16.mxu0 0
        %1936 = vmatpush1.bf16.msra.mxu0 %v1248
        %1937 = vmatprep.subr.bf16.mxu0 0
        %1938 = vmatpush1.bf16.msra.mxu0 %v1249
        %1939 = vmatprep.subr.bf16.mxu0 0
        %1940 = vmatpush1.bf16.msra.mxu0 %v1250
        %1941 = vmatprep.mubr.bf16.mxu0 %v1547
        %1942 = vmatmul.mubr.bf16.gmra.mrb[0].mxu0 %v1531
        %v1943 = vpop.f32.mrb[0].mxu0
        %v1944 = vadd.f32 %v1847, %v1943
        %v1945 = vpop.f32.mrb[0].mxu0
        %v1946 = vpop.f32.mrb[0].mxu0
        %v1947 = vadd.f32 %v1850, %v1946
        %v1948 = vpop.f32.mrb[0].mxu0
        %1949 = vmatprep.mubr.bf16.mxu0 %v1548
        %1950 = vmatmul.mubr.bf16.gmra.mrb[0].mxu0 %v1532
        %v1951 = vpop.f32.mrb[0].mxu0
        %v1952 = vadd.f32 %v1855, %v1951
        %v1953 = vpop.f32.mrb[0].mxu0
        %v1954 = vpop.f32.mrb[0].mxu0
        %v1955 = vadd.f32 %v1858, %v1954
        %v1956 = vpop.f32.mrb[0].mxu0
        %1957 = vmatprep.mubr.bf16.mxu0 %v1549
        %1958 = vmatmul.mubr.bf16.gmra.mrb[0].mxu0 %v1533
        %v1959 = vpop.f32.mrb[0].mxu0
        %v1960 = vadd.f32 %v1863, %v1959
        %v1961 = vpop.f32.mrb[0].mxu0
        %v1962 = vpop.f32.mrb[0].mxu0
        %v1963 = vadd.f32 %v1866, %v1962
        %v1964 = vpop.f32.mrb[0].mxu0
        %1965 = vmatprep.mubr.bf16.mxu0 %v1550
        %1966 = vmatmul.mubr.bf16.gmra.mrb[0].mxu0 %v1534
        %v1967 = vpop.f32.mrb[0].mxu0
        %v1968 = vadd.f32 %v1871, %v1967
        %v1969 = vpop.f32.mrb[0].mxu0
        %v1970 = vpop.f32.mrb[0].mxu0
        %v1971 = vadd.f32 %v1874, %v1970
        %v1972 = vpop.f32.mrb[0].mxu0
        %1973 = vmatprep.mubr.bf16.mxu0 %v1551
        %1974 = vmatmul.mubr.bf16.gmra.mrb[0].mxu0 %v1535
        %v1975 = vpop.f32.mrb[0].mxu0
        %v1976 = vadd.f32 %v1879, %v1975
        %v1977 = vpop.f32.mrb[0].mxu0
        %v1978 = vpop.f32.mrb[0].mxu0
        %v1979 = vadd.f32 %v1882, %v1978
        %v1980 = vpop.f32.mrb[0].mxu0
        %1981 = vmatprep.mubr.bf16.mxu0 %v1552
        %1982 = vmatmul.mubr.bf16.gmra.mrb[0].mxu0 %v1536
        %v1983 = vpop.f32.mrb[0].mxu0
        %v1984 = vadd.f32 %v1887, %v1983
        %v1985 = vpop.f32.mrb[0].mxu0
        %v1986 = vpop.f32.mrb[0].mxu0
        %v1987 = vadd.f32 %v1890, %v1986
        %v1988 = vpop.f32.mrb[0].mxu0
        %1989 = vmatprep.mubr.bf16.mxu0 %v1553
        %1990 = vmatmul.mubr.bf16.gmra.mrb[0].mxu0 %v1537
        %v1991 = vpop.f32.mrb[0].mxu0
        %v1992 = vadd.f32 %v1895, %v1991
        %v1993 = vpop.f32.mrb[0].mxu0
        %v1994 = vpop.f32.mrb[0].mxu0
        %v1995 = vadd.f32 %v1898, %v1994
        %v1996 = vpop.f32.mrb[0].mxu0
        %1997 = vmatprep.mubr.bf16.mxu0 %v1554
        %1998 = vmatmul.mubr.bf16.gmra.mrb[0].mxu0 %v1538
        %v1999 = vpop.f32.mrb[0].mxu0
        %v2000 = vadd.f32 %v1903, %v1999
        %v2001 = vpop.f32.mrb[0].mxu0
        %v2002 = vpop.f32.mrb[0].mxu0
        %v2003 = vadd.f32 %v1906, %v2002
        %v2004 = vpop.f32.mrb[0].mxu0
        %2005 = vdwg.mxu0
        %2006 = vmatprep.subr.bf16.mxu0 0
        %2007 = vmatpush1.bf16.msra.mxu0 %v1251
        %2008 = vmatprep.subr.bf16.mxu0 0
        %2009 = vmatpush1.bf16.msra.mxu0 %v1252
        %2010 = vmatprep.subr.bf16.mxu0 0
        %2011 = vmatpush1.bf16.msra.mxu0 %v1253
        %2012 = vmatprep.subr.bf16.mxu0 0
        %2013 = vmatpush1.bf16.msra.mxu0 %v1254
        %2014 = vmatprep.subr.bf16.mxu0 0
        %2015 = vmatpush1.bf16.msra.mxu0 %v1255
        %2016 = vmatprep.subr.bf16.mxu0 0
        %2017 = vmatpush1.bf16.msra.mxu0 %v1256
        %2018 = vmatprep.subr.bf16.mxu0 0
        %2019 = vmatpush1.bf16.msra.mxu0 %v1257
        %2020 = vmatprep.subr.bf16.mxu0 0
        %2021 = vmatpush1.bf16.msra.mxu0 %v1258
        %2022 = vmatprep.subr.bf16.mxu0 0
        %2023 = vmatpush1.bf16.msra.mxu0 %v1259
        %2024 = vmatprep.subr.bf16.mxu0 0
        %2025 = vmatpush1.bf16.msra.mxu0 %v1260
        %2026 = vmatprep.subr.bf16.mxu0 0
        %2027 = vmatpush1.bf16.msra.mxu0 %v1261
        %2028 = vmatprep.subr.bf16.mxu0 0
        %2029 = vmatpush1.bf16.msra.mxu0 %v1262
        %2030 = vmatprep.subr.bf16.mxu0 0
        %2031 = vmatpush1.bf16.msra.mxu0 %v1263
        %2032 = vmatprep.subr.bf16.mxu0 0
        %2033 = vmatpush1.bf16.msra.mxu0 %v1264
        %2034 = vmatprep.subr.bf16.mxu0 0
        %2035 = vmatpush1.bf16.msra.mxu0 %v1265
        %2036 = vmatprep.subr.bf16.mxu0 0
        %2037 = vmatpush1.bf16.msra.mxu0 %v1266
        %2038 = vmatprep.mubr.bf16.mxu0 %v1579
        %2039 = vmatmul.mubr.bf16.gmra.mrb[0].mxu0 %v1563
        %v2040 = vpop.f32.mrb[0].mxu0
        %v2041 = vadd.f32 %v1944, %v2040
        %v2042 = vpop.f32.mrb[0].mxu0
        %v2043 = vpop.f32.mrb[0].mxu0
        %v2044 = vadd.f32 %v1947, %v2043
        %v2045 = vpop.f32.mrb[0].mxu0
        %2046 = vmatprep.mubr.bf16.mxu0 %v1580
        %2047 = vmatmul.mubr.bf16.gmra.mrb[0].mxu0 %v1564
        %v2048 = vpop.f32.mrb[0].mxu0
        %v2049 = vadd.f32 %v1952, %v2048
        %v2050 = vpop.f32.mrb[0].mxu0
        %v2051 = vpop.f32.mrb[0].mxu0
        %v2052 = vadd.f32 %v1955, %v2051
        %v2053 = vpop.f32.mrb[0].mxu0
        %2054 = vmatprep.mubr.bf16.mxu0 %v1581
        %2055 = vmatmul.mubr.bf16.gmra.mrb[0].mxu0 %v1565
        %v2056 = vpop.f32.mrb[0].mxu0
        %v2057 = vadd.f32 %v1960, %v2056
        %v2058 = vpop.f32.mrb[0].mxu0
        %v2059 = vpop.f32.mrb[0].mxu0
        %v2060 = vadd.f32 %v1963, %v2059
        %v2061 = vpop.f32.mrb[0].mxu0
        %2062 = vmatprep.mubr.bf16.mxu0 %v1582
        %2063 = vmatmul.mubr.bf16.gmra.mrb[0].mxu0 %v1566
        %v2064 = vpop.f32.mrb[0].mxu0
        %v2065 = vadd.f32 %v1968, %v2064
        %v2066 = vpop.f32.mrb[0].mxu0
        %v2067 = vpop.f32.mrb[0].mxu0
        %v2068 = vadd.f32 %v1971, %v2067
        %v2069 = vpop.f32.mrb[0].mxu0
        %2070 = vmatprep.mubr.bf16.mxu0 %v1583
        %2071 = vmatmul.mubr.bf16.gmra.mrb[0].mxu0 %v1567
        %v2072 = vpop.f32.mrb[0].mxu0
        %v2073 = vadd.f32 %v1976, %v2072
        %v2074 = vpop.f32.mrb[0].mxu0
        %v2075 = vpop.f32.mrb[0].mxu0
        %v2076 = vadd.f32 %v1979, %v2075
        %v2077 = vpop.f32.mrb[0].mxu0
        %2078 = vmatprep.mubr.bf16.mxu0 %v1584
        %2079 = vmatmul.mubr.bf16.gmra.mrb[0].mxu0 %v1568
        %v2080 = vpop.f32.mrb[0].mxu0
        %v2081 = vadd.f32 %v1984, %v2080
        %v2082 = vpop.f32.mrb[0].mxu0
        %v2083 = vpop.f32.mrb[0].mxu0
        %v2084 = vadd.f32 %v1987, %v2083
        %v2085 = vpop.f32.mrb[0].mxu0
        %2086 = vmatprep.mubr.bf16.mxu0 %v1585
        %2087 = vmatmul.mubr.bf16.gmra.mrb[0].mxu0 %v1569
        %v2088 = vpop.f32.mrb[0].mxu0
        %v2089 = vadd.f32 %v1992, %v2088
        %v2090 = vpop.f32.mrb[0].mxu0
        %v2091 = vpop.f32.mrb[0].mxu0
        %v2092 = vadd.f32 %v1995, %v2091
        %v2093 = vpop.f32.mrb[0].mxu0
        %2094 = vmatprep.mubr.bf16.mxu0 %v1586
        %2095 = vmatmul.mubr.bf16.gmra.mrb[0].mxu0 %v1570
        %v2096 = vpop.f32.mrb[0].mxu0
        %v2097 = vadd.f32 %v2000, %v2096
        %v2098 = vpop.f32.mrb[0].mxu0
        %v2099 = vpop.f32.mrb[0].mxu0
        %v2100 = vadd.f32 %v2003, %v2099
        %v2101 = vpop.f32.mrb[0].mxu0
        %2102 = vdwg.mxu0
        %2103 = vmatprep.subr.bf16.mxu0 0
        %2104 = vmatpush1.bf16.msra.mxu0 %v1267
        %2105 = vmatprep.subr.bf16.mxu0 0
        %2106 = vmatpush1.bf16.msra.mxu0 %v1268
        %2107 = vmatprep.subr.bf16.mxu0 0
        %2108 = vmatpush1.bf16.msra.mxu0 %v1269
        %2109 = vmatprep.subr.bf16.mxu0 0
        %2110 = vmatpush1.bf16.msra.mxu0 %v1270
        %2111 = vmatprep.subr.bf16.mxu0 0
        %2112 = vmatpush1.bf16.msra.mxu0 %v1271
        %2113 = vmatprep.subr.bf16.mxu0 0
        %2114 = vmatpush1.bf16.msra.mxu0 %v1272
        %2115 = vmatprep.subr.bf16.mxu0 0
        %2116 = vmatpush1.bf16.msra.mxu0 %v1273
        %2117 = vmatprep.subr.bf16.mxu0 0
        %2118 = vmatpush1.bf16.msra.mxu0 %v1274
        %2119 = vmatprep.subr.bf16.mxu0 0
        %2120 = vmatpush1.bf16.msra.mxu0 %v1275
        %2121 = vmatprep.subr.bf16.mxu0 0
        %2122 = vmatpush1.bf16.msra.mxu0 %v1276
        %2123 = vmatprep.subr.bf16.mxu0 0
        %2124 = vmatpush1.bf16.msra.mxu0 %v1277
        %2125 = vmatprep.subr.bf16.mxu0 0
        %2126 = vmatpush1.bf16.msra.mxu0 %v1278
        %2127 = vmatprep.subr.bf16.mxu0 0
        %2128 = vmatpush1.bf16.msra.mxu0 %v1279
        %2129 = vmatprep.subr.bf16.mxu0 0
        %2130 = vmatpush1.bf16.msra.mxu0 %v1280
        %2131 = vmatprep.subr.bf16.mxu0 0
        %2132 = vmatpush1.bf16.msra.mxu0 %v1281
        %2133 = vmatprep.subr.bf16.mxu0 0
        %2134 = vmatpush1.bf16.msra.mxu0 %v1282
        %2135 = vmatprep.mubr.bf16.mxu0 %v1611
        %2136 = vmatmul.mubr.bf16.gmra.mrb[0].mxu0 %v1595
        %v2137 = vpop.f32.mrb[0].mxu0
        %v2138 = vadd.f32 %v2041, %v2137
        %v2139 = vpop.f32.mrb[0].mxu0
        %v2140 = vpop.f32.mrb[0].mxu0
        %v2141 = vadd.f32 %v2044, %v2140
        %v2142 = vpop.f32.mrb[0].mxu0
        %2143 = vmatprep.mubr.bf16.mxu0 %v1612
        %2144 = vmatmul.mubr.bf16.gmra.mrb[0].mxu0 %v1596
        %v2145 = vpop.f32.mrb[0].mxu0
        %v2146 = vadd.f32 %v2049, %v2145
        %v2147 = vpop.f32.mrb[0].mxu0
        %v2148 = vpop.f32.mrb[0].mxu0
        %v2149 = vadd.f32 %v2052, %v2148
        %v2150 = vpop.f32.mrb[0].mxu0
        %2151 = vmatprep.mubr.bf16.mxu0 %v1613
        %2152 = vmatmul.mubr.bf16.gmra.mrb[0].mxu0 %v1597
        %v2153 = vpop.f32.mrb[0].mxu0
        %v2154 = vadd.f32 %v2057, %v2153
        %v2155 = vpop.f32.mrb[0].mxu0
        %v2156 = vpop.f32.mrb[0].mxu0
        %v2157 = vadd.f32 %v2060, %v2156
        %v2158 = vpop.f32.mrb[0].mxu0
        %2159 = vmatprep.mubr.bf16.mxu0 %v1614
        %2160 = vmatmul.mubr.bf16.gmra.mrb[0].mxu0 %v1598
        %v2161 = vpop.f32.mrb[0].mxu0
        %v2162 = vadd.f32 %v2065, %v2161
        %v2163 = vpop.f32.mrb[0].mxu0
        %v2164 = vpop.f32.mrb[0].mxu0
        %v2165 = vadd.f32 %v2068, %v2164
        %v2166 = vpop.f32.mrb[0].mxu0
        %2167 = vmatprep.mubr.bf16.mxu0 %v1615
        %2168 = vmatmul.mubr.bf16.gmra.mrb[0].mxu0 %v1599
        %v2169 = vpop.f32.mrb[0].mxu0
        %v2170 = vadd.f32 %v2073, %v2169
        %v2171 = vpop.f32.mrb[0].mxu0
        %v2172 = vpop.f32.mrb[0].mxu0
        %v2173 = vadd.f32 %v2076, %v2172
        %v2174 = vpop.f32.mrb[0].mxu0
        %2175 = vmatprep.mubr.bf16.mxu0 %v1616
        %2176 = vmatmul.mubr.bf16.gmra.mrb[0].mxu0 %v1600
        %v2177 = vpop.f32.mrb[0].mxu0
        %v2178 = vadd.f32 %v2081, %v2177
        %v2179 = vpop.f32.mrb[0].mxu0
        %v2180 = vpop.f32.mrb[0].mxu0
        %v2181 = vadd.f32 %v2084, %v2180
        %v2182 = vpop.f32.mrb[0].mxu0
        %2183 = vmatprep.mubr.bf16.mxu0 %v1617
        %2184 = vmatmul.mubr.bf16.gmra.mrb[0].mxu0 %v1601
        %v2185 = vpop.f32.mrb[0].mxu0
        %v2186 = vadd.f32 %v2089, %v2185
        %v2187 = vpop.f32.mrb[0].mxu0
        %v2188 = vpop.f32.mrb[0].mxu0
        %v2189 = vadd.f32 %v2092, %v2188
        %v2190 = vpop.f32.mrb[0].mxu0
        %2191 = vmatprep.mubr.bf16.mxu0 %v1618
        %2192 = vmatmul.mubr.bf16.gmra.mrb[0].mxu0 %v1602
        %v2193 = vpop.f32.mrb[0].mxu0
        %v2194 = vadd.f32 %v2097, %v2193
        %v2195 = vpop.f32.mrb[0].mxu0
        %v2196 = vpop.f32.mrb[0].mxu0
        %v2197 = vadd.f32 %v2100, %v2196
        %v2198 = vpop.f32.mrb[0].mxu0
        %2199 = vdwg.mxu0
        %2200 = vmatprep.subr.bf16.mxu0 0
        %2201 = vmatpush1.bf16.msra.mxu0 %v1283
        %2202 = vmatprep.subr.bf16.mxu0 0
        %2203 = vmatpush1.bf16.msra.mxu0 %v1284
        %2204 = vmatprep.subr.bf16.mxu0 0
        %2205 = vmatpush1.bf16.msra.mxu0 %v1285
        %2206 = vmatprep.subr.bf16.mxu0 0
        %2207 = vmatpush1.bf16.msra.mxu0 %v1286
        %2208 = vmatprep.subr.bf16.mxu0 0
        %2209 = vmatpush1.bf16.msra.mxu0 %v1287
        %2210 = vmatprep.subr.bf16.mxu0 0
        %2211 = vmatpush1.bf16.msra.mxu0 %v1288
        %2212 = vmatprep.subr.bf16.mxu0 0
        %2213 = vmatpush1.bf16.msra.mxu0 %v1289
        %2214 = vmatprep.subr.bf16.mxu0 0
        %2215 = vmatpush1.bf16.msra.mxu0 %v1290
        %2216 = vmatprep.subr.bf16.mxu0 0
        %2217 = vmatpush1.bf16.msra.mxu0 %v1291
        %2218 = vmatprep.subr.bf16.mxu0 0
        %2219 = vmatpush1.bf16.msra.mxu0 %v1292
        %2220 = vmatprep.subr.bf16.mxu0 0
        %2221 = vmatpush1.bf16.msra.mxu0 %v1293
        %2222 = vmatprep.subr.bf16.mxu0 0
        %2223 = vmatpush1.bf16.msra.mxu0 %v1294
        %2224 = vmatprep.subr.bf16.mxu0 0
        %2225 = vmatpush1.bf16.msra.mxu0 %v1295
        %2226 = vmatprep.subr.bf16.mxu0 0
        %2227 = vmatpush1.bf16.msra.mxu0 %v1296
        %2228 = vmatprep.subr.bf16.mxu0 0
        %2229 = vmatpush1.bf16.msra.mxu0 %v1297
        %2230 = vmatprep.subr.bf16.mxu0 0
        %2231 = vmatpush1.bf16.msra.mxu0 %v1298
        %2232 = vmatprep.mubr.bf16.mxu0 %v1643
        %2233 = vmatmul.mubr.bf16.gmra.mrb[0].mxu0 %v1627
        %v2234 = vpop.f32.mrb[0].mxu0
        %v2235 = vadd.f32 %v2138, %v2234
        %v2236 = vpop.f32.mrb[0].mxu0
        %v2237 = vpop.f32.mrb[0].mxu0
        %v2238 = vadd.f32 %v2141, %v2237
        %v2239 = vpop.f32.mrb[0].mxu0
        %2240 = vmatprep.mubr.bf16.mxu0 %v1644
        %2241 = vmatmul.mubr.bf16.gmra.mrb[0].mxu0 %v1628
        %v2242 = vpop.f32.mrb[0].mxu0
        %v2243 = vadd.f32 %v2146, %v2242
        %v2244 = vpop.f32.mrb[0].mxu0
        %v2245 = vpop.f32.mrb[0].mxu0
        %v2246 = vadd.f32 %v2149, %v2245
        %v2247 = vpop.f32.mrb[0].mxu0
        %2248 = vmatprep.mubr.bf16.mxu0 %v1645
        %2249 = vmatmul.mubr.bf16.gmra.mrb[0].mxu0 %v1629
        %v2250 = vpop.f32.mrb[0].mxu0
        %v2251 = vadd.f32 %v2154, %v2250
        %v2252 = vpop.f32.mrb[0].mxu0
        %v2253 = vpop.f32.mrb[0].mxu0
        %v2254 = vadd.f32 %v2157, %v2253
        %v2255 = vpop.f32.mrb[0].mxu0
        %2256 = vmatprep.mubr.bf16.mxu0 %v1646
        %2257 = vmatmul.mubr.bf16.gmra.mrb[0].mxu0 %v1630
        %v2258 = vpop.f32.mrb[0].mxu0
        %v2259 = vadd.f32 %v2162, %v2258
        %v2260 = vpop.f32.mrb[0].mxu0
        %v2261 = vpop.f32.mrb[0].mxu0
        %v2262 = vadd.f32 %v2165, %v2261
        %v2263 = vpop.f32.mrb[0].mxu0
        %2264 = vmatprep.mubr.bf16.mxu0 %v1647
        %2265 = vmatmul.mubr.bf16.gmra.mrb[0].mxu0 %v1631
        %v2266 = vpop.f32.mrb[0].mxu0
        %v2267 = vadd.f32 %v2170, %v2266
        %v2268 = vpop.f32.mrb[0].mxu0
        %v2269 = vpop.f32.mrb[0].mxu0
        %v2270 = vadd.f32 %v2173, %v2269
        %v2271 = vpop.f32.mrb[0].mxu0
        %2272 = vmatprep.mubr.bf16.mxu0 %v1648
        %2273 = vmatmul.mubr.bf16.gmra.mrb[0].mxu0 %v1632
        %v2274 = vpop.f32.mrb[0].mxu0
        %v2275 = vadd.f32 %v2178, %v2274
        %v2276 = vpop.f32.mrb[0].mxu0
        %v2277 = vpop.f32.mrb[0].mxu0
        %v2278 = vadd.f32 %v2181, %v2277
        %v2279 = vpop.f32.mrb[0].mxu0
        %2280 = vmatprep.mubr.bf16.mxu0 %v1649
        %2281 = vmatmul.mubr.bf16.gmra.mrb[0].mxu0 %v1633
        %v2282 = vpop.f32.mrb[0].mxu0
        %v2283 = vadd.f32 %v2186, %v2282
        %v2284 = vpop.f32.mrb[0].mxu0
        %v2285 = vpop.f32.mrb[0].mxu0
        %v2286 = vadd.f32 %v2189, %v2285
        %v2287 = vpop.f32.mrb[0].mxu0
        %2288 = vmatprep.mubr.bf16.mxu0 %v1650
        %2289 = vmatmul.mubr.bf16.gmra.mrb[0].mxu0 %v1634
        %v2290 = vpop.f32.mrb[0].mxu0
        %v2291 = vadd.f32 %v2194, %v2290
        %v2292 = vpop.f32.mrb[0].mxu0
        %v2293 = vpop.f32.mrb[0].mxu0
        %v2294 = vadd.f32 %v2197, %v2293
        %v2295 = vpop.f32.mrb[0].mxu0
        %2296 = vdwg.mxu0
        %2297 = vmatprep.subr.bf16.mxu0 0
        %2298 = vmatpush1.bf16.msra.mxu0 %v1299
        %2299 = vmatprep.subr.bf16.mxu0 0
        %2300 = vmatpush1.bf16.msra.mxu0 %v1300
        %2301 = vmatprep.subr.bf16.mxu0 0
        %2302 = vmatpush1.bf16.msra.mxu0 %v1301
        %2303 = vmatprep.subr.bf16.mxu0 0
        %2304 = vmatpush1.bf16.msra.mxu0 %v1302
        %2305 = vmatprep.subr.bf16.mxu0 0
        %2306 = vmatpush1.bf16.msra.mxu0 %v1303
        %2307 = vmatprep.subr.bf16.mxu0 0
        %2308 = vmatpush1.bf16.msra.mxu0 %v1304
        %2309 = vmatprep.subr.bf16.mxu0 0
        %2310 = vmatpush1.bf16.msra.mxu0 %v1305
        %2311 = vmatprep.subr.bf16.mxu0 0
        %2312 = vmatpush1.bf16.msra.mxu0 %v1306
        %2313 = vmatprep.subr.bf16.mxu0 0
        %2314 = vmatpush1.bf16.msra.mxu0 %v1307
        %2315 = vmatprep.subr.bf16.mxu0 0
        %2316 = vmatpush1.bf16.msra.mxu0 %v1308
        %2317 = vmatprep.subr.bf16.mxu0 0
        %2318 = vmatpush1.bf16.msra.mxu0 %v1309
        %2319 = vmatprep.subr.bf16.mxu0 0
        %2320 = vmatpush1.bf16.msra.mxu0 %v1310
        %2321 = vmatprep.subr.bf16.mxu0 0
        %2322 = vmatpush1.bf16.msra.mxu0 %v1311
        %2323 = vmatprep.subr.bf16.mxu0 0
        %2324 = vmatpush1.bf16.msra.mxu0 %v1312
        %2325 = vmatprep.subr.bf16.mxu0 0
        %2326 = vmatpush1.bf16.msra.mxu0 %v1313
        %2327 = vmatprep.subr.bf16.mxu0 0
        %2328 = vmatpush1.bf16.msra.mxu0 %v1314
        %2329 = vmatprep.mubr.bf16.mxu0 %v1675
        %2330 = vmatmul.mubr.bf16.gmra.mrb[0].mxu0 %v1659
        %v2331 = vpop.f32.mrb[0].mxu0
        %v2332 = vadd.f32 %v2235, %v2331
        %v2333 = vpop.f32.mrb[0].mxu0
        %v2334 = vpop.f32.mrb[0].mxu0
        %v2335 = vadd.f32 %v2238, %v2334
        %v2336 = vpop.f32.mrb[0].mxu0
        %2337 = vmatprep.mubr.bf16.mxu0 %v1676
        %2338 = vmatmul.mubr.bf16.gmra.mrb[0].mxu0 %v1660
        %v2339 = vpop.f32.mrb[0].mxu0
        %v2340 = vadd.f32 %v2243, %v2339
        %v2341 = vpop.f32.mrb[0].mxu0
        %v2342 = vpop.f32.mrb[0].mxu0
        %v2343 = vadd.f32 %v2246, %v2342
        %v2344 = vpop.f32.mrb[0].mxu0
        %2345 = vmatprep.mubr.bf16.mxu0 %v1677
        %2346 = vmatmul.mubr.bf16.gmra.mrb[0].mxu0 %v1661
        %v2347 = vpop.f32.mrb[0].mxu0
        %v2348 = vadd.f32 %v2251, %v2347
        %v2349 = vpop.f32.mrb[0].mxu0
        %v2350 = vpop.f32.mrb[0].mxu0
        %v2351 = vadd.f32 %v2254, %v2350
        %v2352 = vpop.f32.mrb[0].mxu0
        %2353 = vmatprep.mubr.bf16.mxu0 %v1678
        %2354 = vmatmul.mubr.bf16.gmra.mrb[0].mxu0 %v1662
        %v2355 = vpop.f32.mrb[0].mxu0
        %v2356 = vadd.f32 %v2259, %v2355
        %v2357 = vpop.f32.mrb[0].mxu0
        %v2358 = vpop.f32.mrb[0].mxu0
        %v2359 = vadd.f32 %v2262, %v2358
        %v2360 = vpop.f32.mrb[0].mxu0
        %2361 = vmatprep.mubr.bf16.mxu0 %v1679
        %2362 = vmatmul.mubr.bf16.gmra.mrb[0].mxu0 %v1663
        %v2363 = vpop.f32.mrb[0].mxu0
        %v2364 = vadd.f32 %v2267, %v2363
        %v2365 = vpop.f32.mrb[0].mxu0
        %v2366 = vpop.f32.mrb[0].mxu0
        %v2367 = vadd.f32 %v2270, %v2366
        %v2368 = vpop.f32.mrb[0].mxu0
        %2369 = vmatprep.mubr.bf16.mxu0 %v1680
        %2370 = vmatmul.mubr.bf16.gmra.mrb[0].mxu0 %v1664
        %v2371 = vpop.f32.mrb[0].mxu0
        %v2372 = vadd.f32 %v2275, %v2371
        %v2373 = vpop.f32.mrb[0].mxu0
        %v2374 = vpop.f32.mrb[0].mxu0
        %v2375 = vadd.f32 %v2278, %v2374
        %v2376 = vpop.f32.mrb[0].mxu0
        %2377 = vmatprep.mubr.bf16.mxu0 %v1681
        %2378 = vmatmul.mubr.bf16.gmra.mrb[0].mxu0 %v1665
        %v2379 = vpop.f32.mrb[0].mxu0
        %v2380 = vadd.f32 %v2283, %v2379
        %v2381 = vpop.f32.mrb[0].mxu0
        %v2382 = vpop.f32.mrb[0].mxu0
        %v2383 = vadd.f32 %v2286, %v2382
        %v2384 = vpop.f32.mrb[0].mxu0
        %2385 = vmatprep.mubr.bf16.mxu0 %v1682
        %2386 = vmatmul.mubr.bf16.gmra.mrb[0].mxu0 %v1666
        %v2387 = vpop.f32.mrb[0].mxu0
        %v2388 = vadd.f32 %v2291, %v2387
        %v2389 = vpop.f32.mrb[0].mxu0
        %v2390 = vpop.f32.mrb[0].mxu0
        %v2391 = vadd.f32 %v2294, %v2390
        %v2392 = vpop.f32.mrb[0].mxu0
        %2393 = vdwg.mxu0
        %2394 = vmatprep.subr.bf16.mxu0 0
        %2395 = vmatpush1.bf16.msra.mxu0 %v1315
        %2396 = vmatprep.subr.bf16.mxu0 0
        %2397 = vmatpush1.bf16.msra.mxu0 %v1316
        %2398 = vmatprep.subr.bf16.mxu0 0
        %2399 = vmatpush1.bf16.msra.mxu0 %v1317
        %2400 = vmatprep.subr.bf16.mxu0 0
        %2401 = vmatpush1.bf16.msra.mxu0 %v1318
        %2402 = vmatprep.subr.bf16.mxu0 0
        %2403 = vmatpush1.bf16.msra.mxu0 %v1319
        %2404 = vmatprep.subr.bf16.mxu0 0
        %2405 = vmatpush1.bf16.msra.mxu0 %v1320
        %2406 = vmatprep.subr.bf16.mxu0 0
        %2407 = vmatpush1.bf16.msra.mxu0 %v1321
        %2408 = vmatprep.subr.bf16.mxu0 0
        %2409 = vmatpush1.bf16.msra.mxu0 %v1322
        %2410 = vmatprep.subr.bf16.mxu0 0
        %2411 = vmatpush1.bf16.msra.mxu0 %v1323
        %2412 = vmatprep.subr.bf16.mxu0 0
        %2413 = vmatpush1.bf16.msra.mxu0 %v1324
        %2414 = vmatprep.subr.bf16.mxu0 0
        %2415 = vmatpush1.bf16.msra.mxu0 %v1325
        %2416 = vmatprep.subr.bf16.mxu0 0
        %2417 = vmatpush1.bf16.msra.mxu0 %v1326
        %2418 = vmatprep.subr.bf16.mxu0 0
        %2419 = vmatpush1.bf16.msra.mxu0 %v1327
        %2420 = vmatprep.subr.bf16.mxu0 0
        %2421 = vmatpush1.bf16.msra.mxu0 %v1328
        %2422 = vmatprep.subr.bf16.mxu0 0
        %2423 = vmatpush1.bf16.msra.mxu0 %v1329
        %2424 = vmatprep.subr.bf16.mxu0 0
        %2425 = vmatpush1.bf16.msra.mxu0 %v1330
        %2426 = vmatprep.mubr.bf16.mxu0 %v1707
        %2427 = vmatmul.mubr.bf16.gmra.mrb[0].mxu0 %v1691
        %v2428 = vpop.f32.mrb[0].mxu0
        %v2429 = vadd.f32 %v2332, %v2428
        %v2430 = vpop.f32.mrb[0].mxu0
        %v2431 = vpop.f32.mrb[0].mxu0
        %v2432 = vadd.f32 %v2335, %v2431
        %v2433 = vpop.f32.mrb[0].mxu0
        %2434 = vmatprep.mubr.bf16.mxu0 %v1708
        %2435 = vmatmul.mubr.bf16.gmra.mrb[0].mxu0 %v1692
        %v2436 = vpop.f32.mrb[0].mxu0
        %v2437 = vadd.f32 %v2340, %v2436
        %v2438 = vpop.f32.mrb[0].mxu0
        %v2439 = vpop.f32.mrb[0].mxu0
        %v2440 = vadd.f32 %v2343, %v2439
        %v2441 = vpop.f32.mrb[0].mxu0
        %2442 = vmatprep.mubr.bf16.mxu0 %v1709
        %2443 = vmatmul.mubr.bf16.gmra.mrb[0].mxu0 %v1693
        %v2444 = vpop.f32.mrb[0].mxu0
        %v2445 = vadd.f32 %v2348, %v2444
        %v2446 = vpop.f32.mrb[0].mxu0
        %v2447 = vpop.f32.mrb[0].mxu0
        %v2448 = vadd.f32 %v2351, %v2447
        %v2449 = vpop.f32.mrb[0].mxu0
        %2450 = vmatprep.mubr.bf16.mxu0 %v1710
        %2451 = vmatmul.mubr.bf16.gmra.mrb[0].mxu0 %v1694
        %v2452 = vpop.f32.mrb[0].mxu0
        %v2453 = vadd.f32 %v2356, %v2452
        %v2454 = vpop.f32.mrb[0].mxu0
        %v2455 = vpop.f32.mrb[0].mxu0
        %v2456 = vadd.f32 %v2359, %v2455
        %v2457 = vpop.f32.mrb[0].mxu0
        %2458 = vmatprep.mubr.bf16.mxu0 %v1711
        %2459 = vmatmul.mubr.bf16.gmra.mrb[0].mxu0 %v1695
        %v2460 = vpop.f32.mrb[0].mxu0
        %v2461 = vadd.f32 %v2364, %v2460
        %v2462 = vpop.f32.mrb[0].mxu0
        %v2463 = vpop.f32.mrb[0].mxu0
        %v2464 = vadd.f32 %v2367, %v2463
        %v2465 = vpop.f32.mrb[0].mxu0
        %2466 = vmatprep.mubr.bf16.mxu0 %v1712
        %2467 = vmatmul.mubr.bf16.gmra.mrb[0].mxu0 %v1696
        %v2468 = vpop.f32.mrb[0].mxu0
        %v2469 = vadd.f32 %v2372, %v2468
        %v2470 = vpop.f32.mrb[0].mxu0
        %v2471 = vpop.f32.mrb[0].mxu0
        %v2472 = vadd.f32 %v2375, %v2471
        %v2473 = vpop.f32.mrb[0].mxu0
        %2474 = vmatprep.mubr.bf16.mxu0 %v1713
        %2475 = vmatmul.mubr.bf16.gmra.mrb[0].mxu0 %v1697
        %v2476 = vpop.f32.mrb[0].mxu0
        %v2477 = vadd.f32 %v2380, %v2476
        %v2478 = vpop.f32.mrb[0].mxu0
        %v2479 = vpop.f32.mrb[0].mxu0
        %v2480 = vadd.f32 %v2383, %v2479
        %v2481 = vpop.f32.mrb[0].mxu0
        %2482 = vmatprep.mubr.bf16.mxu0 %v1714
        %2483 = vmatmul.mubr.bf16.gmra.mrb[0].mxu0 %v1698
        %v2484 = vpop.f32.mrb[0].mxu0
        %v2485 = vadd.f32 %v2388, %v2484
        %v2486 = vpop.f32.mrb[0].mxu0
        %v2487 = vpop.f32.mrb[0].mxu0
        %v2488 = vadd.f32 %v2391, %v2487
        %v2489 = vpop.f32.mrb[0].mxu0
        %2490 = vdwg.mxu0
        %v2491 = vadd.f32 %v675, %v2429
        %v2492 = vadd.f32 %v676, %v2432
        %v2493 = vadd.f32 %v677, %v2437
        %v2494 = vadd.f32 %v678, %v2440
        %v2495 = vadd.f32 %v679, %v2445
        %v2496 = vadd.f32 %v680, %v2448
        %v2497 = vadd.f32 %v681, %v2453
        %v2498 = vadd.f32 %v682, %v2456
        %v2499 = vadd.f32 %v683, %v2461
        %v2500 = vadd.f32 %v684, %v2464
        %v2501 = vadd.f32 %v685, %v2469
        %v2502 = vadd.f32 %v686, %v2472
        %v2503 = vadd.f32 %v687, %v2477
        %v2504 = vadd.f32 %v688, %v2480
        %v2505 = vadd.f32 %v689, %v2485
        %v2506 = vadd.f32 %v690, %v2488
        %2507 = vst [vmem:[#allocation2] sm:$0xff] %v2491
        %2508 = vst [vmem:[#allocation2 + $0x8] sm:$0xff] %v2492
        %2509 = vst [vmem:[#allocation2 + $0x10] sm:$0xff] %v2493
        %2510 = vst [vmem:[#allocation2 + $0x18] sm:$0xff] %v2494
        %2511 = vst [vmem:[#allocation2 + $0x20] sm:$0xff] %v2495
        %2512 = vst [vmem:[#allocation2 + $0x28] sm:$0xff] %v2496
        %2513 = vst [vmem:[#allocation2 + $0x30] sm:$0xff] %v2497
        %2514 = vst [vmem:[#allocation2 + $0x38] sm:$0xff] %v2498
        %2515 = vst [vmem:[#allocation2 + $0x40] sm:$0xff] %v2499
        %2516 = vst [vmem:[#allocation2 + $0x48] sm:$0xff] %v2500
        %2517 = vst [vmem:[#allocation2 + $0x50] sm:$0xff] %v2501
        %2518 = vst [vmem:[#allocation2 + $0x58] sm:$0xff] %v2502
        %2519 = vst [vmem:[#allocation2 + $0x60] sm:$0xff] %v2503
        %2520 = vst [vmem:[#allocation2 + $0x68] sm:$0xff] %v2504
        %2521 = vst [vmem:[#allocation2 + $0x70] sm:$0xff] %v2505
        %2522 = vst [vmem:[#allocation2 + $0x78] sm:$0xff] %v2506
        %p2523 = scmp.eq.s32.totalorder %s33, 1
        // Predicated region
        $region77: #{tpu_custom_call.1} parent=51 // pred_check
          %p2524 = pneg %p2523
        $region78: #{tpu_custom_call.1} parent=51 // pred_check_branch
          %2526 = sbr.rel (%p2524) target = $region80
        $region79: #{tpu_custom_call.1} parent=51 // pred_region
          %v2527 = vld [vmem:[#allocation2] sm:$0xff]
          %v2528 = vld [vmem:[#allocation2 + $0x8] sm:$0xff]
          %v2529 = vld [vmem:[#allocation2 + $0x10] sm:$0xff]
          %v2530 = vld [vmem:[#allocation2 + $0x18] sm:$0xff]
          %v2531 = vld [vmem:[#allocation2 + $0x20] sm:$0xff]
          %v2532 = vld [vmem:[#allocation2 + $0x28] sm:$0xff]
          %v2533 = vld [vmem:[#allocation2 + $0x30] sm:$0xff]
          %v2534 = vld [vmem:[#allocation2 + $0x38] sm:$0xff]
          %v2535 = vld [vmem:[#allocation2 + $0x40] sm:$0xff]
          %v2536 = vld [vmem:[#allocation2 + $0x48] sm:$0xff]
          %v2537 = vld [vmem:[#allocation2 + $0x50] sm:$0xff]
          %v2538 = vld [vmem:[#allocation2 + $0x58] sm:$0xff]
          %v2539 = vld [vmem:[#allocation2 + $0x60] sm:$0xff]
          %v2540 = vld [vmem:[#allocation2 + $0x68] sm:$0xff]
          %v2541 = vld [vmem:[#allocation2 + $0x70] sm:$0xff]
          %v2542 = vld [vmem:[#allocation2 + $0x78] sm:$0xff]
          %v2543 = vld [vmem:[#allocation9] sm:$0xff]
          %v2544 = vld [vmem:[#allocation9 + $0x8] sm:$0xff]
          %v2545 = vld [vmem:[#allocation9 + $0x10] sm:$0xff]
          %v2546 = vld [vmem:[#allocation9 + $0x18] sm:$0xff]
          %v2547 = vld [vmem:[#allocation9 + $0x20] sm:$0xff]
          %v2548 = vld [vmem:[#allocation9 + $0x28] sm:$0xff]
          %v2549 = vld [vmem:[#allocation9 + $0x30] sm:$0xff]
          %v2550 = vld [vmem:[#allocation9 + $0x38] sm:$0xff]
          %v2551 = vld [vmem:[#allocation9 + $0x40] sm:$0xff]
          %v2552 = vld [vmem:[#allocation9 + $0x48] sm:$0xff]
          %v2553 = vld [vmem:[#allocation9 + $0x50] sm:$0xff]
          %v2554 = vld [vmem:[#allocation9 + $0x58] sm:$0xff]
          %v2555 = vld [vmem:[#allocation9 + $0x60] sm:$0xff]
          %v2556 = vld [vmem:[#allocation9 + $0x68] sm:$0xff]
          %v2557 = vld [vmem:[#allocation9 + $0x70] sm:$0xff]
          %v2558 = vld [vmem:[#allocation9 + $0x78] sm:$0xff]
          %2559 = vmatprep.subr.mxu0 0.0
          %2560 = vmatpush1.msra.mxu0 %v2527
          %2561 = vmatprep.subr.mxu0 0.0
          %2562 = vmatpush1.msra.mxu0 %v2528
          %2563 = vmatprep.subr.mxu0 0.0
          %2564 = vmatpush1.msra.mxu0 %v2529
          %2565 = vmatprep.subr.mxu0 0.0
          %2566 = vmatpush1.msra.mxu0 %v2530
          %2567 = vmatprep.subr.mxu0 0.0
          %2568 = vmatpush1.msra.mxu0 %v2531
          %2569 = vmatprep.subr.mxu0 0.0
          %2570 = vmatpush1.msra.mxu0 %v2532
          %2571 = vmatprep.subr.mxu0 0.0
          %2572 = vmatpush1.msra.mxu0 %v2533
          %2573 = vmatprep.subr.mxu0 0.0
          %2574 = vmatpush1.msra.mxu0 %v2534
          %2575 = vmatprep.subr.mxu0 0.0
          %2576 = vmatpush1.msra.mxu0 %v2535
          %2577 = vmatprep.subr.mxu0 0.0
          %2578 = vmatpush1.msra.mxu0 %v2536
          %2579 = vmatprep.subr.mxu0 0.0
          %2580 = vmatpush1.msra.mxu0 %v2537
          %2581 = vmatprep.subr.mxu0 0.0
          %2582 = vmatpush1.msra.mxu0 %v2538
          %2583 = vmatprep.subr.mxu0 0.0
          %2584 = vmatpush1.msra.mxu0 %v2539
          %2585 = vmatprep.subr.mxu0 0.0
          %2586 = vmatpush1.msra.mxu0 %v2540
          %2587 = vmatprep.subr.mxu0 0.0
          %2588 = vmatpush1.msra.mxu0 %v2541
          %2589 = vmatprep.subr.mxu0 0.0
          %2590 = vmatpush1.msra.mxu0 %v2542
          %2591 = vmatprep.subr.mxu0 0.0
          %2592 = vmatpush1.msra.mxu0 0.0
          %2593 = vmatprep.subr.mxu0 0.0
          %2594 = vmatpush1.msra.mxu0 0.0
          %2595 = vmatprep.subr.mxu0 0.0
          %2596 = vmatpush1.msra.mxu0 0.0
          %2597 = vmatprep.subr.mxu0 0.0
          %2598 = vmatpush1.msra.mxu0 0.0
          %2599 = vmatprep.subr.mxu0 0.0
          %2600 = vmatpush1.msra.mxu0 0.0
          %2601 = vmatprep.subr.mxu0 0.0
          %2602 = vmatpush1.msra.mxu0 0.0
          %2603 = vmatprep.subr.mxu0 0.0
          %2604 = vmatpush1.msra.mxu0 0.0
          %2605 = vmatprep.subr.mxu0 0.0
          %2606 = vmatpush1.msra.mxu0 0.0
          %2607 = vmatprep.subr.mxu0 0.0
          %2608 = vmatpush1.msra.mxu0 0.0
          %2609 = vmatprep.subr.mxu0 0.0
          %2610 = vmatpush1.msra.mxu0 0.0
          %2611 = vmatprep.subr.mxu0 0.0
          %2612 = vmatpush1.msra.mxu0 0.0
          %2613 = vmatprep.subr.mxu0 0.0
          %2614 = vmatpush1.msra.mxu0 0.0
          %2615 = vmatprep.subr.mxu0 0.0
          %2616 = vmatpush1.msra.mxu0 0.0
          %2617 = vmatprep.subr.mxu0 0.0
          %2618 = vmatpush1.msra.mxu0 0.0
          %2619 = vmatprep.subr.mxu0 0.0
          %2620 = vmatpush1.msra.mxu0 0.0
          %2621 = vmatprep.subr.mxu0 0.0
          %2622 = vmatpush1.msra.mxu0 0.0
          %2623 = vmatprep.mubr.f32.mxu0 0.0
          %2624 = vmatmul.mubr.f32.gmra.mrb[0].mxu0 %v2543
          %v2625 = vpop.f32.mrb[0].mxu0
          %v2626 = vadd.f32 0.0, %v2625
          %v2627 = vpop.f32.mrb[0].mxu0
          %2628 = vmatprep.mubr.f32.mxu0 0.0
          %2629 = vmatmul.mubr.f32.gmra.mrb[0].mxu0 %v2544
          %v2630 = vpop.f32.mrb[0].mxu0
          %v2631 = vadd.f32 0.0, %v2630
          %v2632 = vpop.f32.mrb[0].mxu0
          %2633 = vmatprep.mubr.f32.mxu0 0.0
          %2634 = vmatmul.mubr.f32.gmra.mrb[0].mxu0 %v2545
          %v2635 = vpop.f32.mrb[0].mxu0
          %v2636 = vadd.f32 0.0, %v2635
          %v2637 = vpop.f32.mrb[0].mxu0
          %2638 = vmatprep.mubr.f32.mxu0 0.0
          %2639 = vmatmul.mubr.f32.gmra.mrb[0].mxu0 %v2546
          %v2640 = vpop.f32.mrb[0].mxu0
          %v2641 = vadd.f32 0.0, %v2640
          %v2642 = vpop.f32.mrb[0].mxu0
          %2643 = vmatprep.mubr.f32.mxu0 0.0
          %2644 = vmatmul.mubr.f32.gmra.mrb[0].mxu0 %v2547
          %v2645 = vpop.f32.mrb[0].mxu0
          %v2646 = vadd.f32 0.0, %v2645
          %v2647 = vpop.f32.mrb[0].mxu0
          %2648 = vmatprep.mubr.f32.mxu0 0.0
          %2649 = vmatmul.mubr.f32.gmra.mrb[0].mxu0 %v2548
          %v2650 = vpop.f32.mrb[0].mxu0
          %v2651 = vadd.f32 0.0, %v2650
          %v2652 = vpop.f32.mrb[0].mxu0
          %2653 = vmatprep.mubr.f32.mxu0 0.0
          %2654 = vmatmul.mubr.f32.gmra.mrb[0].mxu0 %v2549
          %v2655 = vpop.f32.mrb[0].mxu0
          %v2656 = vadd.f32 0.0, %v2655
          %v2657 = vpop.f32.mrb[0].mxu0
          %2658 = vmatprep.mubr.f32.mxu0 0.0
          %2659 = vmatmul.mubr.f32.gmra.mrb[0].mxu0 %v2550
          %v2660 = vpop.f32.mrb[0].mxu0
          %v2661 = vadd.f32 0.0, %v2660
          %v2662 = vpop.f32.mrb[0].mxu0
          %2663 = vmatprep.mubr.f32.mxu0 0.0
          %2664 = vmatmul.mubr.f32.gmra.mrb[0].mxu0 %v2551
          %v2665 = vpop.f32.mrb[0].mxu0
          %v2666 = vadd.f32 0.0, %v2665
          %v2667 = vpop.f32.mrb[0].mxu0
          %2668 = vmatprep.mubr.f32.mxu0 0.0
          %2669 = vmatmul.mubr.f32.gmra.mrb[0].mxu0 %v2552
          %v2670 = vpop.f32.mrb[0].mxu0
          %v2671 = vadd.f32 0.0, %v2670
          %v2672 = vpop.f32.mrb[0].mxu0
          %2673 = vmatprep.mubr.f32.mxu0 0.0
          %2674 = vmatmul.mubr.f32.gmra.mrb[0].mxu0 %v2553
          %v2675 = vpop.f32.mrb[0].mxu0
          %v2676 = vadd.f32 0.0, %v2675
          %v2677 = vpop.f32.mrb[0].mxu0
          %2678 = vmatprep.mubr.f32.mxu0 0.0
          %2679 = vmatmul.mubr.f32.gmra.mrb[0].mxu0 %v2554
          %v2680 = vpop.f32.mrb[0].mxu0
          %v2681 = vadd.f32 0.0, %v2680
          %v2682 = vpop.f32.mrb[0].mxu0
          %2683 = vmatprep.mubr.f32.mxu0 0.0
          %2684 = vmatmul.mubr.f32.gmra.mrb[0].mxu0 %v2555
          %v2685 = vpop.f32.mrb[0].mxu0
          %v2686 = vadd.f32 0.0, %v2685
          %v2687 = vpop.f32.mrb[0].mxu0
          %2688 = vmatprep.mubr.f32.mxu0 0.0
          %2689 = vmatmul.mubr.f32.gmra.mrb[0].mxu0 %v2556
          %v2690 = vpop.f32.mrb[0].mxu0
          %v2691 = vadd.f32 0.0, %v2690
          %v2692 = vpop.f32.mrb[0].mxu0
          %2693 = vmatprep.mubr.f32.mxu0 0.0
          %2694 = vmatmul.mubr.f32.gmra.mrb[0].mxu0 %v2557
          %v2695 = vpop.f32.mrb[0].mxu0
          %v2696 = vadd.f32 0.0, %v2695
          %v2697 = vpop.f32.mrb[0].mxu0
          %2698 = vmatprep.mubr.f32.mxu0 0.0
          %2699 = vmatmul.mubr.f32.gmra.mrb[0].mxu0 %v2558
          %v2700 = vpop.f32.mrb[0].mxu0
          %v2701 = vadd.f32 0.0, %v2700
          %v2702 = vpop.f32.mrb[0].mxu0
          %2703 = vdwg.mxu0
          %v2704 = vld [vmem:[#allocation7] sm:$0xff]
          %v2705 = vld [vmem:[#allocation7 + $0x8] sm:$0xff]
          %v2706 = vld [vmem:[#allocation7 + $0x10] sm:$0xff]
          %v2707 = vld [vmem:[#allocation7 + $0x18] sm:$0xff]
          %v2708 = vld [vmem:[#allocation7 + $0x20] sm:$0xff]
          %v2709 = vld [vmem:[#allocation7 + $0x28] sm:$0xff]
          %v2710 = vld [vmem:[#allocation7 + $0x30] sm:$0xff]
          %v2711 = vld [vmem:[#allocation7 + $0x38] sm:$0xff]
          %v2712 = vld [vmem:[#allocation7 + $0x40] sm:$0xff]
          %v2713 = vld [vmem:[#allocation7 + $0x48] sm:$0xff]
          %v2714 = vld [vmem:[#allocation7 + $0x50] sm:$0xff]
          %v2715 = vld [vmem:[#allocation7 + $0x58] sm:$0xff]
          %v2716 = vld [vmem:[#allocation7 + $0x60] sm:$0xff]
          %v2717 = vld [vmem:[#allocation7 + $0x68] sm:$0xff]
          %v2718 = vld [vmem:[#allocation7 + $0x70] sm:$0xff]
          %v2719 = vld [vmem:[#allocation7 + $0x78] sm:$0xff]
          %2720 = vmatprep.subr.mxu0 0.0
          %2721 = vmatpush1.xpose.msra.mxu0 %v2704
          %2722 = vmatprep.subr.mxu0 0.0
          %2723 = vmatpush1.xpose.msra.mxu0 %v2705
          %2724 = vmatprep.subr.mxu0 0.0
          %2725 = vmatpush1.xpose.msra.mxu0 %v2706
          %2726 = vmatprep.subr.mxu0 0.0
          %2727 = vmatpush1.xpose.msra.mxu0 %v2707
          %2728 = vmatprep.subr.mxu0 0.0
          %2729 = vmatpush1.xpose.msra.mxu0 %v2708
          %2730 = vmatprep.subr.mxu0 0.0
          %2731 = vmatpush1.xpose.msra.mxu0 %v2709
          %2732 = vmatprep.subr.mxu0 0.0
          %2733 = vmatpush1.xpose.msra.mxu0 %v2710
          %2734 = vmatprep.subr.mxu0 0.0
          %2735 = vmatpush1.xpose.msra.mxu0 %v2711
          %2736 = vmatprep.subr.mxu0 0.0
          %2737 = vmatpush1.xpose.msra.mxu0 %v2712
          %2738 = vmatprep.subr.mxu0 0.0
          %2739 = vmatpush1.xpose.msra.mxu0 %v2713
          %2740 = vmatprep.subr.mxu0 0.0
          %2741 = vmatpush1.xpose.msra.mxu0 %v2714
          %2742 = vmatprep.subr.mxu0 0.0
          %2743 = vmatpush1.xpose.msra.mxu0 %v2715
          %2744 = vmatprep.subr.mxu0 0.0
          %2745 = vmatpush1.xpose.msra.mxu0 %v2716
          %2746 = vmatprep.subr.mxu0 0.0
          %2747 = vmatpush1.xpose.msra.mxu0 %v2717
          %2748 = vmatprep.subr.mxu0 0.0
          %2749 = vmatpush1.xpose.msra.mxu0 %v2718
          %2750 = vmatprep.subr.mxu0 0.0
          %2751 = vmatpush1.xpose.msra.mxu0 %v2719
          %2752 = vmatprep.subr.mxu0 0.0
          %2753 = vmatpush1.xpose.msra.mxu0 0.0
          %2754 = vmatprep.subr.mxu0 0.0
          %2755 = vmatpush1.xpose.msra.mxu0 0.0
          %2756 = vmatprep.subr.mxu0 0.0
          %2757 = vmatpush1.xpose.msra.mxu0 0.0
          %2758 = vmatprep.subr.mxu0 0.0
          %2759 = vmatpush1.xpose.msra.mxu0 0.0
          %2760 = vmatprep.subr.mxu0 0.0
          %2761 = vmatpush1.xpose.msra.mxu0 0.0
          %2762 = vmatprep.subr.mxu0 0.0
          %2763 = vmatpush1.xpose.msra.mxu0 0.0
          %2764 = vmatprep.subr.mxu0 0.0
          %2765 = vmatpush1.xpose.msra.mxu0 0.0
          %2766 = vmatprep.subr.mxu0 0.0
          %2767 = vmatpush1.xpose.msra.mxu0 0.0
          %2768 = vmatprep.subr.mxu0 0.0
          %2769 = vmatpush1.xpose.msra.mxu0 0.0
          %2770 = vmatprep.subr.mxu0 0.0
          %2771 = vmatpush1.xpose.msra.mxu0 0.0
          %2772 = vmatprep.subr.mxu0 0.0
          %2773 = vmatpush1.xpose.msra.mxu0 0.0
          %2774 = vmatprep.subr.mxu0 0.0
          %2775 = vmatpush1.xpose.msra.mxu0 0.0
          %2776 = vmatprep.subr.mxu0 0.0
          %2777 = vmatpush1.xpose.msra.mxu0 0.0
          %2778 = vmatprep.subr.mxu0 0.0
          %2779 = vmatpush1.xpose.msra.mxu0 0.0
          %2780 = vmatprep.subr.mxu0 0.0
          %2781 = vmatpush1.xpose.msra.mxu0 0.0
          %2782 = vmatprep.subr.mxu0 0.0
          %2783 = vmatpush1.xpose.msra.mxu0 0.0
          %2784 = vmatprep.mubr.f32.mxu0 0.0
          %2785 = vmatmul.mubr.f32.gmra.mrb[0].mxu0 %v2626
          %v2786 = vpop.f32.mrb[0].mxu0
          %v2787 = vadd.f32 0.0, %v2786
          %v2788 = vpop.f32.mrb[0].mxu0
          %2789 = vmatprep.mubr.f32.mxu0 0.0
          %2790 = vmatmul.mubr.f32.gmra.mrb[0].mxu0 %v2631
          %v2791 = vpop.f32.mrb[0].mxu0
          %v2792 = vadd.f32 0.0, %v2791
          %v2793 = vpop.f32.mrb[0].mxu0
          %2794 = vmatprep.mubr.f32.mxu0 0.0
          %2795 = vmatmul.mubr.f32.gmra.mrb[0].mxu0 %v2636
          %v2796 = vpop.f32.mrb[0].mxu0
          %v2797 = vadd.f32 0.0, %v2796
          %v2798 = vpop.f32.mrb[0].mxu0
          %2799 = vmatprep.mubr.f32.mxu0 0.0
          %2800 = vmatmul.mubr.f32.gmra.mrb[0].mxu0 %v2641
          %v2801 = vpop.f32.mrb[0].mxu0
          %v2802 = vadd.f32 0.0, %v2801
          %v2803 = vpop.f32.mrb[0].mxu0
          %2804 = vmatprep.mubr.f32.mxu0 0.0
          %2805 = vmatmul.mubr.f32.gmra.mrb[0].mxu0 %v2646
          %v2806 = vpop.f32.mrb[0].mxu0
          %v2807 = vadd.f32 0.0, %v2806
          %v2808 = vpop.f32.mrb[0].mxu0
          %2809 = vmatprep.mubr.f32.mxu0 0.0
          %2810 = vmatmul.mubr.f32.gmra.mrb[0].mxu0 %v2651
          %v2811 = vpop.f32.mrb[0].mxu0
          %v2812 = vadd.f32 0.0, %v2811
          %v2813 = vpop.f32.mrb[0].mxu0
          %2814 = vmatprep.mubr.f32.mxu0 0.0
          %2815 = vmatmul.mubr.f32.gmra.mrb[0].mxu0 %v2656
          %v2816 = vpop.f32.mrb[0].mxu0
          %v2817 = vadd.f32 0.0, %v2816
          %v2818 = vpop.f32.mrb[0].mxu0
          %2819 = vmatprep.mubr.f32.mxu0 0.0
          %2820 = vmatmul.mubr.f32.gmra.mrb[0].mxu0 %v2661
          %v2821 = vpop.f32.mrb[0].mxu0
          %v2822 = vadd.f32 0.0, %v2821
          %v2823 = vpop.f32.mrb[0].mxu0
          %2824 = vmatprep.mubr.f32.mxu0 0.0
          %2825 = vmatmul.mubr.f32.gmra.mrb[0].mxu0 %v2666
          %v2826 = vpop.f32.mrb[0].mxu0
          %v2827 = vadd.f32 0.0, %v2826
          %v2828 = vpop.f32.mrb[0].mxu0
          %2829 = vmatprep.mubr.f32.mxu0 0.0
          %2830 = vmatmul.mubr.f32.gmra.mrb[0].mxu0 %v2671
          %v2831 = vpop.f32.mrb[0].mxu0
          %v2832 = vadd.f32 0.0, %v2831
          %v2833 = vpop.f32.mrb[0].mxu0
          %2834 = vmatprep.mubr.f32.mxu0 0.0
          %2835 = vmatmul.mubr.f32.gmra.mrb[0].mxu0 %v2676
          %v2836 = vpop.f32.mrb[0].mxu0
          %v2837 = vadd.f32 0.0, %v2836
          %v2838 = vpop.f32.mrb[0].mxu0
          %2839 = vmatprep.mubr.f32.mxu0 0.0
          %2840 = vmatmul.mubr.f32.gmra.mrb[0].mxu0 %v2681
          %v2841 = vpop.f32.mrb[0].mxu0
          %v2842 = vadd.f32 0.0, %v2841
          %v2843 = vpop.f32.mrb[0].mxu0
          %2844 = vmatprep.mubr.f32.mxu0 0.0
          %2845 = vmatmul.mubr.f32.gmra.mrb[0].mxu0 %v2686
          %v2846 = vpop.f32.mrb[0].mxu0
          %v2847 = vadd.f32 0.0, %v2846
          %v2848 = vpop.f32.mrb[0].mxu0
          %2849 = vmatprep.mubr.f32.mxu0 0.0
          %2850 = vmatmul.mubr.f32.gmra.mrb[0].mxu0 %v2691
          %v2851 = vpop.f32.mrb[0].mxu0
          %v2852 = vadd.f32 0.0, %v2851
          %v2853 = vpop.f32.mrb[0].mxu0
          %2854 = vmatprep.mubr.f32.mxu0 0.0
          %2855 = vmatmul.mubr.f32.gmra.mrb[0].mxu0 %v2696
          %v2856 = vpop.f32.mrb[0].mxu0
          %v2857 = vadd.f32 0.0, %v2856
          %v2858 = vpop.f32.mrb[0].mxu0
          %2859 = vmatprep.mubr.f32.mxu0 0.0
          %2860 = vmatmul.mubr.f32.gmra.mrb[0].mxu0 %v2701
          %v2861 = vpop.f32.mrb[0].mxu0
          %v2862 = vadd.f32 0.0, %v2861
          %v2863 = vpop.f32.mrb[0].mxu0
          %2864 = vdwg.mxu0
          %s2865 = sld [smem:[#allocation3]]
          %v2866 = vstv %s2865
          %v2867 = vmul.f32 %v2787, %v2866
          %v2868 = vmul.f32 %v2792, %v2866
          %v2869 = vmul.f32 %v2797, %v2866
          %v2870 = vmul.f32 %v2802, %v2866
          %v2871 = vmul.f32 %v2807, %v2866
          %v2872 = vmul.f32 %v2812, %v2866
          %v2873 = vmul.f32 %v2817, %v2866
          %v2874 = vmul.f32 %v2822, %v2866
          %v2875 = vmul.f32 %v2827, %v2866
          %v2876 = vmul.f32 %v2832, %v2866
          %v2877 = vmul.f32 %v2837, %v2866
          %v2878 = vmul.f32 %v2842, %v2866
          %v2879 = vmul.f32 %v2847, %v2866
          %v2880 = vmul.f32 %v2852, %v2866
          %v2881 = vmul.f32 %v2857, %v2866
          %v2882 = vmul.f32 %v2862, %v2866
          %v2883 = vfloor.f32 %v2867
          %v2884 = vfloor.f32 %v2868
          %v2885 = vfloor.f32 %v2869
          %v2886 = vfloor.f32 %v2870
          %v2887 = vfloor.f32 %v2871
          %v2888 = vfloor.f32 %v2872
          %v2889 = vfloor.f32 %v2873
          %v2890 = vfloor.f32 %v2874
          %v2891 = vfloor.f32 %v2875
          %v2892 = vfloor.f32 %v2876
          %v2893 = vfloor.f32 %v2877
          %v2894 = vfloor.f32 %v2878
          %v2895 = vfloor.f32 %v2879
          %v2896 = vfloor.f32 %v2880
          %v2897 = vfloor.f32 %v2881
          %v2898 = vfloor.f32 %v2882
          %v2899 = vld [vmem:[#allocation10] sm:$0xff]
          %v2900 = vld [vmem:[#allocation10 + $0x8] sm:$0xff]
          %v2901 = vld [vmem:[#allocation10 + $0x10] sm:$0xff]
          %v2902 = vld [vmem:[#allocation10 + $0x18] sm:$0xff]
          %v2903 = vld [vmem:[#allocation10 + $0x20] sm:$0xff]
          %v2904 = vld [vmem:[#allocation10 + $0x28] sm:$0xff]
          %v2905 = vld [vmem:[#allocation10 + $0x30] sm:$0xff]
          %v2906 = vld [vmem:[#allocation10 + $0x38] sm:$0xff]
          %v2907 = vld [vmem:[#allocation10 + $0x40] sm:$0xff]
          %v2908 = vld [vmem:[#allocation10 + $0x48] sm:$0xff]
          %v2909 = vld [vmem:[#allocation10 + $0x50] sm:$0xff]
          %v2910 = vld [vmem:[#allocation10 + $0x58] sm:$0xff]
          %v2911 = vld [vmem:[#allocation10 + $0x60] sm:$0xff]
          %v2912 = vld [vmem:[#allocation10 + $0x68] sm:$0xff]
          %v2913 = vld [vmem:[#allocation10 + $0x70] sm:$0xff]
          %v2914 = vld [vmem:[#allocation10 + $0x78] sm:$0xff]
          %v2915 = vld [vmem:[#allocation10 + $0x80] sm:$0xff]
          %v2916 = vld [vmem:[#allocation10 + $0x88] sm:$0xff]
          %v2917 = vld [vmem:[#allocation10 + $0x90] sm:$0xff]
          %v2918 = vld [vmem:[#allocation10 + $0x98] sm:$0xff]
          %v2919 = vld [vmem:[#allocation10 + $0xa0] sm:$0xff]
          %v2920 = vld [vmem:[#allocation10 + $0xa8] sm:$0xff]
          %v2921 = vld [vmem:[#allocation10 + $0xb0] sm:$0xff]
          %v2922 = vld [vmem:[#allocation10 + $0xb8] sm:$0xff]
          %v2923 = vld [vmem:[#allocation10 + $0xc0] sm:$0xff]
          %v2924 = vld [vmem:[#allocation10 + $0xc8] sm:$0xff]
          %v2925 = vld [vmem:[#allocation10 + $0xd0] sm:$0xff]
          %v2926 = vld [vmem:[#allocation10 + $0xd8] sm:$0xff]
          %v2927 = vld [vmem:[#allocation10 + $0xe0] sm:$0xff]
          %v2928 = vld [vmem:[#allocation10 + $0xe8] sm:$0xff]
          %v2929 = vld [vmem:[#allocation10 + $0xf0] sm:$0xff]
          %v2930 = vld [vmem:[#allocation10 + $0xf8] sm:$0xff]
          %v2931 = vld [vmem:[%s4] sm:$0xff]
          %v2932 = vld [vmem:[%s4 + $0x8] sm:$0xff]
          %v2933 = vld [vmem:[%s4 + $0x10] sm:$0xff]
          %v2934 = vld [vmem:[%s4 + $0x18] sm:$0xff]
          %v2935 = vld [vmem:[%s4 + $0x20] sm:$0xff]
          %v2936 = vld [vmem:[%s4 + $0x28] sm:$0xff]
          %v2937 = vld [vmem:[%s4 + $0x30] sm:$0xff]
          %v2938 = vld [vmem:[%s4 + $0x38] sm:$0xff]
          %v2939 = vld [vmem:[%s4 + $0x40] sm:$0xff]
          %v2940 = vld [vmem:[%s4 + $0x48] sm:$0xff]
          %v2941 = vld [vmem:[%s4 + $0x50] sm:$0xff]
          %v2942 = vld [vmem:[%s4 + $0x58] sm:$0xff]
          %v2943 = vld [vmem:[%s4 + $0x60] sm:$0xff]
          %v2944 = vld [vmem:[%s4 + $0x68] sm:$0xff]
          %v2945 = vld [vmem:[%s4 + $0x70] sm:$0xff]
          %v2946 = vld [vmem:[%s4 + $0x78] sm:$0xff]
          %v2947 = vld [vmem:[%s4 + $0x80] sm:$0xff]
          %v2948 = vld [vmem:[%s4 + $0x88] sm:$0xff]
          %v2949 = vld [vmem:[%s4 + $0x90] sm:$0xff]
          %v2950 = vld [vmem:[%s4 + $0x98] sm:$0xff]
          %v2951 = vld [vmem:[%s4 + $0xa0] sm:$0xff]
          %v2952 = vld [vmem:[%s4 + $0xa8] sm:$0xff]
          %v2953 = vld [vmem:[%s4 + $0xb0] sm:$0xff]
          %v2954 = vld [vmem:[%s4 + $0xb8] sm:$0xff]
          %v2955 = vld [vmem:[%s4 + $0xc0] sm:$0xff]
          %v2956 = vld [vmem:[%s4 + $0xc8] sm:$0xff]
          %v2957 = vld [vmem:[%s4 + $0xd0] sm:$0xff]
          %v2958 = vld [vmem:[%s4 + $0xd8] sm:$0xff]
          %v2959 = vld [vmem:[%s4 + $0xe0] sm:$0xff]
          %v2960 = vld [vmem:[%s4 + $0xe8] sm:$0xff]
          %v2961 = vld [vmem:[%s4 + $0xf0] sm:$0xff]
          %v2962 = vld [vmem:[%s4 + $0xf8] sm:$0xff]
          %2964 = vset.pattern.permute.xlu0 0
          %2965 = vperm.xlu0 %2964, %v2931
          %v2966 = vpop.permute.xlu0 %2965
          %2969 = vset.pattern.permute.xlu0 0
          %2970 = vperm.xlu0 %2969, %v2932
          %v2971 = vpop.permute.xlu0 %2970
          %2974 = vset.pattern.permute.xlu0 0
          %2975 = vperm.xlu0 %2974, %v2933
          %v2976 = vpop.permute.xlu0 %2975
          %2979 = vset.pattern.permute.xlu0 0
          %2980 = vperm.xlu0 %2979, %v2934
          %v2981 = vpop.permute.xlu0 %2980
          %2984 = vset.pattern.permute.xlu0 0
          %2985 = vperm.xlu0 %2984, %v2935
          %v2986 = vpop.permute.xlu0 %2985
          %2989 = vset.pattern.permute.xlu0 0
          %2990 = vperm.xlu0 %2989, %v2936
          %v2991 = vpop.permute.xlu0 %2990
          %2994 = vset.pattern.permute.xlu0 0
          %2995 = vperm.xlu0 %2994, %v2937
          %v2996 = vpop.permute.xlu0 %2995
          %2999 = vset.pattern.permute.xlu0 0
          %3000 = vperm.xlu0 %2999, %v2938
          %v3001 = vpop.permute.xlu0 %3000
          %3004 = vset.pattern.permute.xlu0 0
          %3005 = vperm.xlu0 %3004, %v2939
          %v3006 = vpop.permute.xlu0 %3005
          %3009 = vset.pattern.permute.xlu0 0
          %3010 = vperm.xlu0 %3009, %v2940
          %v3011 = vpop.permute.xlu0 %3010
          %3014 = vset.pattern.permute.xlu0 0
          %3015 = vperm.xlu0 %3014, %v2941
          %v3016 = vpop.permute.xlu0 %3015
          %3019 = vset.pattern.permute.xlu0 0
          %3020 = vperm.xlu0 %3019, %v2942
          %v3021 = vpop.permute.xlu0 %3020
          %3024 = vset.pattern.permute.xlu0 0
          %3025 = vperm.xlu0 %3024, %v2943
          %v3026 = vpop.permute.xlu0 %3025
          %3029 = vset.pattern.permute.xlu0 0
          %3030 = vperm.xlu0 %3029, %v2944
          %v3031 = vpop.permute.xlu0 %3030
          %3034 = vset.pattern.permute.xlu0 0
          %3035 = vperm.xlu0 %3034, %v2945
          %v3036 = vpop.permute.xlu0 %3035
          %3039 = vset.pattern.permute.xlu0 0
          %3040 = vperm.xlu0 %3039, %v2946
          %v3041 = vpop.permute.xlu0 %3040
          %3044 = vset.pattern.permute.xlu0 0
          %3045 = vperm.xlu0 %3044, %v2947
          %v3046 = vpop.permute.xlu0 %3045
          %3049 = vset.pattern.permute.xlu0 0
          %3050 = vperm.xlu0 %3049, %v2948
          %v3051 = vpop.permute.xlu0 %3050
          %3054 = vset.pattern.permute.xlu0 0
          %3055 = vperm.xlu0 %3054, %v2949
          %v3056 = vpop.permute.xlu0 %3055
          %3059 = vset.pattern.permute.xlu0 0
          %3060 = vperm.xlu0 %3059, %v2950
          %v3061 = vpop.permute.xlu0 %3060
          %3064 = vset.pattern.permute.xlu0 0
          %3065 = vperm.xlu0 %3064, %v2951
          %v3066 = vpop.permute.xlu0 %3065
          %3069 = vset.pattern.permute.xlu0 0
          %3070 = vperm.xlu0 %3069, %v2952
          %v3071 = vpop.permute.xlu0 %3070
          %3074 = vset.pattern.permute.xlu0 0
          %3075 = vperm.xlu0 %3074, %v2953
          %v3076 = vpop.permute.xlu0 %3075
          %3079 = vset.pattern.permute.xlu0 0
          %3080 = vperm.xlu0 %3079, %v2954
          %v3081 = vpop.permute.xlu0 %3080
          %3084 = vset.pattern.permute.xlu0 0
          %3085 = vperm.xlu0 %3084, %v2955
          %v3086 = vpop.permute.xlu0 %3085
          %3089 = vset.pattern.permute.xlu0 0
          %3090 = vperm.xlu0 %3089, %v2956
          %v3091 = vpop.permute.xlu0 %3090
          %3094 = vset.pattern.permute.xlu0 0
          %3095 = vperm.xlu0 %3094, %v2957
          %v3096 = vpop.permute.xlu0 %3095
          %3099 = vset.pattern.permute.xlu0 0
          %3100 = vperm.xlu0 %3099, %v2958
          %v3101 = vpop.permute.xlu0 %3100
          %3104 = vset.pattern.permute.xlu0 0
          %3105 = vperm.xlu0 %3104, %v2959
          %v3106 = vpop.permute.xlu0 %3105
          %3109 = vset.pattern.permute.xlu0 0
          %3110 = vperm.xlu0 %3109, %v2960
          %v3111 = vpop.permute.xlu0 %3110
          %3114 = vset.pattern.permute.xlu0 0
          %3115 = vperm.xlu0 %3114, %v2961
          %v3116 = vpop.permute.xlu0 %3115
          %3119 = vset.pattern.permute.xlu0 0
          %3120 = vperm.xlu0 %3119, %v2962
          %v3121 = vpop.permute.xlu0 %3120
          %3123 = vmatprep.subr.mxu0 0.0
          %3124 = vmatpush1.msra.mxu0 %v2883
          %3125 = vmatprep.subr.mxu0 0.0
          %3126 = vmatpush1.msra.mxu0 %v2884
          %3127 = vmatprep.subr.mxu0 0.0
          %3128 = vmatpush1.msra.mxu0 %v2885
          %3129 = vmatprep.subr.mxu0 0.0
          %3130 = vmatpush1.msra.mxu0 %v2886
          %3131 = vmatprep.subr.mxu0 0.0
          %3132 = vmatpush1.msra.mxu0 %v2887
          %3133 = vmatprep.subr.mxu0 0.0
          %3134 = vmatpush1.msra.mxu0 %v2888
          %3135 = vmatprep.subr.mxu0 0.0
          %3136 = vmatpush1.msra.mxu0 %v2889
          %3137 = vmatprep.subr.mxu0 0.0
          %3138 = vmatpush1.msra.mxu0 %v2890
          %3139 = vmatprep.subr.mxu0 0.0
          %3140 = vmatpush1.msra.mxu0 %v2891
          %3141 = vmatprep.subr.mxu0 0.0
          %3142 = vmatpush1.msra.mxu0 %v2892
          %3143 = vmatprep.subr.mxu0 0.0
          %3144 = vmatpush1.msra.mxu0 %v2893
          %3145 = vmatprep.subr.mxu0 0.0
          %3146 = vmatpush1.msra.mxu0 %v2894
          %3147 = vmatprep.subr.mxu0 0.0
          %3148 = vmatpush1.msra.mxu0 %v2895
          %3149 = vmatprep.subr.mxu0 0.0
          %3150 = vmatpush1.msra.mxu0 %v2896
          %3151 = vmatprep.subr.mxu0 0.0
          %3152 = vmatpush1.msra.mxu0 %v2897
          %3153 = vmatprep.subr.mxu0 0.0
          %3154 = vmatpush1.msra.mxu0 %v2898
          %3155 = vmatprep.subr.mxu0 0.0
          %3156 = vmatpush1.msra.mxu0 0.0
          %3157 = vmatprep.subr.mxu0 0.0
          %3158 = vmatpush1.msra.mxu0 0.0
          %3159 = vmatprep.subr.mxu0 0.0
          %3160 = vmatpush1.msra.mxu0 0.0
          %3161 = vmatprep.subr.mxu0 0.0
          %3162 = vmatpush1.msra.mxu0 0.0
          %3163 = vmatprep.subr.mxu0 0.0
          %3164 = vmatpush1.msra.mxu0 0.0
          %3165 = vmatprep.subr.mxu0 0.0
          %3166 = vmatpush1.msra.mxu0 0.0
          %3167 = vmatprep.subr.mxu0 0.0
          %3168 = vmatpush1.msra.mxu0 0.0
          %3169 = vmatprep.subr.mxu0 0.0
          %3170 = vmatpush1.msra.mxu0 0.0
          %3171 = vmatprep.subr.mxu0 0.0
          %3172 = vmatpush1.msra.mxu0 0.0
          %3173 = vmatprep.subr.mxu0 0.0
          %3174 = vmatpush1.msra.mxu0 0.0
          %3175 = vmatprep.subr.mxu0 0.0
          %3176 = vmatpush1.msra.mxu0 0.0
          %3177 = vmatprep.subr.mxu0 0.0
          %3178 = vmatpush1.msra.mxu0 0.0
          %3179 = vmatprep.subr.mxu0 0.0
          %3180 = vmatpush1.msra.mxu0 0.0
          %3181 = vmatprep.subr.mxu0 0.0
          %3182 = vmatpush1.msra.mxu0 0.0
          %3183 = vmatprep.subr.mxu0 0.0
          %3184 = vmatpush1.msra.mxu0 0.0
          %3185 = vmatprep.subr.mxu0 0.0
          %3186 = vmatpush1.msra.mxu0 0.0
          %3187 = vmatprep.mubr.f32.mxu0 0.0
          %3188 = vmatmul.mubr.f32.gmra.mrb[0].mxu0 %v2899
          %v3189 = vpop.f32.mrb[0].mxu0
          %v3190 = vadd.f32 %v2966, %v3189
          %v3191 = vpop.f32.mrb[0].mxu0
          %3192 = vmatprep.mubr.f32.mxu0 0.0
          %3193 = vmatmul.mubr.f32.gmra.mrb[0].mxu0 %v2900
          %v3194 = vpop.f32.mrb[0].mxu0
          %v3195 = vadd.f32 %v2971, %v3194
          %v3196 = vpop.f32.mrb[0].mxu0
          %3197 = vmatprep.mubr.f32.mxu0 0.0
          %3198 = vmatmul.mubr.f32.gmra.mrb[0].mxu0 %v2901
          %v3199 = vpop.f32.mrb[0].mxu0
          %v3200 = vadd.f32 %v2976, %v3199
          %v3201 = vpop.f32.mrb[0].mxu0
          %3202 = vmatprep.mubr.f32.mxu0 0.0
          %3203 = vmatmul.mubr.f32.gmra.mrb[0].mxu0 %v2902
          %v3204 = vpop.f32.mrb[0].mxu0
          %v3205 = vadd.f32 %v2981, %v3204
          %v3206 = vpop.f32.mrb[0].mxu0
          %3207 = vmatprep.mubr.f32.mxu0 0.0
          %3208 = vmatmul.mubr.f32.gmra.mrb[0].mxu0 %v2903
          %v3209 = vpop.f32.mrb[0].mxu0
          %v3210 = vadd.f32 %v2986, %v3209
          %v3211 = vpop.f32.mrb[0].mxu0
          %3212 = vmatprep.mubr.f32.mxu0 0.0
          %3213 = vmatmul.mubr.f32.gmra.mrb[0].mxu0 %v2904
          %v3214 = vpop.f32.mrb[0].mxu0
          %v3215 = vadd.f32 %v2991, %v3214
          %v3216 = vpop.f32.mrb[0].mxu0
          %3217 = vmatprep.mubr.f32.mxu0 0.0
          %3218 = vmatmul.mubr.f32.gmra.mrb[0].mxu0 %v2905
          %v3219 = vpop.f32.mrb[0].mxu0
          %v3220 = vadd.f32 %v2996, %v3219
          %v3221 = vpop.f32.mrb[0].mxu0
          %3222 = vmatprep.mubr.f32.mxu0 0.0
          %3223 = vmatmul.mubr.f32.gmra.mrb[0].mxu0 %v2906
          %v3224 = vpop.f32.mrb[0].mxu0
          %v3225 = vadd.f32 %v3001, %v3224
          %v3226 = vpop.f32.mrb[0].mxu0
          %3227 = vmatprep.mubr.f32.mxu0 0.0
          %3228 = vmatmul.mubr.f32.gmra.mrb[0].mxu0 %v2907
          %v3229 = vpop.f32.mrb[0].mxu0
          %v3230 = vadd.f32 %v3006, %v3229
          %v3231 = vpop.f32.mrb[0].mxu0
          %3232 = vmatprep.mubr.f32.mxu0 0.0
          %3233 = vmatmul.mubr.f32.gmra.mrb[0].mxu0 %v2908
          %v3234 = vpop.f32.mrb[0].mxu0
          %v3235 = vadd.f32 %v3011, %v3234
          %v3236 = vpop.f32.mrb[0].mxu0
          %3237 = vmatprep.mubr.f32.mxu0 0.0
          %3238 = vmatmul.mubr.f32.gmra.mrb[0].mxu0 %v2909
          %v3239 = vpop.f32.mrb[0].mxu0
          %v3240 = vadd.f32 %v3016, %v3239
          %v3241 = vpop.f32.mrb[0].mxu0
          %3242 = vmatprep.mubr.f32.mxu0 0.0
          %3243 = vmatmul.mubr.f32.gmra.mrb[0].mxu0 %v2910
          %v3244 = vpop.f32.mrb[0].mxu0
          %v3245 = vadd.f32 %v3021, %v3244
          %v3246 = vpop.f32.mrb[0].mxu0
          %3247 = vmatprep.mubr.f32.mxu0 0.0
          %3248 = vmatmul.mubr.f32.gmra.mrb[0].mxu0 %v2911
          %v3249 = vpop.f32.mrb[0].mxu0
          %v3250 = vadd.f32 %v3026, %v3249
          %v3251 = vpop.f32.mrb[0].mxu0
          %3252 = vmatprep.mubr.f32.mxu0 0.0
          %3253 = vmatmul.mubr.f32.gmra.mrb[0].mxu0 %v2912
          %v3254 = vpop.f32.mrb[0].mxu0
          %v3255 = vadd.f32 %v3031, %v3254
          %v3256 = vpop.f32.mrb[0].mxu0
          %3257 = vmatprep.mubr.f32.mxu0 0.0
          %3258 = vmatmul.mubr.f32.gmra.mrb[0].mxu0 %v2913
          %v3259 = vpop.f32.mrb[0].mxu0
          %v3260 = vadd.f32 %v3036, %v3259
          %v3261 = vpop.f32.mrb[0].mxu0
          %3262 = vmatprep.mubr.f32.mxu0 0.0
          %3263 = vmatmul.mubr.f32.gmra.mrb[0].mxu0 %v2914
          %v3264 = vpop.f32.mrb[0].mxu0
          %v3265 = vadd.f32 %v3041, %v3264
          %v3266 = vpop.f32.mrb[0].mxu0
          %3267 = vmatprep.mubr.f32.mxu0 0.0
          %3268 = vmatmul.mubr.f32.gmra.mrb[0].mxu0 %v2915
          %v3269 = vpop.f32.mrb[0].mxu0
          %v3270 = vadd.f32 %v3046, %v3269
          %v3271 = vpop.f32.mrb[0].mxu0
          %3272 = vmatprep.mubr.f32.mxu0 0.0
          %3273 = vmatmul.mubr.f32.gmra.mrb[0].mxu0 %v2916
          %v3274 = vpop.f32.mrb[0].mxu0
          %v3275 = vadd.f32 %v3051, %v3274
          %v3276 = vpop.f32.mrb[0].mxu0
          %3277 = vmatprep.mubr.f32.mxu0 0.0
          %3278 = vmatmul.mubr.f32.gmra.mrb[0].mxu0 %v2917
          %v3279 = vpop.f32.mrb[0].mxu0
          %v3280 = vadd.f32 %v3056, %v3279
          %v3281 = vpop.f32.mrb[0].mxu0
          %3282 = vmatprep.mubr.f32.mxu0 0.0
          %3283 = vmatmul.mubr.f32.gmra.mrb[0].mxu0 %v2918
          %v3284 = vpop.f32.mrb[0].mxu0
          %v3285 = vadd.f32 %v3061, %v3284
          %v3286 = vpop.f32.mrb[0].mxu0
          %3287 = vmatprep.mubr.f32.mxu0 0.0
          %3288 = vmatmul.mubr.f32.gmra.mrb[0].mxu0 %v2919
          %v3289 = vpop.f32.mrb[0].mxu0
          %v3290 = vadd.f32 %v3066, %v3289
          %v3291 = vpop.f32.mrb[0].mxu0
          %3292 = vmatprep.mubr.f32.mxu0 0.0
          %3293 = vmatmul.mubr.f32.gmra.mrb[0].mxu0 %v2920
          %v3294 = vpop.f32.mrb[0].mxu0
          %v3295 = vadd.f32 %v3071, %v3294
          %v3296 = vpop.f32.mrb[0].mxu0
          %3297 = vmatprep.mubr.f32.mxu0 0.0
          %3298 = vmatmul.mubr.f32.gmra.mrb[0].mxu0 %v2921
          %v3299 = vpop.f32.mrb[0].mxu0
          %v3300 = vadd.f32 %v3076, %v3299
          %v3301 = vpop.f32.mrb[0].mxu0
          %3302 = vmatprep.mubr.f32.mxu0 0.0
          %3303 = vmatmul.mubr.f32.gmra.mrb[0].mxu0 %v2922
          %v3304 = vpop.f32.mrb[0].mxu0
          %v3305 = vadd.f32 %v3081, %v3304
          %v3306 = vpop.f32.mrb[0].mxu0
          %3307 = vmatprep.mubr.f32.mxu0 0.0
          %3308 = vmatmul.mubr.f32.gmra.mrb[0].mxu0 %v2923
          %v3309 = vpop.f32.mrb[0].mxu0
          %v3310 = vadd.f32 %v3086, %v3309
          %v3311 = vpop.f32.mrb[0].mxu0
          %3312 = vmatprep.mubr.f32.mxu0 0.0
          %3313 = vmatmul.mubr.f32.gmra.mrb[0].mxu0 %v2924
          %v3314 = vpop.f32.mrb[0].mxu0
          %v3315 = vadd.f32 %v3091, %v3314
          %v3316 = vpop.f32.mrb[0].mxu0
          %3317 = vmatprep.mubr.f32.mxu0 0.0
          %3318 = vmatmul.mubr.f32.gmra.mrb[0].mxu0 %v2925
          %v3319 = vpop.f32.mrb[0].mxu0
          %v3320 = vadd.f32 %v3096, %v3319
          %v3321 = vpop.f32.mrb[0].mxu0
          %3322 = vmatprep.mubr.f32.mxu0 0.0
          %3323 = vmatmul.mubr.f32.gmra.mrb[0].mxu0 %v2926
          %v3324 = vpop.f32.mrb[0].mxu0
          %v3325 = vadd.f32 %v3101, %v3324
          %v3326 = vpop.f32.mrb[0].mxu0
          %3327 = vmatprep.mubr.f32.mxu0 0.0
          %3328 = vmatmul.mubr.f32.gmra.mrb[0].mxu0 %v2927
          %v3329 = vpop.f32.mrb[0].mxu0
          %v3330 = vadd.f32 %v3106, %v3329
          %v3331 = vpop.f32.mrb[0].mxu0
          %3332 = vmatprep.mubr.f32.mxu0 0.0
          %3333 = vmatmul.mubr.f32.gmra.mrb[0].mxu0 %v2928
          %v3334 = vpop.f32.mrb[0].mxu0
          %v3335 = vadd.f32 %v3111, %v3334
          %v3336 = vpop.f32.mrb[0].mxu0
          %3337 = vmatprep.mubr.f32.mxu0 0.0
          %3338 = vmatmul.mubr.f32.gmra.mrb[0].mxu0 %v2929
          %v3339 = vpop.f32.mrb[0].mxu0
          %v3340 = vadd.f32 %v3116, %v3339
          %v3341 = vpop.f32.mrb[0].mxu0
          %3342 = vmatprep.mubr.f32.mxu0 0.0
          %3343 = vmatmul.mubr.f32.gmra.mrb[0].mxu0 %v2930
          %v3344 = vpop.f32.mrb[0].mxu0
          %v3345 = vadd.f32 %v3121, %v3344
          %v3346 = vpop.f32.mrb[0].mxu0
          %3347 = vdwg.mxu0
          %vm3348 = vcmp.gt.f32.partialorder %v3190, 0.0
          %vm3349 = vcmp.gt.f32.partialorder %v3195, 0.0
          %vm3350 = vcmp.gt.f32.partialorder %v3200, 0.0
          %vm3351 = vcmp.gt.f32.partialorder %v3205, 0.0
          %vm3352 = vcmp.gt.f32.partialorder %v3210, 0.0
          %vm3353 = vcmp.gt.f32.partialorder %v3215, 0.0
          %vm3354 = vcmp.gt.f32.partialorder %v3220, 0.0
          %vm3355 = vcmp.gt.f32.partialorder %v3225, 0.0
          %vm3356 = vcmp.gt.f32.partialorder %v3230, 0.0
          %vm3357 = vcmp.gt.f32.partialorder %v3235, 0.0
          %vm3358 = vcmp.gt.f32.partialorder %v3240, 0.0
          %vm3359 = vcmp.gt.f32.partialorder %v3245, 0.0
          %vm3360 = vcmp.gt.f32.partialorder %v3250, 0.0
          %vm3361 = vcmp.gt.f32.partialorder %v3255, 0.0
          %vm3362 = vcmp.gt.f32.partialorder %v3260, 0.0
          %vm3363 = vcmp.gt.f32.partialorder %v3265, 0.0
          %vm3364 = vcmp.gt.f32.partialorder %v3270, 0.0
          %vm3365 = vcmp.gt.f32.partialorder %v3275, 0.0
          %vm3366 = vcmp.gt.f32.partialorder %v3280, 0.0
          %vm3367 = vcmp.gt.f32.partialorder %v3285, 0.0
          %vm3368 = vcmp.gt.f32.partialorder %v3290, 0.0
          %vm3369 = vcmp.gt.f32.partialorder %v3295, 0.0
          %vm3370 = vcmp.gt.f32.partialorder %v3300, 0.0
          %vm3371 = vcmp.gt.f32.partialorder %v3305, 0.0
          %vm3372 = vcmp.gt.f32.partialorder %v3310, 0.0
          %vm3373 = vcmp.gt.f32.partialorder %v3315, 0.0
          %vm3374 = vcmp.gt.f32.partialorder %v3320, 0.0
          %vm3375 = vcmp.gt.f32.partialorder %v3325, 0.0
          %vm3376 = vcmp.gt.f32.partialorder %v3330, 0.0
          %vm3377 = vcmp.gt.f32.partialorder %v3335, 0.0
          %vm3378 = vcmp.gt.f32.partialorder %v3340, 0.0
          %vm3379 = vcmp.gt.f32.partialorder %v3345, 0.0
          %v3380 = vmul.f32 %v3190, 0.01
          %v3381 = vmul.f32 %v3195, 0.01
          %v3382 = vmul.f32 %v3200, 0.01
          %v3383 = vmul.f32 %v3205, 0.01
          %v3384 = vmul.f32 %v3210, 0.01
          %v3385 = vmul.f32 %v3215, 0.01
          %v3386 = vmul.f32 %v3220, 0.01
          %v3387 = vmul.f32 %v3225, 0.01
          %v3388 = vmul.f32 %v3230, 0.01
          %v3389 = vmul.f32 %v3235, 0.01
          %v3390 = vmul.f32 %v3240, 0.01
          %v3391 = vmul.f32 %v3245, 0.01
          %v3392 = vmul.f32 %v3250, 0.01
          %v3393 = vmul.f32 %v3255, 0.01
          %v3394 = vmul.f32 %v3260, 0.01
          %v3395 = vmul.f32 %v3265, 0.01
          %v3396 = vmul.f32 %v3270, 0.01
          %v3397 = vmul.f32 %v3275, 0.01
          %v3398 = vmul.f32 %v3280, 0.01
          %v3399 = vmul.f32 %v3285, 0.01
          %v3400 = vmul.f32 %v3290, 0.01
          %v3401 = vmul.f32 %v3295, 0.01
          %v3402 = vmul.f32 %v3300, 0.01
          %v3403 = vmul.f32 %v3305, 0.01
          %v3404 = vmul.f32 %v3310, 0.01
          %v3405 = vmul.f32 %v3315, 0.01
          %v3406 = vmul.f32 %v3320, 0.01
          %v3407 = vmul.f32 %v3325, 0.01
          %v3408 = vmul.f32 %v3330, 0.01
          %v3409 = vmul.f32 %v3335, 0.01
          %v3410 = vmul.f32 %v3340, 0.01
          %v3411 = vmul.f32 %v3345, 0.01
          %v3412 = vsel %vm3348, %v3190, %v3380
          %v3413 = vsel %vm3349, %v3195, %v3381
          %v3414 = vsel %vm3350, %v3200, %v3382
          %v3415 = vsel %vm3351, %v3205, %v3383
          %v3416 = vsel %vm3352, %v3210, %v3384
          %v3417 = vsel %vm3353, %v3215, %v3385
          %v3418 = vsel %vm3354, %v3220, %v3386
          %v3419 = vsel %vm3355, %v3225, %v3387
          %v3420 = vsel %vm3356, %v3230, %v3388
          %v3421 = vsel %vm3357, %v3235, %v3389
          %v3422 = vsel %vm3358, %v3240, %v3390
          %v3423 = vsel %vm3359, %v3245, %v3391
          %v3424 = vsel %vm3360, %v3250, %v3392
          %v3425 = vsel %vm3361, %v3255, %v3393
          %v3426 = vsel %vm3362, %v3260, %v3394
          %v3427 = vsel %vm3363, %v3265, %v3395
          %v3428 = vsel %vm3364, %v3270, %v3396
          %v3429 = vsel %vm3365, %v3275, %v3397
          %v3430 = vsel %vm3366, %v3280, %v3398
          %v3431 = vsel %vm3367, %v3285, %v3399
          %v3432 = vsel %vm3368, %v3290, %v3400
          %v3433 = vsel %vm3369, %v3295, %v3401
          %v3434 = vsel %vm3370, %v3300, %v3402
          %v3435 = vsel %vm3371, %v3305, %v3403
          %v3436 = vsel %vm3372, %v3310, %v3404
          %v3437 = vsel %vm3373, %v3315, %v3405
          %v3438 = vsel %vm3374, %v3320, %v3406
          %v3439 = vsel %vm3375, %v3325, %v3407
          %v3440 = vsel %vm3376, %v3330, %v3408
          %v3441 = vsel %vm3377, %v3335, %v3409
          %v3442 = vsel %vm3378, %v3340, %v3410
          %v3443 = vsel %vm3379, %v3345, %v3411
          %v3444 = vld [vmem:[#allocation12] sm:$0xff]
          %v3445 = vld [vmem:[#allocation12 + $0x8] sm:$0xff]
          %v3446 = vld [vmem:[%s6] sm:$0xff]
          %3448 = vset.pattern.permute.xlu0 0
          %3449 = vperm.xlu0 %3448, %v3446
          %v3450 = vpop.permute.xlu0 %3449
          %3452 = vmatprep.subr.mxu0 0.0
          %3453 = vmatpush1.msra.mxu0 %v3412
          %3454 = vmatprep.subr.mxu0 0.0
          %3455 = vmatpush1.msra.mxu0 %v3413
          %3456 = vmatprep.subr.mxu0 0.0
          %3457 = vmatpush1.msra.mxu0 %v3414
          %3458 = vmatprep.subr.mxu0 0.0
          %3459 = vmatpush1.msra.mxu0 %v3415
          %3460 = vmatprep.subr.mxu0 0.0
          %3461 = vmatpush1.msra.mxu0 %v3416
          %3462 = vmatprep.subr.mxu0 0.0
          %3463 = vmatpush1.msra.mxu0 %v3417
          %3464 = vmatprep.subr.mxu0 0.0
          %3465 = vmatpush1.msra.mxu0 %v3418
          %3466 = vmatprep.subr.mxu0 0.0
          %3467 = vmatpush1.msra.mxu0 %v3419
          %3468 = vmatprep.subr.mxu0 0.0
          %3469 = vmatpush1.msra.mxu0 %v3420
          %3470 = vmatprep.subr.mxu0 0.0
          %3471 = vmatpush1.msra.mxu0 %v3421
          %3472 = vmatprep.subr.mxu0 0.0
          %3473 = vmatpush1.msra.mxu0 %v3422
          %3474 = vmatprep.subr.mxu0 0.0
          %3475 = vmatpush1.msra.mxu0 %v3423
          %3476 = vmatprep.subr.mxu0 0.0
          %3477 = vmatpush1.msra.mxu0 %v3424
          %3478 = vmatprep.subr.mxu0 0.0
          %3479 = vmatpush1.msra.mxu0 %v3425
          %3480 = vmatprep.subr.mxu0 0.0
          %3481 = vmatpush1.msra.mxu0 %v3426
          %3482 = vmatprep.subr.mxu0 0.0
          %3483 = vmatpush1.msra.mxu0 %v3427
          %3484 = vmatprep.subr.mxu0 0.0
          %3485 = vmatpush1.msra.mxu0 %v3428
          %3486 = vmatprep.subr.mxu0 0.0
          %3487 = vmatpush1.msra.mxu0 %v3429
          %3488 = vmatprep.subr.mxu0 0.0
          %3489 = vmatpush1.msra.mxu0 %v3430
          %3490 = vmatprep.subr.mxu0 0.0
          %3491 = vmatpush1.msra.mxu0 %v3431
          %3492 = vmatprep.subr.mxu0 0.0
          %3493 = vmatpush1.msra.mxu0 %v3432
          %3494 = vmatprep.subr.mxu0 0.0
          %3495 = vmatpush1.msra.mxu0 %v3433
          %3496 = vmatprep.subr.mxu0 0.0
          %3497 = vmatpush1.msra.mxu0 %v3434
          %3498 = vmatprep.subr.mxu0 0.0
          %3499 = vmatpush1.msra.mxu0 %v3435
          %3500 = vmatprep.subr.mxu0 0.0
          %3501 = vmatpush1.msra.mxu0 %v3436
          %3502 = vmatprep.subr.mxu0 0.0
          %3503 = vmatpush1.msra.mxu0 %v3437
          %3504 = vmatprep.subr.mxu0 0.0
          %3505 = vmatpush1.msra.mxu0 %v3438
          %3506 = vmatprep.subr.mxu0 0.0
          %3507 = vmatpush1.msra.mxu0 %v3439
          %3508 = vmatprep.subr.mxu0 0.0
          %3509 = vmatpush1.msra.mxu0 %v3440
          %3510 = vmatprep.subr.mxu0 0.0
          %3511 = vmatpush1.msra.mxu0 %v3441
          %3512 = vmatprep.subr.mxu0 0.0
          %3513 = vmatpush1.msra.mxu0 %v3442
          %3514 = vmatprep.subr.mxu0 0.0
          %3515 = vmatpush1.msra.mxu0 %v3443
          %3516 = vmatprep.mubr.f32.mxu0 %v3445
          %3517 = vmatmul.mubr.f32.gmra.mrb[0].mxu0 %v3444
          %v3518 = vpop.f32.mrb[0].mxu0
          %v3519 = vadd.f32 %v3450, %v3518
          %v3520 = vpop.f32.mrb[0].mxu0
          %3521 = vdwg.mxu0
          %v3522 = vrot.slane %v3519, 4
          %v3523 = vmax.f32 %v3519, %v3522
          %v3524 = vrot.slane %v3523, 2
          %v3525 = vmax.f32 %v3523, %v3524
          %v3526 = vrot.slane %v3525, 1
          %v3527 = vmax.f32 %v3525, %v3526
          %v3528 = vsub.f32 %v3519, %v3527
          %v3529 = vmul.f32 %v3528, 1.442695
          %v3530 = vpow.pop %v3529
          %v3531 = vrot.slane %v3530, 4
          %v3532 = vadd.f32 %v3530, %v3531
          %v3533 = vrot.slane %v3532, 2
          %v3534 = vadd.f32 %v3532, %v3533
          %v3535 = vrot.slane %v3534, 1
          %v3536 = vadd.f32 %v3534, %v3535
          %v3537 = vrcp.pop %v3536
          %v3538 = vmul.f32 %v3530, %v3537
          %3539 = vst [vmem:[%s396] sm:$0xff] %v3538
        $region80: #{tpu_custom_call.1} parent=51 // pred_fallthru
          _
        %s3540 = sand.u32 %s223, 1
        %s3541 = scalar_lea.sflag [#allocation6], %s3540
        %s3542 = sand.u32 %s223, 1
        %s3543 = smul.addr %s3542, 8
        %s3544 = scalar_lea.vmem [#allocation13], %s3543
        // Predicated region
        $region81: #{tpu_custom_call.1} parent=51 // pred_check
          %p3545 = pneg %p233
        $region82: #{tpu_custom_call.1} parent=51 // pred_check_branch
          %3547 = sbr.rel (%p3545) target = $region84
        $region83: #{tpu_custom_call.1} parent=51 // pred_region
          %s3549 = ssub.s32 128, 128
          %3550 = vsyncadd %s3541, %s3549
          %s3551 = smul.addr %s32, 128
          %s3552 = scalar_lea.hbm %s8, %s3551
          %s3554 = sshll.u32 %s3544, 4
          %s3555 = int_to_ptr.vmem [resolvable:$true] %s3554
          %3557 = dma.vmem_to_hbm [thread:$0]  %s3555, 128, %s3552, %s3541
        $region84: #{tpu_custom_call.1} parent=51 // pred_fallthru
          _
      $region52: #{tpu_custom_call.1} parent=5 // pred_fallthru
        _
      %p3558 = scmp.le.s32.totalorder 2, %s23
      // Predicated region
      $region85: #{tpu_custom_call.1} parent=5 // pred_check
        %p3559 = pneg %p3558
      $region86: #{tpu_custom_call.1} parent=5 // pred_check_branch
        %3561 = sbr.rel (%p3559) target = $region88
      $region87: #{tpu_custom_call.1} parent=5 // pred_region
        %s3562 = ssub.s32 %s23, 2
        // Predicated region
        $region89: #{tpu_custom_call.1} parent=87 // pred_check
          %p3563 = pneg %p239
        $region90: #{tpu_custom_call.1} parent=87 // pred_check_branch
          %3565 = sbr.rel (%p3563) target = $region92
        $region91: #{tpu_custom_call.1} parent=87 // pred_region
          %s3566 = sand.u32 %s224, 1
          %s3567 = scalar_lea.sflag [#allocation6], %s3566
          %s3568 = sand.u32 %s224, 1
          %s3569 = smul.addr %s3568, 8
          %s3570 = scalar_lea.vmem [#allocation13], %s3569
          %3571 = dma.done %s3567, 128
        $region92: #{tpu_custom_call.1} parent=87 // pred_fallthru
          _
      $region88: #{tpu_custom_call.1} parent=5 // pred_fallthru
        _
    $region6: #{tpu_custom_call.1} parent=1 // loop_footer
      %s27 = sadd.s32 1, %s23
    $region7: #{tpu_custom_call.1} parent=1 // loop_footer_branch
      %22 = sbr.rel target = $region3
    $region8: #{tpu_custom_call.1} parent=1 // loop_exit
      _
    %3572 = vsyncpa [#allocation5], 1
    %s3573 = scalar_lea.sflag [#allocation5], 1
    %3574 = vsyncpa %s3573, 1
    %3575 = vsyncpa [#allocation8], 1
    %3576 = vsyncpa [#allocation11], 1
    %3577 = vsyncpa [#allocation6], 1
    %s3578 = scalar_lea.sflag [#allocation6], 1
    %3579 = vsyncpa %s3578, 1

</llo_original>
